<compile_context>
chip_gen: v7x
topology: tpu7x:2x2x1
jax: 0.10.0
libtpu: 0.0.40
codegen_flags: <defaults>
</compile_context>

<pallas_src>
import functools

import numpy as np
import jax
import jax.numpy as jnp
from jax import lax
from jax.experimental import pallas as pl
from jax.experimental.pallas import tpu as pltpu

LANE = 128


def _round_up(x, m):
    return (x + m - 1) // m * m


# ---------------------------------------------------------------------------
# Fused kernel: conv1+bn1+relu -> conv2+bn2+residual+relu (B images per block)
# ---------------------------------------------------------------------------
def _fused_basic_block_kernel(xcol_ref, w1_ref, b1_ref, w2_ref, b2_ref, mask_ref,
                              resid_ref, o_ref, o1col_ref, *, Wpp, M1, M2, Ppad, B, ng):
    # xcol_ref : (B, ng, M1, Kpad) bf16  conv1 im2col (taps folded into K)
    # w1_ref   : (ng, Kpad, Ppad)  bf16  conv1 weights (BN1 scale folded)
    # b1_ref   : (1, Ppad)         f32   BN1 bias
    # w2_ref   : (3, 3*Ppad, Ppad) bf16  conv2 weights, kw folded into K, grouped by kh
    # b2_ref   : (1, Ppad)         f32   BN2 bias
    # mask_ref : (M1, 1)           f32   1.0 on the valid HxW interior of the plane
    # resid_ref: (B, M2, Ppad)     f32   identity (x at the output coordinates)
    # o_ref    : (B, M2, Ppad)     bf16  output (padded-width flattened plane)
    # o1col_ref: (M1, 3*Ppad)      bf16  on-chip conv1 activation, kw-folded
    b1 = b1_ref[...]
    b2 = b2_ref[...]
    mask = mask_ref[...]

    for b in range(B):                      # images packed in this grid step
        # ---- conv1 + bn1 + relu: ng aligned matmuls, value accumulation ----
        acc1 = jnp.dot(xcol_ref[b, 0], w1_ref[0],
                       preferred_element_type=jnp.float32)
        for g in range(1, ng):
            acc1 = acc1 + jnp.dot(xcol_ref[b, g], w1_ref[g],
                                  preferred_element_type=jnp.float32)
        out1 = (jnp.maximum(acc1 + b1, 0.0) * mask).astype(o1col_ref.dtype)

        # ---- build kw-folded activation slab: o1col[q, kw*Ppad + c] = out1[q+kw, c]
        # (lane offsets are multiples of 128; the 1/2-row value shifts are the
        #  only inherent relayouts left; tail rows are never read)
        for kw in range(3):
            val = out1 if kw == 0 else out1[kw:, :]
            o1col_ref[0:M1 - kw, kw * Ppad:(kw + 1) * Ppad] = val

        # ---- conv2 + bn2: 3 matmuls, K = 3*Ppad, 8-aligned LHS row starts ----
        acc2 = jnp.dot(o1col_ref[0:M2, :], w2_ref[0],
                       preferred_element_type=jnp.float32)
        for kh in range(1, 3):
            acc2 = acc2 + jnp.dot(o1col_ref[kh * Wpp:kh * Wpp + M2, :], w2_ref[kh],
                                  preferred_element_type=jnp.float32)

        # ---- bias + f32 residual + relu, store bf16 (lane-dense) ----
        o_ref[b] = jnp.maximum(acc2 + b2 + resid_ref[b], 0.0).astype(o_ref.dtype)


# ---------------------------------------------------------------------------
# Wrapper: BN folding, im2col / layout prep, pallas_call
# ---------------------------------------------------------------------------
def _fold_bn(gamma, beta, mean, var, eps=1e-5):
    scale = gamma / jnp.sqrt(var + eps)
    bias = beta - mean * scale
    return scale, bias


def _pick_images_per_block(n):
    # pack a few images per grid step, but keep grid >= 2 so both TCs get work
    for b in (8, 4, 2, 1):
        if n % b == 0 and n // b >= 2:
            return b
    return 1


def basic_block_forward(x_nchw, params, stride=1):
    """BasicBlock forward (stride=1, downsample=None). NCHW in / NCHW out."""
    assert stride == 1, "only the stride=1 / downsample=None path is implemented"
    # TODO(synk): downsample branch (1x1 conv + zero-channel concat) not implemented
    #             (default BasicBlock constructor uses downsample=None, stride=1).
    N, Cin, H, W = (int(d) for d in x_nchw.shape)
    planes = int(params["conv1_w"].shape[0])
    assert Cin == planes, "residual add requires inplanes == planes without downsample"

    Hp = H + 2
    Wpp = _round_up(W + 2, 8)              # sublane-aligned padded plane width
    Ppad = _round_up(planes, LANE)
    M1 = _round_up(Hp * Wpp + 2, 16)       # conv1 activation rows kept on-chip
    M2 = H * Wpp                           # output rows (multiple of 8 by construction)
    F = Wpp + 1                            # plane index of output row 0

    # conv1 tap grouping: fold (tap, Cin) into the contraction dim K
    tpg = max(1, min(9, LANE // Cin))      # taps per K-group (9 for Cin=4)
    ng = -(-9 // tpg)                      # number of conv1 matmuls
    Kpad = _round_up(tpg * Cin, LANE)

    # --- layout prep: NCHW -> NHWC, bf16 early, zero-pad plane, im2col --------
    x_nhwc = jnp.transpose(x_nchw, (0, 2, 3, 1))
    xpad16 = jnp.pad(x_nhwc.astype(jnp.bfloat16),
                     ((0, 0), (1, 1), (1, Wpp - W - 1), (0, 0)))      # (N,Hp,Wpp,Cin)
    xflat = xpad16.reshape(N, Hp * Wpp, Cin)
    back = M1 + 2 * Wpp + 2 - (F + Hp * Wpp)
    xflat = jnp.pad(xflat, ((0, 0), (F, back), (0, 0)))               # row r <-> plane r-F

    groups = []
    for g in range(ng):
        taps = list(range(g * tpg, min((g + 1) * tpg, 9)))
        slabs = [xflat[:, (t // 3) * Wpp + (t % 3):(t // 3) * Wpp + (t % 3) + M1, :]
                 for t in taps]
        gcol = jnp.concatenate(slabs, axis=-1)                        # (N, M1, len*Cin)
        gcol = jnp.pad(gcol, ((0, 0), (0, 0), (0, Kpad - gcol.shape[-1])))
        groups.append(gcol)
    xcol = jnp.stack(groups, axis=1)                                  # (N, ng, M1, Kpad) bf16

    # --- fold BN scale into weights; BN bias applied in the kernel epilogue ---
    s1, b1v = _fold_bn(params["bn1_g"], params["bn1_b"], params["bn1_m"], params["bn1_v"])
    s2, b2v = _fold_bn(params["bn2_g"], params["bn2_b"], params["bn2_m"], params["bn2_v"])

    w1t = jnp.transpose(params["conv1_w"], (2, 3, 1, 0)) * s1[None, None, None, :]
    w1t = w1t.reshape(9, Cin, planes)                                 # (tap, cin, cout)
    w1_groups = []
    for g in range(ng):
        n_taps = min((g + 1) * tpg, 9) - g * tpg
        wg = w1t[g * tpg:g * tpg + n_taps].reshape(n_taps * Cin, planes)
        wg = jnp.pad(wg, ((0, Kpad - wg.shape[0]), (0, Ppad - planes)))
        w1_groups.append(wg)
    w1 = jnp.stack(w1_groups, axis=0).astype(jnp.bfloat16)            # (ng, Kpad, Ppad)

    w2t = jnp.transpose(params["conv2_w"], (2, 3, 1, 0)) * s2[None, None, None, :]
    w2_blocks = []
    for kh in range(3):
        rows = [jnp.pad(w2t[kh, kw], ((0, Ppad - planes), (0, Ppad - planes)))
                for kw in range(3)]
        w2_blocks.append(jnp.concatenate(rows, axis=0))               # (3*Ppad, Ppad)
    w2 = jnp.stack(w2_blocks, axis=0).astype(jnp.bfloat16)            # (3, 3*Ppad, Ppad)

    b1 = jnp.pad(b1v, (0, Ppad - planes)).reshape(1, Ppad).astype(jnp.float32)
    b2 = jnp.pad(b2v, (0, Ppad - planes)).reshape(1, Ppad).astype(jnp.float32)

    # validity mask for the conv1 activation plane (zeros on the padding ring / slack rows)
    r = np.arange(M1)
    hh, ww = r // Wpp, r % Wpp
    mask = jnp.asarray(((hh >= 1) & (hh <= H) & (ww >= 1) & (ww <= W))
                       .astype(np.float32).reshape(M1, 1))

    # f32 residual slab at the output coordinates (exact skip path)
    resid = jnp.pad(x_nhwc.astype(jnp.float32),
                    ((0, 0), (1, 1), (1, Wpp - W - 1), (0, Ppad - Cin)))
    resid = resid.reshape(N, Hp * Wpp, Ppad)[:, F:F + M2, :]          # (N, M2, Ppad)

    B = _pick_images_per_block(N)
    grid = (N // B,)

    kernel = functools.partial(_fused_basic_block_kernel, Wpp=Wpp, M1=M1, M2=M2,
                               Ppad=Ppad, B=B, ng=ng)

    flops = 2 * N * (ng * M1 * Kpad * Ppad + 3 * M2 * (3 * Ppad) * Ppad)
    bytes_accessed = (xcol.size * 2 + resid.size * 4 + w1.size * 2 + w2.size * 2
                      + b1.size * 4 + b2.size * 4 + mask.size * 4 + N * M2 * Ppad * 2)

    out_flat = pl.pallas_call(
        kernel,
        out_shape=jax.ShapeDtypeStruct((N, M2, Ppad), jnp.bfloat16),
        grid=grid,
        in_specs=[
            pl.BlockSpec((B, ng, M1, Kpad), lambda n: (n, 0, 0, 0)),   # conv1 im2col
            pl.BlockSpec((ng, Kpad, Ppad), lambda n: (0, 0, 0)),       # w1 (resident)
            pl.BlockSpec((1, Ppad), lambda n: (0, 0)),                 # bn1 bias
            pl.BlockSpec((3, 3 * Ppad, Ppad), lambda n: (0, 0, 0)),    # w2 (resident)
            pl.BlockSpec((1, Ppad), lambda n: (0, 0)),                 # bn2 bias
            pl.BlockSpec((M1, 1), lambda n: (0, 0)),                   # border mask
            pl.BlockSpec((B, M2, Ppad), lambda n: (n, 0, 0)),          # f32 residual
        ],
        out_specs=pl.BlockSpec((B, M2, Ppad), lambda n: (n, 0, 0)),
        scratch_shapes=[pltpu.VMEM((M1, 3 * Ppad), jnp.bfloat16)],     # on-chip conv1 act
        compiler_params=pltpu.CompilerParams(
            dimension_semantics=("parallel",),
            vmem_limit_bytes=32 * 1024 * 1024),
        cost_estimate=pl.CostEstimate(flops=int(flops), transcendentals=0,
                                      bytes_accessed=int(bytes_accessed)),
    )(xcol, w1, b1, w2, b2, mask, resid)

    # --- unflatten: (N, M2, Ppad) bf16 -> (N, H, W, planes) f32 -> NCHW --------
    out = out_flat.astype(jnp.float32).reshape(N, H, Wpp, Ppad)[:, :, :W, :planes]
    return jnp.transpose(out, (0, 3, 1, 2))


# ---------------------------------------------------------------------------
# Pure-JAX reference (for correctness check)
# ---------------------------------------------------------------------------
def _ref_forward(x_nchw, params, stride=1, eps=1e-5):
    def conv(x, w, s):
        return lax.conv_general_dilated(
            x, w, window_strides=(s, s), padding=((1, 1), (1, 1)),
            dimension_numbers=("NCHW", "OIHW", "NCHW"))

    def bn(x, g, b, m, v):
        g = g[None, :, None, None]; b = b[None, :, None, None]
        m = m[None, :, None, None]; v = v[None, :, None, None]
        return (x - m) / jnp.sqrt(v + eps) * g + b

    identity = x_nchw
    out = conv(x_nchw, params["conv1_w"], stride)
    out = jnp.maximum(bn(out, params["bn1_g"], params["bn1_b"],
                         params["bn1_m"], params["bn1_v"]), 0.0)
    out = conv(out, params["conv2_w"], 1)
    out = bn(out, params["bn2_g"], params["bn2_b"], params["bn2_m"], params["bn2_v"])
    out = out + identity
    return jnp.maximum(out, 0.0)


# ---------------------------------------------------------------------------
# Main
# ---------------------------------------------------------------------------
if __name__ == "__main__":
    key = jax.random.PRNGKey(0)
    N, inplanes, planes, H, W = 2, 4, 4, 16, 16

    keys = jax.random.split(key, 11)
    params = {
        "conv1_w": 0.1 * jax.random.normal(keys[0], (planes, inplanes, 3, 3), jnp.float32),
        "conv2_w": 0.1 * jax.random.normal(keys[1], (planes, planes, 3, 3), jnp.float32),
        "bn1_g": 1.0 + 0.1 * jax.random.normal(keys[2], (planes,), jnp.float32),
        "bn1_b": 0.1 * jax.random.normal(keys[3], (planes,), jnp.float32),
        "bn1_m": 0.05 * jax.random.normal(keys[4], (planes,), jnp.float32),
        "bn1_v": 1.0 + 0.1 * jnp.abs(jax.random.normal(keys[5], (planes,), jnp.float32)),
        "bn2_g": 1.0 + 0.1 * jax.random.normal(keys[6], (planes,), jnp.float32),
        "bn2_b": 0.1 * jax.random.normal(keys[7], (planes,), jnp.float32),
        "bn2_m": 0.05 * jax.random.normal(keys[8], (planes,), jnp.float32),
        "bn2_v": 1.0 + 0.1 * jnp.abs(jax.random.normal(keys[9], (planes,), jnp.float32)),
    }
    x = jax.random.normal(keys[10], (N, inplanes, H, W), jnp.float32)

    fwd = jax.jit(basic_block_forward, static_argnames=("stride",))
    out = jax.block_until_ready(fwd(x, params))

    ref = jax.block_until_ready(_ref_forward(x, params, stride=1))
    # bf16 matmul operands / bf16 on-chip activation / bf16 output rounding.
    np.testing.assert_allclose(np.asarray(out), np.asarray(ref), rtol=3e-2, atol=3e-2)

    print("KERNEL_OK")
</pallas_src>

<mosaic_0001>
module attributes {stable_mosaic.version = 11 : i64} {
  func.func @_fused_basic_block_kernel(%arg0: i32, %arg1: memref<1x1x448x128xbf16, #tpu.memory_space<vmem>>, %arg2: memref<1x128x128xbf16, #tpu.memory_space<vmem>>, %arg3: memref<1x128xf32, #tpu.memory_space<vmem>>, %arg4: memref<3x384x128xbf16, #tpu.memory_space<vmem>>, %arg5: memref<1x128xf32, #tpu.memory_space<vmem>>, %arg6: memref<448x1xf32, #tpu.memory_space<vmem>>, %arg7: memref<1x384x128xf32, #tpu.memory_space<vmem>>, %arg8: memref<1x384x128xbf16, #tpu.memory_space<vmem>>, %arg9: memref<448x384xbf16, #tpu.memory_space<vmem>>) attributes {dimension_semantics = [#tpu.dimension_semantics<parallel>], iteration_bounds = array<i64: 2>, scalar_prefetch = 0 : i64, scratch_operands = 1 : i64, tpu.core_type = #tpu.core_type<tc>, window_params = [{transform_indices = @transform_0, window_bounds = array<i64: 1, 1, 448, 128>}, {pipeline_mode = #tpu.pipeline_mode<synchronous>, transform_indices = @transform_1, window_bounds = array<i64: 1, 128, 128>}, {pipeline_mode = #tpu.pipeline_mode<synchronous>, transform_indices = @transform_2, window_bounds = array<i64: 1, 128>}, {pipeline_mode = #tpu.pipeline_mode<synchronous>, transform_indices = @transform_3, window_bounds = array<i64: 3, 384, 128>}, {pipeline_mode = #tpu.pipeline_mode<synchronous>, transform_indices = @transform_4, window_bounds = array<i64: 1, 128>}, {pipeline_mode = #tpu.pipeline_mode<synchronous>, transform_indices = @transform_5, window_bounds = array<i64: 448, 1>}, {transform_indices = @transform_6, window_bounds = array<i64: 1, 384, 128>}, {transform_indices = @transform_7, window_bounds = array<i64: 1, 384, 128>}]} {
    %c0 = arith.constant 0 : index
    %c0_0 = arith.constant 0 : index
    %0 = vector.load %arg3[%c0, %c0_0] : memref<1x128xf32, #tpu.memory_space<vmem>>, vector<1x128xf32>
    %c0_1 = arith.constant 0 : index
    %c0_2 = arith.constant 0 : index
    %1 = vector.load %arg5[%c0_1, %c0_2] : memref<1x128xf32, #tpu.memory_space<vmem>>, vector<1x128xf32>
    %c0_3 = arith.constant 0 : index
    %c0_4 = arith.constant 0 : index
    %2 = vector.load %arg6[%c0_3, %c0_4] : memref<448x1xf32, #tpu.memory_space<vmem>>, vector<448x1xf32>
    %c0_5 = arith.constant 0 : index
    %c0_6 = arith.constant 0 : index
    %c0_7 = arith.constant 0 : index
    %c0_8 = arith.constant 0 : index
    %3 = vector.load %arg1[%c0_5, %c0_6, %c0_7, %c0_8] : memref<1x1x448x128xbf16, #tpu.memory_space<vmem>>, vector<1x1x448x128xbf16>
    %4 = vector.shape_cast %3 : vector<1x1x448x128xbf16> to vector<448x128xbf16>
    %c0_9 = arith.constant 0 : index
    %c0_10 = arith.constant 0 : index
    %c0_11 = arith.constant 0 : index
    %5 = vector.load %arg2[%c0_9, %c0_10, %c0_11] : memref<1x128x128xbf16, #tpu.memory_space<vmem>>, vector<1x128x128xbf16>
    %6 = vector.shape_cast %5 : vector<1x128x128xbf16> to vector<128x128xbf16>
    %cst = arith.constant dense<0.000000e+00> : vector<448x128xf32>
    %7 = tpu.matmul %4, %6, %cst {dimension_numbers = #tpu.dot_dimension_numbers<[1], [0], [0], [1], [0, 0, 1, 1], [], []>} : vector<448x128xbf16>, vector<128x128xbf16>, vector<448x128xf32> -> vector<448x128xf32>
    %8 = vector.broadcast %0 : vector<1x128xf32> to vector<448x128xf32>
    %9 = arith.addf %7, %8 : vector<448x128xf32>
    %cst_12 = arith.constant 0.000000e+00 : f32
    %10 = vector.broadcast %cst_12 : f32 to vector<448x128xf32>
    %11 = arith.maximumf %9, %10 : vector<448x128xf32>
    %12 = vector.broadcast %2 : vector<448x1xf32> to vector<448x128xf32>
    %13 = arith.mulf %11, %12 : vector<448x128xf32>
    %14 = arith.truncf %13 : vector<448x128xf32> to vector<448x128xbf16>
    %c0_13 = arith.constant 0 : index
    %c0_14 = arith.constant 0 : index
    %15 = vector.load %arg9[%c0_13, %c0_14] : memref<448x384xbf16, #tpu.memory_space<vmem>>, vector<448x128xbf16>
    tpu.vector_store %arg9[%c0_13, %c0_14], %14 {strides = array<i32>} : memref<448x384xbf16, #tpu.memory_space<vmem>>, vector<448x128xbf16>,
    %16 = vector.extract_strided_slice %14 {offsets = [1, 0], sizes = [447, 128], strides = [1, 1]} : vector<448x128xbf16> to vector<447x128xbf16>
    %c0_15 = arith.constant 0 : index
    %c128 = arith.constant 128 : index
    %17 = vector.load %arg9[%c0_15, %c128] : memref<448x384xbf16, #tpu.memory_space<vmem>>, vector<447x128xbf16>
    tpu.vector_store %arg9[%c0_15, %c128], %16 {strides = array<i32>} : memref<448x384xbf16, #tpu.memory_space<vmem>>, vector<447x128xbf16>,
    %18 = vector.extract_strided_slice %14 {offsets = [2, 0], sizes = [446, 128], strides = [1, 1]} : vector<448x128xbf16> to vector<446x128xbf16>
    %c0_16 = arith.constant 0 : index
    %c256 = arith.constant 256 : index
    %19 = vector.load %arg9[%c0_16, %c256] : memref<448x384xbf16, #tpu.memory_space<vmem>>, vector<446x128xbf16>
    tpu.vector_store %arg9[%c0_16, %c256], %18 {strides = array<i32>} : memref<448x384xbf16, #tpu.memory_space<vmem>>, vector<446x128xbf16>,
    %c0_17 = arith.constant 0 : index
    %c0_18 = arith.constant 0 : index
    %20 = vector.load %arg9[%c0_17, %c0_18] : memref<448x384xbf16, #tpu.memory_space<vmem>>, vector<384x384xbf16>
    %c0_19 = arith.constant 0 : index
    %c0_20 = arith.constant 0 : index
    %c0_21 = arith.constant 0 : index
    %21 = vector.load %arg4[%c0_19, %c0_20, %c0_21] : memref<3x384x128xbf16, #tpu.memory_space<vmem>>, vector<1x384x128xbf16>
    %22 = vector.shape_cast %21 : vector<1x384x128xbf16> to vector<384x128xbf16>
    %cst_22 = arith.constant dense<0.000000e+00> : vector<384x128xf32>
    %23 = tpu.matmul %20, %22, %cst_22 {dimension_numbers = #tpu.dot_dimension_numbers<[1], [0], [0], [1], [0, 0, 1, 1], [], []>} : vector<384x384xbf16>, vector<384x128xbf16>, vector<384x128xf32> -> vector<384x128xf32>
    %c24 = arith.constant 24 : index
    %c0_23 = arith.constant 0 : index
    %24 = vector.load %arg9[%c24, %c0_23] : memref<448x384xbf16, #tpu.memory_space<vmem>>, vector<384x384xbf16>
    %c1 = arith.constant 1 : index
    %c0_24 = arith.constant 0 : index
    %c0_25 = arith.constant 0 : index
    %25 = vector.load %arg4[%c1, %c0_24, %c0_25] : memref<3x384x128xbf16, #tpu.memory_space<vmem>>, vector<1x384x128xbf16>
    %26 = vector.shape_cast %25 : vector<1x384x128xbf16> to vector<384x128xbf16>
    %cst_26 = arith.constant dense<0.000000e+00> : vector<384x128xf32>
    %27 = tpu.matmul %24, %26, %cst_26 {dimension_numbers = #tpu.dot_dimension_numbers<[1], [0], [0], [1], [0, 0, 1, 1], [], []>} : vector<384x384xbf16>, vector<384x128xbf16>, vector<384x128xf32> -> vector<384x128xf32>
    %28 = arith.addf %23, %27 : vector<384x128xf32>
    %c48 = arith.constant 48 : index
    %c0_27 = arith.constant 0 : index
    %29 = vector.load %arg9[%c48, %c0_27] : memref<448x384xbf16, #tpu.memory_space<vmem>>, vector<384x384xbf16>
    %c2 = arith.constant 2 : index
    %c0_28 = arith.constant 0 : index
    %c0_29 = arith.constant 0 : index
    %30 = vector.load %arg4[%c2, %c0_28, %c0_29] : memref<3x384x128xbf16, #tpu.memory_space<vmem>>, vector<1x384x128xbf16>
    %31 = vector.shape_cast %30 : vector<1x384x128xbf16> to vector<384x128xbf16>
    %cst_30 = arith.constant dense<0.000000e+00> : vector<384x128xf32>
    %32 = tpu.matmul %29, %31, %cst_30 {dimension_numbers = #tpu.dot_dimension_numbers<[1], [0], [0], [1], [0, 0, 1, 1], [], []>} : vector<384x384xbf16>, vector<384x128xbf16>, vector<384x128xf32> -> vector<384x128xf32>
    %33 = arith.addf %28, %32 : vector<384x128xf32>
    %34 = vector.broadcast %1 : vector<1x128xf32> to vector<384x128xf32>
    %35 = arith.addf %33, %34 : vector<384x128xf32>
    %c0_31 = arith.constant 0 : index
    %c0_32 = arith.constant 0 : index
    %c0_33 = arith.constant 0 : index
    %36 = vector.load %arg7[%c0_31, %c0_32, %c0_33] : memref<1x384x128xf32, #tpu.memory_space<vmem>>, vector<1x384x128xf32>
    %37 = vector.shape_cast %36 : vector<1x384x128xf32> to vector<384x128xf32>
    %38 = arith.addf %35, %37 : vector<384x128xf32>
    %cst_34 = arith.constant 0.000000e+00 : f32
    %39 = vector.broadcast %cst_34 : f32 to vector<384x128xf32>
    %40 = arith.maximumf %38, %39 : vector<384x128xf32>
    %41 = arith.truncf %40 : vector<384x128xf32> to vector<384x128xbf16>
    %c0_35 = arith.constant 0 : index
    %c0_36 = arith.constant 0 : index
    %c0_37 = arith.constant 0 : index
    %42 = vector.load %arg8[%c0_35, %c0_36, %c0_37] : memref<1x384x128xbf16, #tpu.memory_space<vmem>>, vector<1x384x128xbf16>
    %43 = vector.shape_cast %42 : vector<1x384x128xbf16> to vector<384x128xbf16>
    %44 = vector.shape_cast %41 : vector<384x128xbf16> to vector<1x384x128xbf16>
    tpu.vector_store %arg8[%c0_35, %c0_36, %c0_37], %44 {strides = array<i32>} : memref<1x384x128xbf16, #tpu.memory_space<vmem>>, vector<1x384x128xbf16>,
    return
  }
  func.func @transform_0(%arg0: i32) -> (i32, i32, i32, i32) {
    %c0_i32 = arith.constant 0 : i32
    %c0_i32_0 = arith.constant 0 : i32
    %c0_i32_1 = arith.constant 0 : i32
    %c0_i32_2 = arith.constant 0 : i32
    return %arg0, %c0_i32, %c0_i32_0, %c0_i32_1 : i32, i32, i32, i32
  }
  func.func @transform_1(%arg0: i32) -> (i32, i32, i32) {
    %c0_i32 = arith.constant 0 : i32
    %c0_i32_0 = arith.constant 0 : i32
    %c0_i32_1 = arith.constant 0 : i32
    %c0_i32_2 = arith.constant 0 : i32
    return %c0_i32, %c0_i32_0, %c0_i32_1 : i32, i32, i32
  }
  func.func @transform_2(%arg0: i32) -> (i32, i32) {
    %c0_i32 = arith.constant 0 : i32
    %c0_i32_0 = arith.constant 0 : i32
    %c0_i32_1 = arith.constant 0 : i32
    return %c0_i32, %c0_i32_0 : i32, i32
  }
  func.func @transform_3(%arg0: i32) -> (i32, i32, i32) {
    %c0_i32 = arith.constant 0 : i32
    %c0_i32_0 = arith.constant 0 : i32
    %c0_i32_1 = arith.constant 0 : i32
    %c0_i32_2 = arith.constant 0 : i32
    return %c0_i32, %c0_i32_0, %c0_i32_1 : i32, i32, i32
  }
  func.func @transform_4(%arg0: i32) -> (i32, i32) {
    %c0_i32 = arith.constant 0 : i32
    %c0_i32_0 = arith.constant 0 : i32
    %c0_i32_1 = arith.constant 0 : i32
    return %c0_i32, %c0_i32_0 : i32, i32
  }
  func.func @transform_5(%arg0: i32) -> (i32, i32) {
    %c0_i32 = arith.constant 0 : i32
    %c0_i32_0 = arith.constant 0 : i32
    %c0_i32_1 = arith.constant 0 : i32
    return %c0_i32, %c0_i32_0 : i32, i32
  }
  func.func @transform_6(%arg0: i32) -> (i32, i32, i32) {
    %c0_i32 = arith.constant 0 : i32
    %c0_i32_0 = arith.constant 0 : i32
    %c0_i32_1 = arith.constant 0 : i32
    return %arg0, %c0_i32, %c0_i32_0 : i32, i32, i32
  }
  func.func @transform_7(%arg0: i32) -> (i32, i32, i32) {
    %c0_i32 = arith.constant 0 : i32
    %c0_i32_0 = arith.constant 0 : i32
    %c0_i32_1 = arith.constant 0 : i32
    return %arg0, %c0_i32, %c0_i32_0 : i32, i32, i32
  }
}

</mosaic_0001>

<llo_original>
// kernel: basic_block_forward.1
$region0: #{basic_block_forward.1}
  #allocation0 [shape = 'u32[]', space=smem, size = 0x4, offset = 0x4, fixed_abs, tag = 'smem constant byte address 0x4 - core index']
  #allocation1 [shape = 'u32[144,128]{1,0:T(1,128)}', space=vmem, size = 0x12000, scoped, tag = 'internal scratch']
  #allocation2 [shape = 'bf16[448,384]{1,0:T(16,128)(2,1)}', space=vmem, size = 0x54000, scoped, tag = 'scratch operand']
  %s0 = inlined_call_operand.vmem [shape: bf16[2,1,448,128], index: 0, kind: input, shape index: {}]
  %s1 = inlined_call_operand.vmem [shape: bf16[1,128,128], index: 1, kind: input, shape index: {}]
  %s2 = inlined_call_operand.vmem [shape: f32[1,128], index: 2, kind: input, shape index: {}]
  %s3 = inlined_call_operand.vmem [shape: bf16[3,384,128], index: 3, kind: input, shape index: {}]
  %s4 = inlined_call_operand.vmem [shape: f32[1,128], index: 4, kind: input, shape index: {}]
  %s5 = inlined_call_operand.vmem [shape: f32[448,1], index: 5, kind: input, shape index: {}]
  %s6 = inlined_call_operand.vmem [shape: f32[2,384,128], index: 6, kind: input, shape index: {}]
  %s7 = inlined_call_operand.vmem [shape: bf16[2,384,128], index: 7, kind: output, shape index: {}]
  %s8 = sld [smem:[#allocation0]]
  $region61: #{basic_block_forward.1} parent=0
    _
  %s10 = ssub.s32 1, %s8
  %s11 = scalar_select 0, %s10, %s8
  loop: start=0, step=1, limit=4
  $region2: #{basic_block_forward.1} parent=0 // loop_pre_header
    _
  $region3: #{basic_block_forward.1} parent=0 // loop_header
    %s13 = sphi 0, %s17
    %p14 = scmp.ge.s32.totalorder %s13, 4
    %s23 = sphi 0, %s25
    %s26 = sphi 0, %s23
    %s27 = sphi 0, %s26
    %s43 = sphi 0, %s27
    %s47 = sphi 0, %s47
    %s49 = sphi 0, %s47
    %s50 = sphi 0, %s49
    %s64 = sphi 0, %s50
    %s68 = sphi 0, %s68
    %s70 = sphi 0, %s68
    %s71 = sphi 0, %s70
    %s85 = sphi 0, %s71
    %s89 = sphi 0, %s89
    %s91 = sphi 0, %s89
    %s92 = sphi 0, %s91
    %s106 = sphi 0, %s92
    %s110 = sphi 0, %s110
    %s112 = sphi 0, %s110
    %s113 = sphi 0, %s112
    %s127 = sphi 0, %s113
    %s131 = sphi 0, %s131
    %s133 = sphi 0, %s131
    %s134 = sphi 0, %s133
    %s148 = sphi 0, %s134
    %s154 = sphi 0, %s156
    %s157 = sphi 0, %s154
    %s158 = sphi 0, %s157
    %s174 = sphi 0, %s158
    %s180 = sphi 0, %s182
    %s183 = sphi 0, %s180
    %s184 = sphi 0, %s183
    %s200 = sphi 0, %s184
  $region4: #{basic_block_forward.1} parent=0 // loop_header_branch
    %16 = sbr.rel (%p14) target = $region8
  $region5: #{basic_block_forward.1} parent=0 // loop_body
    %s18 = ssub.s32 %s13, 1
    %s19 = ssub.s32 %s13, 2
    %s20 = sadd.s32 %s13, 1
    %s21 = ssub.s32 %s13, %s20
    %p22 = scmp.eq.s32.totalorder %s21, 0
    %s24 = sadd.s32 %s23, 1
    %s25 = scalar_select %p22, %s23, %s24
    %p28 = pneg %p22
    %p29 = scmp.eq.s32.totalorder %s13, 1
    %p30 = por %p28, %p29
    %p31 = scmp.ne.s32.totalorder %s23, %s26
    %p32 = scmp.eq.s32.totalorder %s13, 0
    %p33 = por %p31, %p32
    %p34 = scmp.ne.s32.totalorder %s23, %s26
    %p35 = scmp.eq.s32.totalorder %s18, 1
    %p36 = por %p34, %p35
    %p37 = scmp.ne.s32.totalorder %s26, %s27
    %p38 = scmp.eq.s32.totalorder %s18, 0
    %p39 = por %p37, %p38
    %p40 = scmp.ne.s32.totalorder %s26, %s27
    %p41 = scmp.eq.s32.totalorder %s19, 1
    %p42 = por %p40, %p41
    %p44 = scmp.ne.s32.totalorder %s27, %s43
    %p45 = scmp.eq.s32.totalorder %s19, 0
    %p46 = por %p44, %p45
    %s48 = sadd.s32 %s47, 1
    %p51 = scmp.eq.s32.totalorder %s13, 1
    %p52 = scmp.ne.s32.totalorder %s47, %s49
    %p53 = scmp.eq.s32.totalorder %s13, 0
    %p54 = por %p52, %p53
    %p55 = scmp.ne.s32.totalorder %s47, %s49
    %p56 = scmp.eq.s32.totalorder %s18, 1
    %p57 = por %p55, %p56
    %p58 = scmp.ne.s32.totalorder %s49, %s50
    %p59 = scmp.eq.s32.totalorder %s18, 0
    %p60 = por %p58, %p59
    %p61 = scmp.ne.s32.totalorder %s49, %s50
    %p62 = scmp.eq.s32.totalorder %s19, 1
    %p63 = por %p61, %p62
    %p65 = scmp.ne.s32.totalorder %s50, %s64
    %p66 = scmp.eq.s32.totalorder %s19, 0
    %p67 = por %p65, %p66
    %s69 = sadd.s32 %s68, 1
    %p72 = scmp.eq.s32.totalorder %s13, 1
    %p73 = scmp.ne.s32.totalorder %s68, %s70
    %p74 = scmp.eq.s32.totalorder %s13, 0
    %p75 = por %p73, %p74
    %p76 = scmp.ne.s32.totalorder %s68, %s70
    %p77 = scmp.eq.s32.totalorder %s18, 1
    %p78 = por %p76, %p77
    %p79 = scmp.ne.s32.totalorder %s70, %s71
    %p80 = scmp.eq.s32.totalorder %s18, 0
    %p81 = por %p79, %p80
    %p82 = scmp.ne.s32.totalorder %s70, %s71
    %p83 = scmp.eq.s32.totalorder %s19, 1
    %p84 = por %p82, %p83
    %p86 = scmp.ne.s32.totalorder %s71, %s85
    %p87 = scmp.eq.s32.totalorder %s19, 0
    %p88 = por %p86, %p87
    %s90 = sadd.s32 %s89, 1
    %p93 = scmp.eq.s32.totalorder %s13, 1
    %p94 = scmp.ne.s32.totalorder %s89, %s91
    %p95 = scmp.eq.s32.totalorder %s13, 0
    %p96 = por %p94, %p95
    %p97 = scmp.ne.s32.totalorder %s89, %s91
    %p98 = scmp.eq.s32.totalorder %s18, 1
    %p99 = por %p97, %p98
    %p100 = scmp.ne.s32.totalorder %s91, %s92
    %p101 = scmp.eq.s32.totalorder %s18, 0
    %p102 = por %p100, %p101
    %p103 = scmp.ne.s32.totalorder %s91, %s92
    %p104 = scmp.eq.s32.totalorder %s19, 1
    %p105 = por %p103, %p104
    %p107 = scmp.ne.s32.totalorder %s92, %s106
    %p108 = scmp.eq.s32.totalorder %s19, 0
    %p109 = por %p107, %p108
    %s111 = sadd.s32 %s110, 1
    %p114 = scmp.eq.s32.totalorder %s13, 1
    %p115 = scmp.ne.s32.totalorder %s110, %s112
    %p116 = scmp.eq.s32.totalorder %s13, 0
    %p117 = por %p115, %p116
    %p118 = scmp.ne.s32.totalorder %s110, %s112
    %p119 = scmp.eq.s32.totalorder %s18, 1
    %p120 = por %p118, %p119
    %p121 = scmp.ne.s32.totalorder %s112, %s113
    %p122 = scmp.eq.s32.totalorder %s18, 0
    %p123 = por %p121, %p122
    %p124 = scmp.ne.s32.totalorder %s112, %s113
    %p125 = scmp.eq.s32.totalorder %s19, 1
    %p126 = por %p124, %p125
    %p128 = scmp.ne.s32.totalorder %s113, %s127
    %p129 = scmp.eq.s32.totalorder %s19, 0
    %p130 = por %p128, %p129
    %s132 = sadd.s32 %s131, 1
    %p135 = scmp.eq.s32.totalorder %s13, 1
    %p136 = scmp.ne.s32.totalorder %s131, %s133
    %p137 = scmp.eq.s32.totalorder %s13, 0
    %p138 = por %p136, %p137
    %p139 = scmp.ne.s32.totalorder %s131, %s133
    %p140 = scmp.eq.s32.totalorder %s18, 1
    %p141 = por %p139, %p140
    %p142 = scmp.ne.s32.totalorder %s133, %s134
    %p143 = scmp.eq.s32.totalorder %s18, 0
    %p144 = por %p142, %p143
    %p145 = scmp.ne.s32.totalorder %s133, %s134
    %p146 = scmp.eq.s32.totalorder %s19, 1
    %p147 = por %p145, %p146
    %p149 = scmp.ne.s32.totalorder %s134, %s148
    %p150 = scmp.eq.s32.totalorder %s19, 0
    %p151 = por %p149, %p150
    %s152 = ssub.s32 %s13, %s20
    %p153 = scmp.eq.s32.totalorder %s152, 0
    %s155 = sadd.s32 %s154, 1
    %s156 = scalar_select %p153, %s154, %s155
    %p159 = pneg %p153
    %p160 = scmp.eq.s32.totalorder %s13, 1
    %p161 = por %p159, %p160
    %p162 = scmp.ne.s32.totalorder %s154, %s157
    %p163 = scmp.eq.s32.totalorder %s13, 0
    %p164 = por %p162, %p163
    %p165 = scmp.ne.s32.totalorder %s154, %s157
    %p166 = scmp.eq.s32.totalorder %s18, 1
    %p167 = por %p165, %p166
    %p168 = scmp.ne.s32.totalorder %s157, %s158
    %p169 = scmp.eq.s32.totalorder %s18, 0
    %p170 = por %p168, %p169
    %p171 = scmp.ne.s32.totalorder %s157, %s158
    %p172 = scmp.eq.s32.totalorder %s19, 1
    %p173 = por %p171, %p172
    %p175 = scmp.ne.s32.totalorder %s158, %s174
    %p176 = scmp.eq.s32.totalorder %s19, 0
    %p177 = por %p175, %p176
    %s178 = ssub.s32 %s13, %s20
    %p179 = scmp.eq.s32.totalorder %s178, 0
    %s181 = sadd.s32 %s180, 1
    %s182 = scalar_select %p179, %s180, %s181
    %p185 = pneg %p179
    %p186 = scmp.eq.s32.totalorder %s13, 1
    %p187 = por %p185, %p186
    %p188 = scmp.ne.s32.totalorder %s180, %s183
    %p189 = scmp.eq.s32.totalorder %s13, 0
    %p190 = por %p188, %p189
    %p191 = scmp.ne.s32.totalorder %s180, %s183
    %p192 = scmp.eq.s32.totalorder %s18, 1
    %p193 = por %p191, %p192
    %p194 = scmp.ne.s32.totalorder %s183, %s184
    %p195 = scmp.eq.s32.totalorder %s18, 0
    %p196 = por %p194, %p195
    %p197 = scmp.ne.s32.totalorder %s183, %s184
    %p198 = scmp.eq.s32.totalorder %s19, 1
    %p199 = por %p197, %p198
    %p201 = scmp.ne.s32.totalorder %s184, %s200
    %p202 = scmp.eq.s32.totalorder %s19, 0
    %p203 = por %p201, %p202
    %p204 = scmp.le.s32.totalorder 1, %s13
    %p205 = scmp.lt.s32.totalorder %s13, 3
    %p206 = pnand %p204, %p205
    %p207 = pneg %p206
    // Predicated region
    $region9: #{basic_block_forward.1} parent=5 // pred_check
      _
    $region10: #{basic_block_forward.1} parent=5 // pred_check_branch
      %209 = sbr.rel (%p206) target = $region12
    $region11: #{basic_block_forward.1} parent=5 // pred_region
      %s210 = ssub.s32 %s13, 1
      // Predicated region
      $region13: #{basic_block_forward.1} parent=11 // pred_check
        %p211 = pneg %p60
      $region14: #{basic_block_forward.1} parent=11 // pred_check_branch
        %213 = sbr.rel (%p211) target = $region16
      $region15: #{basic_block_forward.1} parent=11 // pred_region
        _
      $region16: #{basic_block_forward.1} parent=11 // pred_fallthru
        _
      // Predicated region
      $region17: #{basic_block_forward.1} parent=11 // pred_check
        %p214 = pneg %p81
      $region18: #{basic_block_forward.1} parent=11 // pred_check_branch
        %216 = sbr.rel (%p214) target = $region20
      $region19: #{basic_block_forward.1} parent=11 // pred_region
        _
      $region20: #{basic_block_forward.1} parent=11 // pred_fallthru
        _
      // Predicated region
      $region21: #{basic_block_forward.1} parent=11 // pred_check
        %p217 = pneg %p102
      $region22: #{basic_block_forward.1} parent=11 // pred_check_branch
        %219 = sbr.rel (%p217) target = $region24
      $region23: #{basic_block_forward.1} parent=11 // pred_region
        _
      $region24: #{basic_block_forward.1} parent=11 // pred_fallthru
        _
      // Predicated region
      $region25: #{basic_block_forward.1} parent=11 // pred_check
        %p220 = pneg %p123
      $region26: #{basic_block_forward.1} parent=11 // pred_check_branch
        %222 = sbr.rel (%p220) target = $region28
      $region27: #{basic_block_forward.1} parent=11 // pred_region
        _
      $region28: #{basic_block_forward.1} parent=11 // pred_fallthru
        _
      // Predicated region
      $region29: #{basic_block_forward.1} parent=11 // pred_check
        %p223 = pneg %p144
      $region30: #{basic_block_forward.1} parent=11 // pred_check_branch
        %225 = sbr.rel (%p223) target = $region32
      $region31: #{basic_block_forward.1} parent=11 // pred_region
        _
      $region32: #{basic_block_forward.1} parent=11 // pred_fallthru
        _
    $region12: #{basic_block_forward.1} parent=5 // pred_fallthru
      _
    %p226 = scmp.lt.s32.totalorder %s13, 2
    // Predicated region
    $region33: #{basic_block_forward.1} parent=5 // pred_check
      %p227 = pneg %p226
    $region34: #{basic_block_forward.1} parent=5 // pred_check_branch
      %229 = sbr.rel (%p227) target = $region36
    $region35: #{basic_block_forward.1} parent=5 // pred_region
      // Predicated region
      $region37: #{basic_block_forward.1} parent=35 // pred_check
        %p230 = pneg %p33
      $region38: #{basic_block_forward.1} parent=35 // pred_check_branch
        %232 = sbr.rel (%p230) target = $region40
      $region39: #{basic_block_forward.1} parent=35 // pred_region
        %p233 = scmp.lt.s32.totalorder %s13, 1
        %s234 = scalar_select %p233, %s13, 1
        %s235 = smul.addr %s234, 56
        %s236 = smul.addr %s235, 4
        %s237 = scalar_lea.vmem %s0, %s236
      $region40: #{basic_block_forward.1} parent=35 // pred_fallthru
        _
      // Predicated region
      $region41: #{basic_block_forward.1} parent=35 // pred_check
        %p238 = pneg %p164
      $region42: #{basic_block_forward.1} parent=35 // pred_check_branch
        %240 = sbr.rel (%p238) target = $region44
      $region43: #{basic_block_forward.1} parent=35 // pred_region
        %p241 = scmp.lt.s32.totalorder %s13, 1
        %s242 = scalar_select %p241, %s13, 1
        %s243 = smul.addr %s242, 48
        %s244 = smul.addr %s243, 8
        %s245 = scalar_lea.vmem %s6, %s244
      $region44: #{basic_block_forward.1} parent=35 // pred_fallthru
        _
    $region36: #{basic_block_forward.1} parent=5 // pred_fallthru
      _
    %p246 = scmp.le.s32.totalorder 1, %s13
    %p247 = scmp.lt.s32.totalorder %s13, 3
    %p248 = pnand %p246, %p247
    %p249 = pneg %p248
    // Predicated region
    $region45: #{basic_block_forward.1} parent=5 // pred_check
      _
    $region46: #{basic_block_forward.1} parent=5 // pred_check_branch
      %251 = sbr.rel (%p248) target = $region48
    $region47: #{basic_block_forward.1} parent=5 // pred_region
      %s252 = ssub.s32 %s13, 1
      %p253 = scmp.lt.s32.totalorder %s18, 1
      %s254 = scalar_select %p253, %s18, 1
      %s255 = smul.addr %s254, 56
      %s256 = smul.addr %s255, 4
      %s257 = scalar_lea.vmem %s0, %s256
      %p258 = pneg %p39
      %p259 = pneg %p36
      %p260 = pneg %p60
      %p261 = pneg %p57
      %p262 = pneg %p81
      %p263 = pneg %p78
      %p264 = pneg %p102
      %p265 = pneg %p99
      %p266 = pneg %p123
      %p267 = pneg %p120
      %p268 = pneg %p144
      %p269 = pneg %p141
      %p270 = scmp.lt.s32.totalorder %s18, 1
      %s271 = scalar_select %p270, %s18, 1
      %s272 = smul.addr %s271, 48
      %s273 = smul.addr %s272, 8
      %s274 = scalar_lea.vmem %s6, %s273
      %p275 = pneg %p170
      %p276 = pneg %p167
      %p277 = pneg %p196
      %p278 = pneg %p193
      %p279 = scmp.lt.s32.totalorder %s18, 1
      %s280 = scalar_select %p279, %s18, 1
      %s281 = smul.addr %s280, 48
      %s282 = smul.addr %s281, 4
      %s283 = scalar_lea.vmem %s7, %s282
      %p284 = scmp.lt.s32.totalorder %s18, 1
      %s285 = scalar_select %p284, %s18, 1
      %s286 = smul.addr %s285, 56
      %s287 = smul.addr %s286, 4
      %s288 = scalar_lea.vmem %s0, %s287
      %p289 = scmp.lt.s32.totalorder %s18, 1
      %s290 = scalar_select %p289, %s18, 1
      %s291 = smul.addr %s290, 48
      %s292 = smul.addr %s291, 8
      %s293 = scalar_lea.vmem %s6, %s292
      %p294 = scmp.lt.s32.totalorder %s18, 1
      %s295 = scalar_select %p294, %s18, 1
      %s296 = smul.addr %s295, 48
      %s297 = smul.addr %s296, 4
      %s298 = scalar_lea.vmem %s7, %s297
      %v300 = vld [vmem:[%s2] sm:$0x1]
      %v301 = vld [vmem:[%s4] sm:$0x1]
      %v302 = vld [vmem:[%s5] sm:$0xff]
      %v303 = vld [vmem:[%s5 + $0x8] sm:$0xff]
      %v304 = vld [vmem:[%s5 + $0x10] sm:$0xff]
      %v305 = vld [vmem:[%s5 + $0x18] sm:$0xff]
      %v306 = vld [vmem:[%s5 + $0x20] sm:$0xff]
      %v307 = vld [vmem:[%s5 + $0x28] sm:$0xff]
      %v308 = vld [vmem:[%s5 + $0x30] sm:$0xff]
      %v309 = vld [vmem:[%s5 + $0x38] sm:$0xff]
      %v310 = vld [vmem:[%s5 + $0x40] sm:$0xff]
      %v311 = vld [vmem:[%s5 + $0x48] sm:$0xff]
      %v312 = vld [vmem:[%s5 + $0x50] sm:$0xff]
      %v313 = vld [vmem:[%s5 + $0x58] sm:$0xff]
      %v314 = vld [vmem:[%s5 + $0x60] sm:$0xff]
      %v315 = vld [vmem:[%s5 + $0x68] sm:$0xff]
      %v316 = vld [vmem:[%s5 + $0x70] sm:$0xff]
      %v317 = vld [vmem:[%s5 + $0x78] sm:$0xff]
      %v318 = vld [vmem:[%s5 + $0x80] sm:$0xff]
      %v319 = vld [vmem:[%s5 + $0x88] sm:$0xff]
      %v320 = vld [vmem:[%s5 + $0x90] sm:$0xff]
      %v321 = vld [vmem:[%s5 + $0x98] sm:$0xff]
      %v322 = vld [vmem:[%s5 + $0xa0] sm:$0xff]
      %v323 = vld [vmem:[%s5 + $0xa8] sm:$0xff]
      %v324 = vld [vmem:[%s5 + $0xb0] sm:$0xff]
      %v325 = vld [vmem:[%s5 + $0xb8] sm:$0xff]
      %v326 = vld [vmem:[%s5 + $0xc0] sm:$0xff]
      %v327 = vld [vmem:[%s5 + $0xc8] sm:$0xff]
      %v328 = vld [vmem:[%s5 + $0xd0] sm:$0xff]
      %v329 = vld [vmem:[%s5 + $0xd8] sm:$0xff]
      %v330 = vld [vmem:[%s5 + $0xe0] sm:$0xff]
      %v331 = vld [vmem:[%s5 + $0xe8] sm:$0xff]
      %v332 = vld [vmem:[%s5 + $0xf0] sm:$0xff]
      %v333 = vld [vmem:[%s5 + $0xf8] sm:$0xff]
      %v334 = vld [vmem:[%s5 + $0x100] sm:$0xff]
      %v335 = vld [vmem:[%s5 + $0x108] sm:$0xff]
      %v336 = vld [vmem:[%s5 + $0x110] sm:$0xff]
      %v337 = vld [vmem:[%s5 + $0x118] sm:$0xff]
      %v338 = vld [vmem:[%s5 + $0x120] sm:$0xff]
      %v339 = vld [vmem:[%s5 + $0x128] sm:$0xff]
      %v340 = vld [vmem:[%s5 + $0x130] sm:$0xff]
      %v341 = vld [vmem:[%s5 + $0x138] sm:$0xff]
      %v342 = vld [vmem:[%s5 + $0x140] sm:$0xff]
      %v343 = vld [vmem:[%s5 + $0x148] sm:$0xff]
      %v344 = vld [vmem:[%s5 + $0x150] sm:$0xff]
      %v345 = vld [vmem:[%s5 + $0x158] sm:$0xff]
      %v346 = vld [vmem:[%s5 + $0x160] sm:$0xff]
      %v347 = vld [vmem:[%s5 + $0x168] sm:$0xff]
      %v348 = vld [vmem:[%s5 + $0x170] sm:$0xff]
      %v349 = vld [vmem:[%s5 + $0x178] sm:$0xff]
      %v350 = vld [vmem:[%s5 + $0x180] sm:$0xff]
      %v351 = vld [vmem:[%s5 + $0x188] sm:$0xff]
      %v352 = vld [vmem:[%s5 + $0x190] sm:$0xff]
      %v353 = vld [vmem:[%s5 + $0x198] sm:$0xff]
      %v354 = vld [vmem:[%s5 + $0x1a0] sm:$0xff]
      %v355 = vld [vmem:[%s5 + $0x1a8] sm:$0xff]
      %v356 = vld [vmem:[%s5 + $0x1b0] sm:$0xff]
      %v357 = vld [vmem:[%s5 + $0x1b8] sm:$0xff]
      %v358 = vld [vmem:[%s288] sm:$0xf]
      %v359 = vld [vmem:[%s288 + $0x4] sm:$0xf]
      %v360 = vld [vmem:[%s288 + $0x8] sm:$0xf]
      %v361 = vld [vmem:[%s288 + $0xc] sm:$0xf]
      %v362 = vld [vmem:[%s288 + $0x10] sm:$0xf]
      %v363 = vld [vmem:[%s288 + $0x14] sm:$0xf]
      %v364 = vld [vmem:[%s288 + $0x18] sm:$0xf]
      %v365 = vld [vmem:[%s288 + $0x1c] sm:$0xf]
      %v366 = vld [vmem:[%s288 + $0x20] sm:$0xf]
      %v367 = vld [vmem:[%s288 + $0x24] sm:$0xf]
      %v368 = vld [vmem:[%s288 + $0x28] sm:$0xf]
      %v369 = vld [vmem:[%s288 + $0x2c] sm:$0xf]
      %v370 = vld [vmem:[%s288 + $0x30] sm:$0xf]
      %v371 = vld [vmem:[%s288 + $0x34] sm:$0xf]
      %v372 = vld [vmem:[%s288 + $0x38] sm:$0xf]
      %v373 = vld [vmem:[%s288 + $0x3c] sm:$0xf]
      %v374 = vld [vmem:[%s288 + $0x40] sm:$0xf]
      %v375 = vld [vmem:[%s288 + $0x44] sm:$0xf]
      %v376 = vld [vmem:[%s288 + $0x48] sm:$0xf]
      %v377 = vld [vmem:[%s288 + $0x4c] sm:$0xf]
      %v378 = vld [vmem:[%s288 + $0x50] sm:$0xf]
      %v379 = vld [vmem:[%s288 + $0x54] sm:$0xf]
      %v380 = vld [vmem:[%s288 + $0x58] sm:$0xf]
      %v381 = vld [vmem:[%s288 + $0x5c] sm:$0xf]
      %v382 = vld [vmem:[%s288 + $0x60] sm:$0xf]
      %v383 = vld [vmem:[%s288 + $0x64] sm:$0xf]
      %v384 = vld [vmem:[%s288 + $0x68] sm:$0xf]
      %v385 = vld [vmem:[%s288 + $0x6c] sm:$0xf]
      %v386 = vld [vmem:[%s288 + $0x70] sm:$0xf]
      %v387 = vld [vmem:[%s288 + $0x74] sm:$0xf]
      %v388 = vld [vmem:[%s288 + $0x78] sm:$0xf]
      %v389 = vld [vmem:[%s288 + $0x7c] sm:$0xf]
      %v390 = vld [vmem:[%s288 + $0x80] sm:$0xf]
      %v391 = vld [vmem:[%s288 + $0x84] sm:$0xf]
      %v392 = vld [vmem:[%s288 + $0x88] sm:$0xf]
      %v393 = vld [vmem:[%s288 + $0x8c] sm:$0xf]
      %v394 = vld [vmem:[%s288 + $0x90] sm:$0xf]
      %v395 = vld [vmem:[%s288 + $0x94] sm:$0xf]
      %v396 = vld [vmem:[%s288 + $0x98] sm:$0xf]
      %v397 = vld [vmem:[%s288 + $0x9c] sm:$0xf]
      %v398 = vld [vmem:[%s288 + $0xa0] sm:$0xf]
      %v399 = vld [vmem:[%s288 + $0xa4] sm:$0xf]
      %v400 = vld [vmem:[%s288 + $0xa8] sm:$0xf]
      %v401 = vld [vmem:[%s288 + $0xac] sm:$0xf]
      %v402 = vld [vmem:[%s288 + $0xb0] sm:$0xf]
      %v403 = vld [vmem:[%s288 + $0xb4] sm:$0xf]
      %v404 = vld [vmem:[%s288 + $0xb8] sm:$0xf]
      %v405 = vld [vmem:[%s288 + $0xbc] sm:$0xf]
      %v406 = vld [vmem:[%s288 + $0xc0] sm:$0xf]
      %v407 = vld [vmem:[%s288 + $0xc4] sm:$0xf]
      %v408 = vld [vmem:[%s288 + $0xc8] sm:$0xf]
      %v409 = vld [vmem:[%s288 + $0xcc] sm:$0xf]
      %v410 = vld [vmem:[%s288 + $0xd0] sm:$0xf]
      %v411 = vld [vmem:[%s288 + $0xd4] sm:$0xf]
      %v412 = vld [vmem:[%s288 + $0xd8] sm:$0xf]
      %v413 = vld [vmem:[%s288 + $0xdc] sm:$0xf]
      %v414 = vld [vmem:[%s1] sm:$0xf]
      %v415 = vld [vmem:[%s1 + $0x4] sm:$0xf]
      %v416 = vld [vmem:[%s1 + $0x8] sm:$0xf]
      %v417 = vld [vmem:[%s1 + $0xc] sm:$0xf]
      %v418 = vld [vmem:[%s1 + $0x10] sm:$0xf]
      %v419 = vld [vmem:[%s1 + $0x14] sm:$0xf]
      %v420 = vld [vmem:[%s1 + $0x18] sm:$0xf]
      %v421 = vld [vmem:[%s1 + $0x1c] sm:$0xf]
      %v422 = vld [vmem:[%s1 + $0x20] sm:$0xf]
      %v423 = vld [vmem:[%s1 + $0x24] sm:$0xf]
      %v424 = vld [vmem:[%s1 + $0x28] sm:$0xf]
      %v425 = vld [vmem:[%s1 + $0x2c] sm:$0xf]
      %v426 = vld [vmem:[%s1 + $0x30] sm:$0xf]
      %v427 = vld [vmem:[%s1 + $0x34] sm:$0xf]
      %v428 = vld [vmem:[%s1 + $0x38] sm:$0xf]
      %v429 = vld [vmem:[%s1 + $0x3c] sm:$0xf]
      %v431 = vlaneseq
      %v432 = vshrl.u32 %v431, 7
      %v433 = vsub.s32 0, %v432
      %v434 = vrot.slane %v300, %v433
      %v492 = vunpack.c.l.b16 %v358
      %v493 = vunpack.c.l.b16 %v359
      %v494 = vunpack.c.l.b16 %v360
      %v495 = vunpack.c.l.b16 %v361
      %v496 = vunpack.c.l.b16 %v362
      %v497 = vunpack.c.l.b16 %v363
      %v498 = vunpack.c.l.b16 %v364
      %v499 = vunpack.c.l.b16 %v365
      %v500 = vunpack.c.l.b16 %v366
      %v501 = vunpack.c.l.b16 %v367
      %v502 = vunpack.c.l.b16 %v368
      %v503 = vunpack.c.l.b16 %v369
      %v504 = vunpack.c.l.b16 %v370
      %v505 = vunpack.c.l.b16 %v371
      %v506 = vunpack.c.l.b16 %v372
      %v507 = vunpack.c.l.b16 %v373
      %v508 = vunpack.c.l.b16 %v374
      %v509 = vunpack.c.l.b16 %v375
      %v510 = vunpack.c.l.b16 %v376
      %v511 = vunpack.c.l.b16 %v377
      %v512 = vunpack.c.l.b16 %v378
      %v513 = vunpack.c.l.b16 %v379
      %v514 = vunpack.c.l.b16 %v380
      %v515 = vunpack.c.l.b16 %v381
      %v516 = vunpack.c.l.b16 %v382
      %v517 = vunpack.c.l.b16 %v383
      %v518 = vunpack.c.l.b16 %v384
      %v519 = vunpack.c.l.b16 %v385
      %v520 = vunpack.c.l.b16 %v386
      %v521 = vunpack.c.l.b16 %v387
      %v522 = vunpack.c.l.b16 %v388
      %v523 = vunpack.c.l.b16 %v389
      %v524 = vunpack.c.l.b16 %v390
      %v525 = vunpack.c.l.b16 %v391
      %v526 = vunpack.c.l.b16 %v392
      %v527 = vunpack.c.l.b16 %v393
      %v528 = vunpack.c.l.b16 %v394
      %v529 = vunpack.c.l.b16 %v395
      %v530 = vunpack.c.l.b16 %v396
      %v531 = vunpack.c.l.b16 %v397
      %v532 = vunpack.c.l.b16 %v398
      %v533 = vunpack.c.l.b16 %v399
      %v534 = vunpack.c.l.b16 %v400
      %v535 = vunpack.c.l.b16 %v401
      %v536 = vunpack.c.l.b16 %v402
      %v537 = vunpack.c.l.b16 %v403
      %v538 = vunpack.c.l.b16 %v404
      %v539 = vunpack.c.l.b16 %v405
      %v540 = vunpack.c.l.b16 %v406
      %v541 = vunpack.c.l.b16 %v407
      %v542 = vunpack.c.l.b16 %v408
      %v543 = vunpack.c.l.b16 %v409
      %v544 = vunpack.c.l.b16 %v410
      %v545 = vunpack.c.l.b16 %v411
      %v546 = vunpack.c.l.b16 %v412
      %v547 = vunpack.c.l.b16 %v413
      %v548 = vpack.c.b16 %v493, %v492
      %v549 = vpack.c.b16 %v495, %v494
      %v550 = vpack.c.b16 %v497, %v496
      %v551 = vpack.c.b16 %v499, %v498
      %v552 = vpack.c.b16 %v501, %v500
      %v553 = vpack.c.b16 %v503, %v502
      %v554 = vpack.c.b16 %v505, %v504
      %v555 = vpack.c.b16 %v507, %v506
      %v556 = vpack.c.b16 %v509, %v508
      %v557 = vpack.c.b16 %v511, %v510
      %v558 = vpack.c.b16 %v513, %v512
      %v559 = vpack.c.b16 %v515, %v514
      %v560 = vpack.c.b16 %v517, %v516
      %v561 = vpack.c.b16 %v519, %v518
      %v562 = vpack.c.b16 %v521, %v520
      %v563 = vpack.c.b16 %v523, %v522
      %v564 = vpack.c.b16 %v525, %v524
      %v565 = vpack.c.b16 %v527, %v526
      %v566 = vpack.c.b16 %v529, %v528
      %v567 = vpack.c.b16 %v531, %v530
      %v568 = vpack.c.b16 %v533, %v532
      %v569 = vpack.c.b16 %v535, %v534
      %v570 = vpack.c.b16 %v537, %v536
      %v571 = vpack.c.b16 %v539, %v538
      %v572 = vpack.c.b16 %v541, %v540
      %v573 = vpack.c.b16 %v543, %v542
      %v574 = vpack.c.b16 %v545, %v544
      %v575 = vpack.c.b16 %v547, %v546
      %v620 = vunpack.c.l.b16 %v414
      %v621 = vunpack.c.l.b16 %v415
      %v622 = vunpack.c.l.b16 %v416
      %v623 = vunpack.c.l.b16 %v417
      %v624 = vunpack.c.l.b16 %v418
      %v625 = vunpack.c.l.b16 %v419
      %v626 = vunpack.c.l.b16 %v420
      %v627 = vunpack.c.l.b16 %v421
      %v628 = vunpack.c.l.b16 %v422
      %v629 = vunpack.c.l.b16 %v423
      %v630 = vunpack.c.l.b16 %v424
      %v631 = vunpack.c.l.b16 %v425
      %v632 = vunpack.c.l.b16 %v426
      %v633 = vunpack.c.l.b16 %v427
      %v634 = vunpack.c.l.b16 %v428
      %v635 = vunpack.c.l.b16 %v429
      %v636 = vpack.c.b16 %v621, %v620
      %v637 = vpack.c.b16 %v623, %v622
      %v638 = vpack.c.b16 %v625, %v624
      %v639 = vpack.c.b16 %v627, %v626
      %v640 = vpack.c.b16 %v629, %v628
      %v641 = vpack.c.b16 %v631, %v630
      %v642 = vpack.c.b16 %v633, %v632
      %v643 = vpack.c.b16 %v635, %v634
      %652 = vmatprep.subr.bf16.mxu0 0
      %653 = vmatpush1.bf16.msra.mxu0 %v636
      %654 = vmatprep.subr.bf16.mxu0 0
      %655 = vmatpush1.bf16.msra.mxu0 %v637
      %656 = vmatprep.subr.bf16.mxu0 0
      %657 = vmatpush1.bf16.msra.mxu0 %v638
      %658 = vmatprep.subr.bf16.mxu0 0
      %659 = vmatpush1.bf16.msra.mxu0 %v639
      %660 = vmatprep.subr.bf16.mxu0 0
      %661 = vmatpush1.bf16.msra.mxu0 %v640
      %662 = vmatprep.subr.bf16.mxu0 0
      %663 = vmatpush1.bf16.msra.mxu0 %v641
      %664 = vmatprep.subr.bf16.mxu0 0
      %665 = vmatpush1.bf16.msra.mxu0 %v642
      %666 = vmatprep.subr.bf16.mxu0 0
      %667 = vmatpush1.bf16.msra.mxu0 %v643
      %668 = vmatprep.subr.bf16.mxu0 0
      %669 = vmatpush1.bf16.msra.mxu0 0
      %670 = vmatprep.subr.bf16.mxu0 0
      %671 = vmatpush1.bf16.msra.mxu0 0
      %672 = vmatprep.subr.bf16.mxu0 0
      %673 = vmatpush1.bf16.msra.mxu0 0
      %674 = vmatprep.subr.bf16.mxu0 0
      %675 = vmatpush1.bf16.msra.mxu0 0
      %676 = vmatprep.subr.bf16.mxu0 0
      %677 = vmatpush1.bf16.msra.mxu0 0
      %678 = vmatprep.subr.bf16.mxu0 0
      %679 = vmatpush1.bf16.msra.mxu0 0
      %680 = vmatprep.subr.bf16.mxu0 0
      %681 = vmatpush1.bf16.msra.mxu0 0
      %682 = vmatprep.subr.bf16.mxu0 0
      %683 = vmatpush1.bf16.msra.mxu0 0
      %684 = vmatprep.mubr.bf16.mxu0 0
      %685 = vmatmul.mubr.bf16.gmra.mrb[0].mxu0 %v548
      %v686 = vpop.f32.mrb[0].mxu0
      %v687 = vadd.f32 %v434, %v686
      %v688 = vpop.f32.mrb[0].mxu0
      %v689 = vpop.f32.mrb[0].mxu0
      %v690 = vadd.f32 %v434, %v689
      %v691 = vpop.f32.mrb[0].mxu0
      %692 = vmatprep.mubr.bf16.mxu0 0
      %693 = vmatmul.mubr.bf16.gmra.mrb[0].mxu0 %v549
      %v694 = vpop.f32.mrb[0].mxu0
      %v695 = vadd.f32 %v434, %v694
      %v696 = vpop.f32.mrb[0].mxu0
      %v697 = vpop.f32.mrb[0].mxu0
      %v698 = vadd.f32 %v434, %v697
      %v699 = vpop.f32.mrb[0].mxu0
      %700 = vmatprep.mubr.bf16.mxu0 0
      %701 = vmatmul.mubr.bf16.gmra.mrb[0].mxu0 %v550
      %v702 = vpop.f32.mrb[0].mxu0
      %v703 = vadd.f32 %v434, %v702
      %v704 = vpop.f32.mrb[0].mxu0
      %v705 = vpop.f32.mrb[0].mxu0
      %v706 = vadd.f32 %v434, %v705
      %v707 = vpop.f32.mrb[0].mxu0
      %708 = vmatprep.mubr.bf16.mxu0 0
      %709 = vmatmul.mubr.bf16.gmra.mrb[0].mxu0 %v551
      %v710 = vpop.f32.mrb[0].mxu0
      %v711 = vadd.f32 %v434, %v710
      %v712 = vpop.f32.mrb[0].mxu0
      %v713 = vpop.f32.mrb[0].mxu0
      %v714 = vadd.f32 %v434, %v713
      %v715 = vpop.f32.mrb[0].mxu0
      %716 = vmatprep.mubr.bf16.mxu0 0
      %717 = vmatmul.mubr.bf16.gmra.mrb[0].mxu0 %v552
      %v718 = vpop.f32.mrb[0].mxu0
      %v719 = vadd.f32 %v434, %v718
      %v720 = vpop.f32.mrb[0].mxu0
      %v721 = vpop.f32.mrb[0].mxu0
      %v722 = vadd.f32 %v434, %v721
      %v723 = vpop.f32.mrb[0].mxu0
      %724 = vmatprep.mubr.bf16.mxu0 0
      %725 = vmatmul.mubr.bf16.gmra.mrb[0].mxu0 %v553
      %v726 = vpop.f32.mrb[0].mxu0
      %v727 = vadd.f32 %v434, %v726
      %v728 = vpop.f32.mrb[0].mxu0
      %v729 = vpop.f32.mrb[0].mxu0
      %v730 = vadd.f32 %v434, %v729
      %v731 = vpop.f32.mrb[0].mxu0
      %732 = vmatprep.mubr.bf16.mxu0 0
      %733 = vmatmul.mubr.bf16.gmra.mrb[0].mxu0 %v554
      %v734 = vpop.f32.mrb[0].mxu0
      %v735 = vadd.f32 %v434, %v734
      %v736 = vpop.f32.mrb[0].mxu0
      %v737 = vpop.f32.mrb[0].mxu0
      %v738 = vadd.f32 %v434, %v737
      %v739 = vpop.f32.mrb[0].mxu0
      %740 = vmatprep.mubr.bf16.mxu0 0
      %741 = vmatmul.mubr.bf16.gmra.mrb[0].mxu0 %v555
      %v742 = vpop.f32.mrb[0].mxu0
      %v743 = vadd.f32 %v434, %v742
      %v744 = vpop.f32.mrb[0].mxu0
      %v745 = vpop.f32.mrb[0].mxu0
      %v746 = vadd.f32 %v434, %v745
      %v747 = vpop.f32.mrb[0].mxu0
      %748 = vmatprep.mubr.bf16.mxu0 0
      %749 = vmatmul.mubr.bf16.gmra.mrb[0].mxu0 %v556
      %v750 = vpop.f32.mrb[0].mxu0
      %v751 = vadd.f32 %v434, %v750
      %v752 = vpop.f32.mrb[0].mxu0
      %v753 = vpop.f32.mrb[0].mxu0
      %v754 = vadd.f32 %v434, %v753
      %v755 = vpop.f32.mrb[0].mxu0
      %756 = vmatprep.mubr.bf16.mxu0 0
      %757 = vmatmul.mubr.bf16.gmra.mrb[0].mxu0 %v557
      %v758 = vpop.f32.mrb[0].mxu0
      %v759 = vadd.f32 %v434, %v758
      %v760 = vpop.f32.mrb[0].mxu0
      %v761 = vpop.f32.mrb[0].mxu0
      %v762 = vadd.f32 %v434, %v761
      %v763 = vpop.f32.mrb[0].mxu0
      %764 = vmatprep.mubr.bf16.mxu0 0
      %765 = vmatmul.mubr.bf16.gmra.mrb[0].mxu0 %v558
      %v766 = vpop.f32.mrb[0].mxu0
      %v767 = vadd.f32 %v434, %v766
      %v768 = vpop.f32.mrb[0].mxu0
      %v769 = vpop.f32.mrb[0].mxu0
      %v770 = vadd.f32 %v434, %v769
      %v771 = vpop.f32.mrb[0].mxu0
      %772 = vmatprep.mubr.bf16.mxu0 0
      %773 = vmatmul.mubr.bf16.gmra.mrb[0].mxu0 %v559
      %v774 = vpop.f32.mrb[0].mxu0
      %v775 = vadd.f32 %v434, %v774
      %v776 = vpop.f32.mrb[0].mxu0
      %v777 = vpop.f32.mrb[0].mxu0
      %v778 = vadd.f32 %v434, %v777
      %v779 = vpop.f32.mrb[0].mxu0
      %780 = vmatprep.mubr.bf16.mxu0 0
      %781 = vmatmul.mubr.bf16.gmra.mrb[0].mxu0 %v560
      %v782 = vpop.f32.mrb[0].mxu0
      %v783 = vadd.f32 %v434, %v782
      %v784 = vpop.f32.mrb[0].mxu0
      %v785 = vpop.f32.mrb[0].mxu0
      %v786 = vadd.f32 %v434, %v785
      %v787 = vpop.f32.mrb[0].mxu0
      %788 = vmatprep.mubr.bf16.mxu0 0
      %789 = vmatmul.mubr.bf16.gmra.mrb[0].mxu0 %v561
      %v790 = vpop.f32.mrb[0].mxu0
      %v791 = vadd.f32 %v434, %v790
      %v792 = vpop.f32.mrb[0].mxu0
      %v793 = vpop.f32.mrb[0].mxu0
      %v794 = vadd.f32 %v434, %v793
      %v795 = vpop.f32.mrb[0].mxu0
      %796 = vmatprep.mubr.bf16.mxu0 0
      %797 = vmatmul.mubr.bf16.gmra.mrb[0].mxu0 %v562
      %v798 = vpop.f32.mrb[0].mxu0
      %v799 = vadd.f32 %v434, %v798
      %v800 = vpop.f32.mrb[0].mxu0
      %v801 = vpop.f32.mrb[0].mxu0
      %v802 = vadd.f32 %v434, %v801
      %v803 = vpop.f32.mrb[0].mxu0
      %804 = vmatprep.mubr.bf16.mxu0 0
      %805 = vmatmul.mubr.bf16.gmra.mrb[0].mxu0 %v563
      %v806 = vpop.f32.mrb[0].mxu0
      %v807 = vadd.f32 %v434, %v806
      %v808 = vpop.f32.mrb[0].mxu0
      %v809 = vpop.f32.mrb[0].mxu0
      %v810 = vadd.f32 %v434, %v809
      %v811 = vpop.f32.mrb[0].mxu0
      %812 = vmatprep.mubr.bf16.mxu0 0
      %813 = vmatmul.mubr.bf16.gmra.mrb[0].mxu0 %v564
      %v814 = vpop.f32.mrb[0].mxu0
      %v815 = vadd.f32 %v434, %v814
      %v816 = vpop.f32.mrb[0].mxu0
      %v817 = vpop.f32.mrb[0].mxu0
      %v818 = vadd.f32 %v434, %v817
      %v819 = vpop.f32.mrb[0].mxu0
      %820 = vmatprep.mubr.bf16.mxu0 0
      %821 = vmatmul.mubr.bf16.gmra.mrb[0].mxu0 %v565
      %v822 = vpop.f32.mrb[0].mxu0
      %v823 = vadd.f32 %v434, %v822
      %v824 = vpop.f32.mrb[0].mxu0
      %v825 = vpop.f32.mrb[0].mxu0
      %v826 = vadd.f32 %v434, %v825
      %v827 = vpop.f32.mrb[0].mxu0
      %828 = vmatprep.mubr.bf16.mxu0 0
      %829 = vmatmul.mubr.bf16.gmra.mrb[0].mxu0 %v566
      %v830 = vpop.f32.mrb[0].mxu0
      %v831 = vadd.f32 %v434, %v830
      %v832 = vpop.f32.mrb[0].mxu0
      %v833 = vpop.f32.mrb[0].mxu0
      %v834 = vadd.f32 %v434, %v833
      %v835 = vpop.f32.mrb[0].mxu0
      %836 = vmatprep.mubr.bf16.mxu0 0
      %837 = vmatmul.mubr.bf16.gmra.mrb[0].mxu0 %v567
      %v838 = vpop.f32.mrb[0].mxu0
      %v839 = vadd.f32 %v434, %v838
      %v840 = vpop.f32.mrb[0].mxu0
      %v841 = vpop.f32.mrb[0].mxu0
      %v842 = vadd.f32 %v434, %v841
      %v843 = vpop.f32.mrb[0].mxu0
      %844 = vmatprep.mubr.bf16.mxu0 0
      %845 = vmatmul.mubr.bf16.gmra.mrb[0].mxu0 %v568
      %v846 = vpop.f32.mrb[0].mxu0
      %v847 = vadd.f32 %v434, %v846
      %v848 = vpop.f32.mrb[0].mxu0
      %v849 = vpop.f32.mrb[0].mxu0
      %v850 = vadd.f32 %v434, %v849
      %v851 = vpop.f32.mrb[0].mxu0
      %852 = vmatprep.mubr.bf16.mxu0 0
      %853 = vmatmul.mubr.bf16.gmra.mrb[0].mxu0 %v569
      %v854 = vpop.f32.mrb[0].mxu0
      %v855 = vadd.f32 %v434, %v854
      %v856 = vpop.f32.mrb[0].mxu0
      %v857 = vpop.f32.mrb[0].mxu0
      %v858 = vadd.f32 %v434, %v857
      %v859 = vpop.f32.mrb[0].mxu0
      %860 = vmatprep.mubr.bf16.mxu0 0
      %861 = vmatmul.mubr.bf16.gmra.mrb[0].mxu0 %v570
      %v862 = vpop.f32.mrb[0].mxu0
      %v863 = vadd.f32 %v434, %v862
      %v864 = vpop.f32.mrb[0].mxu0
      %v865 = vpop.f32.mrb[0].mxu0
      %v866 = vadd.f32 %v434, %v865
      %v867 = vpop.f32.mrb[0].mxu0
      %868 = vmatprep.mubr.bf16.mxu0 0
      %869 = vmatmul.mubr.bf16.gmra.mrb[0].mxu0 %v571
      %v870 = vpop.f32.mrb[0].mxu0
      %v871 = vadd.f32 %v434, %v870
      %v872 = vpop.f32.mrb[0].mxu0
      %v873 = vpop.f32.mrb[0].mxu0
      %v874 = vadd.f32 %v434, %v873
      %v875 = vpop.f32.mrb[0].mxu0
      %876 = vmatprep.mubr.bf16.mxu0 0
      %877 = vmatmul.mubr.bf16.gmra.mrb[0].mxu0 %v572
      %v878 = vpop.f32.mrb[0].mxu0
      %v879 = vadd.f32 %v434, %v878
      %v880 = vpop.f32.mrb[0].mxu0
      %v881 = vpop.f32.mrb[0].mxu0
      %v882 = vadd.f32 %v434, %v881
      %v883 = vpop.f32.mrb[0].mxu0
      %884 = vmatprep.mubr.bf16.mxu0 0
      %885 = vmatmul.mubr.bf16.gmra.mrb[0].mxu0 %v573
      %v886 = vpop.f32.mrb[0].mxu0
      %v887 = vadd.f32 %v434, %v886
      %v888 = vpop.f32.mrb[0].mxu0
      %v889 = vpop.f32.mrb[0].mxu0
      %v890 = vadd.f32 %v434, %v889
      %v891 = vpop.f32.mrb[0].mxu0
      %892 = vmatprep.mubr.bf16.mxu0 0
      %893 = vmatmul.mubr.bf16.gmra.mrb[0].mxu0 %v574
      %v894 = vpop.f32.mrb[0].mxu0
      %v895 = vadd.f32 %v434, %v894
      %v896 = vpop.f32.mrb[0].mxu0
      %v897 = vpop.f32.mrb[0].mxu0
      %v898 = vadd.f32 %v434, %v897
      %v899 = vpop.f32.mrb[0].mxu0
      %900 = vmatprep.mubr.bf16.mxu0 0
      %901 = vmatmul.mubr.bf16.gmra.mrb[0].mxu0 %v575
      %v902 = vpop.f32.mrb[0].mxu0
      %v903 = vadd.f32 %v434, %v902
      %v904 = vpop.f32.mrb[0].mxu0
      %v905 = vpop.f32.mrb[0].mxu0
      %v906 = vadd.f32 %v434, %v905
      %v907 = vpop.f32.mrb[0].mxu0
      %908 = vdwg.mxu0
      %v909 = vmax.f32 %v687, 0.0
      %v910 = vmax.f32 %v690, 0.0
      %v911 = vmax.f32 %v695, 0.0
      %v912 = vmax.f32 %v698, 0.0
      %v913 = vmax.f32 %v703, 0.0
      %v914 = vmax.f32 %v706, 0.0
      %v915 = vmax.f32 %v711, 0.0
      %v916 = vmax.f32 %v714, 0.0
      %v917 = vmax.f32 %v719, 0.0
      %v918 = vmax.f32 %v722, 0.0
      %v919 = vmax.f32 %v727, 0.0
      %v920 = vmax.f32 %v730, 0.0
      %v921 = vmax.f32 %v735, 0.0
      %v922 = vmax.f32 %v738, 0.0
      %v923 = vmax.f32 %v743, 0.0
      %v924 = vmax.f32 %v746, 0.0
      %v925 = vmax.f32 %v751, 0.0
      %v926 = vmax.f32 %v754, 0.0
      %v927 = vmax.f32 %v759, 0.0
      %v928 = vmax.f32 %v762, 0.0
      %v929 = vmax.f32 %v767, 0.0
      %v930 = vmax.f32 %v770, 0.0
      %v931 = vmax.f32 %v775, 0.0
      %v932 = vmax.f32 %v778, 0.0
      %v933 = vmax.f32 %v783, 0.0
      %v934 = vmax.f32 %v786, 0.0
      %v935 = vmax.f32 %v791, 0.0
      %v936 = vmax.f32 %v794, 0.0
      %v937 = vmax.f32 %v799, 0.0
      %v938 = vmax.f32 %v802, 0.0
      %v939 = vmax.f32 %v807, 0.0
      %v940 = vmax.f32 %v810, 0.0
      %v941 = vmax.f32 %v815, 0.0
      %v942 = vmax.f32 %v818, 0.0
      %v943 = vmax.f32 %v823, 0.0
      %v944 = vmax.f32 %v826, 0.0
      %v945 = vmax.f32 %v831, 0.0
      %v946 = vmax.f32 %v834, 0.0
      %v947 = vmax.f32 %v839, 0.0
      %v948 = vmax.f32 %v842, 0.0
      %v949 = vmax.f32 %v847, 0.0
      %v950 = vmax.f32 %v850, 0.0
      %v951 = vmax.f32 %v855, 0.0
      %v952 = vmax.f32 %v858, 0.0
      %v953 = vmax.f32 %v863, 0.0
      %v954 = vmax.f32 %v866, 0.0
      %v955 = vmax.f32 %v871, 0.0
      %v956 = vmax.f32 %v874, 0.0
      %v957 = vmax.f32 %v879, 0.0
      %v958 = vmax.f32 %v882, 0.0
      %v959 = vmax.f32 %v887, 0.0
      %v960 = vmax.f32 %v890, 0.0
      %v961 = vmax.f32 %v895, 0.0
      %v962 = vmax.f32 %v898, 0.0
      %v963 = vmax.f32 %v903, 0.0
      %v964 = vmax.f32 %v906, 0.0
      %966 = vset.pattern.permute.xlu0 0
      %967 = vperm.xlu0 %966, %v302
      %v968 = vpop.permute.xlu0 %967
      %971 = vset.pattern.permute.xlu0 0
      %972 = vperm.xlu0 %971, %v303
      %v973 = vpop.permute.xlu0 %972
      %976 = vset.pattern.permute.xlu0 0
      %977 = vperm.xlu0 %976, %v304
      %v978 = vpop.permute.xlu0 %977
      %981 = vset.pattern.permute.xlu0 0
      %982 = vperm.xlu0 %981, %v305
      %v983 = vpop.permute.xlu0 %982
      %986 = vset.pattern.permute.xlu0 0
      %987 = vperm.xlu0 %986, %v306
      %v988 = vpop.permute.xlu0 %987
      %991 = vset.pattern.permute.xlu0 0
      %992 = vperm.xlu0 %991, %v307
      %v993 = vpop.permute.xlu0 %992
      %996 = vset.pattern.permute.xlu0 0
      %997 = vperm.xlu0 %996, %v308
      %v998 = vpop.permute.xlu0 %997
      %1001 = vset.pattern.permute.xlu0 0
      %1002 = vperm.xlu0 %1001, %v309
      %v1003 = vpop.permute.xlu0 %1002
      %1006 = vset.pattern.permute.xlu0 0
      %1007 = vperm.xlu0 %1006, %v310
      %v1008 = vpop.permute.xlu0 %1007
      %1011 = vset.pattern.permute.xlu0 0
      %1012 = vperm.xlu0 %1011, %v311
      %v1013 = vpop.permute.xlu0 %1012
      %1016 = vset.pattern.permute.xlu0 0
      %1017 = vperm.xlu0 %1016, %v312
      %v1018 = vpop.permute.xlu0 %1017
      %1021 = vset.pattern.permute.xlu0 0
      %1022 = vperm.xlu0 %1021, %v313
      %v1023 = vpop.permute.xlu0 %1022
      %1026 = vset.pattern.permute.xlu0 0
      %1027 = vperm.xlu0 %1026, %v314
      %v1028 = vpop.permute.xlu0 %1027
      %1031 = vset.pattern.permute.xlu0 0
      %1032 = vperm.xlu0 %1031, %v315
      %v1033 = vpop.permute.xlu0 %1032
      %1036 = vset.pattern.permute.xlu0 0
      %1037 = vperm.xlu0 %1036, %v316
      %v1038 = vpop.permute.xlu0 %1037
      %1041 = vset.pattern.permute.xlu0 0
      %1042 = vperm.xlu0 %1041, %v317
      %v1043 = vpop.permute.xlu0 %1042
      %1046 = vset.pattern.permute.xlu0 0
      %1047 = vperm.xlu0 %1046, %v318
      %v1048 = vpop.permute.xlu0 %1047
      %1051 = vset.pattern.permute.xlu0 0
      %1052 = vperm.xlu0 %1051, %v319
      %v1053 = vpop.permute.xlu0 %1052
      %1056 = vset.pattern.permute.xlu0 0
      %1057 = vperm.xlu0 %1056, %v320
      %v1058 = vpop.permute.xlu0 %1057
      %1061 = vset.pattern.permute.xlu0 0
      %1062 = vperm.xlu0 %1061, %v321
      %v1063 = vpop.permute.xlu0 %1062
      %1066 = vset.pattern.permute.xlu0 0
      %1067 = vperm.xlu0 %1066, %v322
      %v1068 = vpop.permute.xlu0 %1067
      %1071 = vset.pattern.permute.xlu0 0
      %1072 = vperm.xlu0 %1071, %v323
      %v1073 = vpop.permute.xlu0 %1072
      %1076 = vset.pattern.permute.xlu0 0
      %1077 = vperm.xlu0 %1076, %v324
      %v1078 = vpop.permute.xlu0 %1077
      %1081 = vset.pattern.permute.xlu0 0
      %1082 = vperm.xlu0 %1081, %v325
      %v1083 = vpop.permute.xlu0 %1082
      %1086 = vset.pattern.permute.xlu0 0
      %1087 = vperm.xlu0 %1086, %v326
      %v1088 = vpop.permute.xlu0 %1087
      %1091 = vset.pattern.permute.xlu0 0
      %1092 = vperm.xlu0 %1091, %v327
      %v1093 = vpop.permute.xlu0 %1092
      %1096 = vset.pattern.permute.xlu0 0
      %1097 = vperm.xlu0 %1096, %v328
      %v1098 = vpop.permute.xlu0 %1097
      %1101 = vset.pattern.permute.xlu0 0
      %1102 = vperm.xlu0 %1101, %v329
      %v1103 = vpop.permute.xlu0 %1102
      %1106 = vset.pattern.permute.xlu0 0
      %1107 = vperm.xlu0 %1106, %v330
      %v1108 = vpop.permute.xlu0 %1107
      %1111 = vset.pattern.permute.xlu0 0
      %1112 = vperm.xlu0 %1111, %v331
      %v1113 = vpop.permute.xlu0 %1112
      %1116 = vset.pattern.permute.xlu0 0
      %1117 = vperm.xlu0 %1116, %v332
      %v1118 = vpop.permute.xlu0 %1117
      %1121 = vset.pattern.permute.xlu0 0
      %1122 = vperm.xlu0 %1121, %v333
      %v1123 = vpop.permute.xlu0 %1122
      %1126 = vset.pattern.permute.xlu0 0
      %1127 = vperm.xlu0 %1126, %v334
      %v1128 = vpop.permute.xlu0 %1127
      %1131 = vset.pattern.permute.xlu0 0
      %1132 = vperm.xlu0 %1131, %v335
      %v1133 = vpop.permute.xlu0 %1132
      %1136 = vset.pattern.permute.xlu0 0
      %1137 = vperm.xlu0 %1136, %v336
      %v1138 = vpop.permute.xlu0 %1137
      %1141 = vset.pattern.permute.xlu0 0
      %1142 = vperm.xlu0 %1141, %v337
      %v1143 = vpop.permute.xlu0 %1142
      %1146 = vset.pattern.permute.xlu0 0
      %1147 = vperm.xlu0 %1146, %v338
      %v1148 = vpop.permute.xlu0 %1147
      %1151 = vset.pattern.permute.xlu0 0
      %1152 = vperm.xlu0 %1151, %v339
      %v1153 = vpop.permute.xlu0 %1152
      %1156 = vset.pattern.permute.xlu0 0
      %1157 = vperm.xlu0 %1156, %v340
      %v1158 = vpop.permute.xlu0 %1157
      %1161 = vset.pattern.permute.xlu0 0
      %1162 = vperm.xlu0 %1161, %v341
      %v1163 = vpop.permute.xlu0 %1162
      %1166 = vset.pattern.permute.xlu0 0
      %1167 = vperm.xlu0 %1166, %v342
      %v1168 = vpop.permute.xlu0 %1167
      %1171 = vset.pattern.permute.xlu0 0
      %1172 = vperm.xlu0 %1171, %v343
      %v1173 = vpop.permute.xlu0 %1172
      %1176 = vset.pattern.permute.xlu0 0
      %1177 = vperm.xlu0 %1176, %v344
      %v1178 = vpop.permute.xlu0 %1177
      %1181 = vset.pattern.permute.xlu0 0
      %1182 = vperm.xlu0 %1181, %v345
      %v1183 = vpop.permute.xlu0 %1182
      %1186 = vset.pattern.permute.xlu0 0
      %1187 = vperm.xlu0 %1186, %v346
      %v1188 = vpop.permute.xlu0 %1187
      %1191 = vset.pattern.permute.xlu0 0
      %1192 = vperm.xlu0 %1191, %v347
      %v1193 = vpop.permute.xlu0 %1192
      %1196 = vset.pattern.permute.xlu0 0
      %1197 = vperm.xlu0 %1196, %v348
      %v1198 = vpop.permute.xlu0 %1197
      %1201 = vset.pattern.permute.xlu0 0
      %1202 = vperm.xlu0 %1201, %v349
      %v1203 = vpop.permute.xlu0 %1202
      %1206 = vset.pattern.permute.xlu0 0
      %1207 = vperm.xlu0 %1206, %v350
      %v1208 = vpop.permute.xlu0 %1207
      %1211 = vset.pattern.permute.xlu0 0
      %1212 = vperm.xlu0 %1211, %v351
      %v1213 = vpop.permute.xlu0 %1212
      %1216 = vset.pattern.permute.xlu0 0
      %1217 = vperm.xlu0 %1216, %v352
      %v1218 = vpop.permute.xlu0 %1217
      %1221 = vset.pattern.permute.xlu0 0
      %1222 = vperm.xlu0 %1221, %v353
      %v1223 = vpop.permute.xlu0 %1222
      %1226 = vset.pattern.permute.xlu0 0
      %1227 = vperm.xlu0 %1226, %v354
      %v1228 = vpop.permute.xlu0 %1227
      %1231 = vset.pattern.permute.xlu0 0
      %1232 = vperm.xlu0 %1231, %v355
      %v1233 = vpop.permute.xlu0 %1232
      %1236 = vset.pattern.permute.xlu0 0
      %1237 = vperm.xlu0 %1236, %v356
      %v1238 = vpop.permute.xlu0 %1237
      %1241 = vset.pattern.permute.xlu0 0
      %1242 = vperm.xlu0 %1241, %v357
      %v1243 = vpop.permute.xlu0 %1242
      %v1245 = vmul.f32 %v909, %v968
      %v1246 = vmul.f32 %v910, %v973
      %v1247 = vmul.f32 %v911, %v978
      %v1248 = vmul.f32 %v912, %v983
      %v1249 = vmul.f32 %v913, %v988
      %v1250 = vmul.f32 %v914, %v993
      %v1251 = vmul.f32 %v915, %v998
      %v1252 = vmul.f32 %v916, %v1003
      %v1253 = vmul.f32 %v917, %v1008
      %v1254 = vmul.f32 %v918, %v1013
      %v1255 = vmul.f32 %v919, %v1018
      %v1256 = vmul.f32 %v920, %v1023
      %v1257 = vmul.f32 %v921, %v1028
      %v1258 = vmul.f32 %v922, %v1033
      %v1259 = vmul.f32 %v923, %v1038
      %v1260 = vmul.f32 %v924, %v1043
      %v1261 = vmul.f32 %v925, %v1048
      %v1262 = vmul.f32 %v926, %v1053
      %v1263 = vmul.f32 %v927, %v1058
      %v1264 = vmul.f32 %v928, %v1063
      %v1265 = vmul.f32 %v929, %v1068
      %v1266 = vmul.f32 %v930, %v1073
      %v1267 = vmul.f32 %v931, %v1078
      %v1268 = vmul.f32 %v932, %v1083
      %v1269 = vmul.f32 %v933, %v1088
      %v1270 = vmul.f32 %v934, %v1093
      %v1271 = vmul.f32 %v935, %v1098
      %v1272 = vmul.f32 %v936, %v1103
      %v1273 = vmul.f32 %v937, %v1108
      %v1274 = vmul.f32 %v938, %v1113
      %v1275 = vmul.f32 %v939, %v1118
      %v1276 = vmul.f32 %v940, %v1123
      %v1277 = vmul.f32 %v941, %v1128
      %v1278 = vmul.f32 %v942, %v1133
      %v1279 = vmul.f32 %v943, %v1138
      %v1280 = vmul.f32 %v944, %v1143
      %v1281 = vmul.f32 %v945, %v1148
      %v1282 = vmul.f32 %v946, %v1153
      %v1283 = vmul.f32 %v947, %v1158
      %v1284 = vmul.f32 %v948, %v1163
      %v1285 = vmul.f32 %v949, %v1168
      %v1286 = vmul.f32 %v950, %v1173
      %v1287 = vmul.f32 %v951, %v1178
      %v1288 = vmul.f32 %v952, %v1183
      %v1289 = vmul.f32 %v953, %v1188
      %v1290 = vmul.f32 %v954, %v1193
      %v1291 = vmul.f32 %v955, %v1198
      %v1292 = vmul.f32 %v956, %v1203
      %v1293 = vmul.f32 %v957, %v1208
      %v1294 = vmul.f32 %v958, %v1213
      %v1295 = vmul.f32 %v959, %v1218
      %v1296 = vmul.f32 %v960, %v1223
      %v1297 = vmul.f32 %v961, %v1228
      %v1298 = vmul.f32 %v962, %v1233
      %v1299 = vmul.f32 %v963, %v1238
      %v1300 = vmul.f32 %v964, %v1243
      %v1301 = vpack.c.bf16 %v1246, %v1245
      %v1302 = vpack.c.bf16 %v1248, %v1247
      %v1303 = vpack.c.bf16 %v1250, %v1249
      %v1304 = vpack.c.bf16 %v1252, %v1251
      %v1305 = vpack.c.bf16 %v1254, %v1253
      %v1306 = vpack.c.bf16 %v1256, %v1255
      %v1307 = vpack.c.bf16 %v1258, %v1257
      %v1308 = vpack.c.bf16 %v1260, %v1259
      %v1309 = vpack.c.bf16 %v1262, %v1261
      %v1310 = vpack.c.bf16 %v1264, %v1263
      %v1311 = vpack.c.bf16 %v1266, %v1265
      %v1312 = vpack.c.bf16 %v1268, %v1267
      %v1313 = vpack.c.bf16 %v1270, %v1269
      %v1314 = vpack.c.bf16 %v1272, %v1271
      %v1315 = vpack.c.bf16 %v1274, %v1273
      %v1316 = vpack.c.bf16 %v1276, %v1275
      %v1317 = vpack.c.bf16 %v1278, %v1277
      %v1318 = vpack.c.bf16 %v1280, %v1279
      %v1319 = vpack.c.bf16 %v1282, %v1281
      %v1320 = vpack.c.bf16 %v1284, %v1283
      %v1321 = vpack.c.bf16 %v1286, %v1285
      %v1322 = vpack.c.bf16 %v1288, %v1287
      %v1323 = vpack.c.bf16 %v1290, %v1289
      %v1324 = vpack.c.bf16 %v1292, %v1291
      %v1325 = vpack.c.bf16 %v1294, %v1293
      %v1326 = vpack.c.bf16 %v1296, %v1295
      %v1327 = vpack.c.bf16 %v1298, %v1297
      %v1328 = vpack.c.bf16 %v1300, %v1299
      %1329 = vst [vmem:[#allocation2] sm:$0xff] %v1301
      %1330 = vst [vmem:[#allocation2 + $0x18] sm:$0xff] %v1302
      %1331 = vst [vmem:[#allocation2 + $0x30] sm:$0xff] %v1303
      %1332 = vst [vmem:[#allocation2 + $0x48] sm:$0xff] %v1304
      %1333 = vst [vmem:[#allocation2 + $0x60] sm:$0xff] %v1305
      %1334 = vst [vmem:[#allocation2 + $0x78] sm:$0xff] %v1306
      %1335 = vst [vmem:[#allocation2 + $0x90] sm:$0xff] %v1307
      %1336 = vst [vmem:[#allocation2 + $0xa8] sm:$0xff] %v1308
      %1337 = vst [vmem:[#allocation2 + $0xc0] sm:$0xff] %v1309
      %1338 = vst [vmem:[#allocation2 + $0xd8] sm:$0xff] %v1310
      %1339 = vst [vmem:[#allocation2 + $0xf0] sm:$0xff] %v1311
      %1340 = vst [vmem:[#allocation2 + $0x108] sm:$0xff] %v1312
      %1341 = vst [vmem:[#allocation2 + $0x120] sm:$0xff] %v1313
      %1342 = vst [vmem:[#allocation2 + $0x138] sm:$0xff] %v1314
      %1343 = vst [vmem:[#allocation2 + $0x150] sm:$0xff] %v1315
      %1344 = vst [vmem:[#allocation2 + $0x168] sm:$0xff] %v1316
      %1345 = vst [vmem:[#allocation2 + $0x180] sm:$0xff] %v1317
      %1346 = vst [vmem:[#allocation2 + $0x198] sm:$0xff] %v1318
      %1347 = vst [vmem:[#allocation2 + $0x1b0] sm:$0xff] %v1319
      %1348 = vst [vmem:[#allocation2 + $0x1c8] sm:$0xff] %v1320
      %1349 = vst [vmem:[#allocation2 + $0x1e0] sm:$0xff] %v1321
      %1350 = vst [vmem:[#allocation2 + $0x1f8] sm:$0xff] %v1322
      %1351 = vst [vmem:[#allocation2 + $0x210] sm:$0xff] %v1323
      %1352 = vst [vmem:[#allocation2 + $0x228] sm:$0xff] %v1324
      %1353 = vst [vmem:[#allocation2 + $0x240] sm:$0xff] %v1325
      %1354 = vst [vmem:[#allocation2 + $0x258] sm:$0xff] %v1326
      %1355 = vst [vmem:[#allocation2 + $0x270] sm:$0xff] %v1327
      %1356 = vst [vmem:[#allocation2 + $0x288] sm:$0xff] %v1328
      %vm1357 = vsmask.f32 7424
      %v1359 = vshrl.u32 %v1301, 16
      %v1361 = vshll.u32 %v1301, 16
      %v1363 = vrot.slane %v1361, 1
      %v1364 = vor.u32 %v1359, %v1363
      %v1366 = vshll.u32 %v1302, 16
      %v1368 = vrot.slane %v1366, 1
      %v1369 = vsel %vm1357, %v1364, %v1368
      %v1370 = vshrl.u32 %v1302, 16
      %v1372 = vor.u32 %v1370, %v1368
      %v1374 = vshll.u32 %v1303, 16
      %v1376 = vrot.slane %v1374, 1
      %v1377 = vsel %vm1357, %v1372, %v1376
      %v1378 = vshrl.u32 %v1303, 16
      %v1380 = vor.u32 %v1378, %v1376
      %v1382 = vshll.u32 %v1304, 16
      %v1384 = vrot.slane %v1382, 1
      %v1385 = vsel %vm1357, %v1380, %v1384
      %v1386 = vshrl.u32 %v1304, 16
      %v1388 = vor.u32 %v1386, %v1384
      %v1390 = vshll.u32 %v1305, 16
      %v1392 = vrot.slane %v1390, 1
      %v1393 = vsel %vm1357, %v1388, %v1392
      %v1394 = vshrl.u32 %v1305, 16
      %v1396 = vor.u32 %v1394, %v1392
      %v1398 = vshll.u32 %v1306, 16
      %v1400 = vrot.slane %v1398, 1
      %v1401 = vsel %vm1357, %v1396, %v1400
      %v1402 = vshrl.u32 %v1306, 16
      %v1404 = vor.u32 %v1402, %v1400
      %v1406 = vshll.u32 %v1307, 16
      %v1408 = vrot.slane %v1406, 1
      %v1409 = vsel %vm1357, %v1404, %v1408
      %v1410 = vshrl.u32 %v1307, 16
      %v1412 = vor.u32 %v1410, %v1408
      %v1414 = vshll.u32 %v1308, 16
      %v1416 = vrot.slane %v1414, 1
      %v1417 = vsel %vm1357, %v1412, %v1416
      %v1418 = vshrl.u32 %v1308, 16
      %v1420 = vor.u32 %v1418, %v1416
      %v1422 = vshll.u32 %v1309, 16
      %v1424 = vrot.slane %v1422, 1
      %v1425 = vsel %vm1357, %v1420, %v1424
      %v1426 = vshrl.u32 %v1309, 16
      %v1428 = vor.u32 %v1426, %v1424
      %v1430 = vshll.u32 %v1310, 16
      %v1432 = vrot.slane %v1430, 1
      %v1433 = vsel %vm1357, %v1428, %v1432
      %v1434 = vshrl.u32 %v1310, 16
      %v1436 = vor.u32 %v1434, %v1432
      %v1438 = vshll.u32 %v1311, 16
      %v1440 = vrot.slane %v1438, 1
      %v1441 = vsel %vm1357, %v1436, %v1440
      %v1442 = vshrl.u32 %v1311, 16
      %v1444 = vor.u32 %v1442, %v1440
      %v1446 = vshll.u32 %v1312, 16
      %v1448 = vrot.slane %v1446, 1
      %v1449 = vsel %vm1357, %v1444, %v1448
      %v1450 = vshrl.u32 %v1312, 16
      %v1452 = vor.u32 %v1450, %v1448
      %v1454 = vshll.u32 %v1313, 16
      %v1456 = vrot.slane %v1454, 1
      %v1457 = vsel %vm1357, %v1452, %v1456
      %v1458 = vshrl.u32 %v1313, 16
      %v1460 = vor.u32 %v1458, %v1456
      %v1462 = vshll.u32 %v1314, 16
      %v1464 = vrot.slane %v1462, 1
      %v1465 = vsel %vm1357, %v1460, %v1464
      %v1466 = vshrl.u32 %v1314, 16
      %v1468 = vor.u32 %v1466, %v1464
      %v1470 = vshll.u32 %v1315, 16
      %v1472 = vrot.slane %v1470, 1
      %v1473 = vsel %vm1357, %v1468, %v1472
      %v1474 = vshrl.u32 %v1315, 16
      %v1476 = vor.u32 %v1474, %v1472
      %v1478 = vshll.u32 %v1316, 16
      %v1480 = vrot.slane %v1478, 1
      %v1481 = vsel %vm1357, %v1476, %v1480
      %v1482 = vshrl.u32 %v1316, 16
      %v1484 = vor.u32 %v1482, %v1480
      %v1486 = vshll.u32 %v1317, 16
      %v1488 = vrot.slane %v1486, 1
      %v1489 = vsel %vm1357, %v1484, %v1488
      %v1490 = vshrl.u32 %v1317, 16
      %v1492 = vor.u32 %v1490, %v1488
      %v1494 = vshll.u32 %v1318, 16
      %v1496 = vrot.slane %v1494, 1
      %v1497 = vsel %vm1357, %v1492, %v1496
      %v1498 = vshrl.u32 %v1318, 16
      %v1500 = vor.u32 %v1498, %v1496
      %v1502 = vshll.u32 %v1319, 16
      %v1504 = vrot.slane %v1502, 1
      %v1505 = vsel %vm1357, %v1500, %v1504
      %v1506 = vshrl.u32 %v1319, 16
      %v1508 = vor.u32 %v1506, %v1504
      %v1510 = vshll.u32 %v1320, 16
      %v1512 = vrot.slane %v1510, 1
      %v1513 = vsel %vm1357, %v1508, %v1512
      %v1514 = vshrl.u32 %v1320, 16
      %v1516 = vor.u32 %v1514, %v1512
      %v1518 = vshll.u32 %v1321, 16
      %v1520 = vrot.slane %v1518, 1
      %v1521 = vsel %vm1357, %v1516, %v1520
      %v1522 = vshrl.u32 %v1321, 16
      %v1524 = vor.u32 %v1522, %v1520
      %v1526 = vshll.u32 %v1322, 16
      %v1528 = vrot.slane %v1526, 1
      %v1529 = vsel %vm1357, %v1524, %v1528
      %v1530 = vshrl.u32 %v1322, 16
      %v1532 = vor.u32 %v1530, %v1528
      %v1534 = vshll.u32 %v1323, 16
      %v1536 = vrot.slane %v1534, 1
      %v1537 = vsel %vm1357, %v1532, %v1536
      %v1538 = vshrl.u32 %v1323, 16
      %v1540 = vor.u32 %v1538, %v1536
      %v1542 = vshll.u32 %v1324, 16
      %v1544 = vrot.slane %v1542, 1
      %v1545 = vsel %vm1357, %v1540, %v1544
      %v1546 = vshrl.u32 %v1324, 16
      %v1548 = vor.u32 %v1546, %v1544
      %v1550 = vshll.u32 %v1325, 16
      %v1552 = vrot.slane %v1550, 1
      %v1553 = vsel %vm1357, %v1548, %v1552
      %v1554 = vshrl.u32 %v1325, 16
      %v1556 = vor.u32 %v1554, %v1552
      %v1558 = vshll.u32 %v1326, 16
      %v1560 = vrot.slane %v1558, 1
      %v1561 = vsel %vm1357, %v1556, %v1560
      %v1562 = vshrl.u32 %v1326, 16
      %v1564 = vor.u32 %v1562, %v1560
      %v1566 = vshll.u32 %v1327, 16
      %v1568 = vrot.slane %v1566, 1
      %v1569 = vsel %vm1357, %v1564, %v1568
      %v1570 = vshrl.u32 %v1327, 16
      %v1572 = vor.u32 %v1570, %v1568
      %v1574 = vshll.u32 %v1328, 16
      %v1576 = vrot.slane %v1574, 1
      %v1577 = vsel %vm1357, %v1572, %v1576
      %v1578 = vshrl.u32 %v1328, 16
      %v1580 = vor.u32 %v1578, %v1576
      %1609 = vst [vmem:[#allocation2 + $0x8] sm:$0xff] %v1369
      %1610 = vst [vmem:[#allocation2 + $0x20] sm:$0xff] %v1377
      %1611 = vst [vmem:[#allocation2 + $0x38] sm:$0xff] %v1385
      %1612 = vst [vmem:[#allocation2 + $0x50] sm:$0xff] %v1393
      %1613 = vst [vmem:[#allocation2 + $0x68] sm:$0xff] %v1401
      %1614 = vst [vmem:[#allocation2 + $0x80] sm:$0xff] %v1409
      %1615 = vst [vmem:[#allocation2 + $0x98] sm:$0xff] %v1417
      %1616 = vst [vmem:[#allocation2 + $0xb0] sm:$0xff] %v1425
      %1617 = vst [vmem:[#allocation2 + $0xc8] sm:$0xff] %v1433
      %1618 = vst [vmem:[#allocation2 + $0xe0] sm:$0xff] %v1441
      %1619 = vst [vmem:[#allocation2 + $0xf8] sm:$0xff] %v1449
      %1620 = vst [vmem:[#allocation2 + $0x110] sm:$0xff] %v1457
      %1621 = vst [vmem:[#allocation2 + $0x128] sm:$0xff] %v1465
      %1622 = vst [vmem:[#allocation2 + $0x140] sm:$0xff] %v1473
      %1623 = vst [vmem:[#allocation2 + $0x158] sm:$0xff] %v1481
      %1624 = vst [vmem:[#allocation2 + $0x170] sm:$0xff] %v1489
      %1625 = vst [vmem:[#allocation2 + $0x188] sm:$0xff] %v1497
      %1626 = vst [vmem:[#allocation2 + $0x1a0] sm:$0xff] %v1505
      %1627 = vst [vmem:[#allocation2 + $0x1b8] sm:$0xff] %v1513
      %1628 = vst [vmem:[#allocation2 + $0x1d0] sm:$0xff] %v1521
      %1629 = vst [vmem:[#allocation2 + $0x1e8] sm:$0xff] %v1529
      %1630 = vst [vmem:[#allocation2 + $0x200] sm:$0xff] %v1537
      %1631 = vst [vmem:[#allocation2 + $0x218] sm:$0xff] %v1545
      %1632 = vst [vmem:[#allocation2 + $0x230] sm:$0xff] %v1553
      %1633 = vst [vmem:[#allocation2 + $0x248] sm:$0xff] %v1561
      %1634 = vst [vmem:[#allocation2 + $0x260] sm:$0xff] %v1569
      %1635 = vst [vmem:[#allocation2 + $0x278] sm:$0xff] %v1577
      %vm1636 = vcmask 1047552
      %vm1637 = vmand %vm1636, %vm1357
      %v1638 = vld [vmem:[#allocation2 + $0x290] sm:$0xff]
      %v1639 = vsel %vm1637, %v1580, %v1638
      %1640 = vst [vmem:[#allocation2 + $0x290] sm:$0xff] %v1639
      %vm1669 = vcmask 1046528
      %v1670 = vrot.slane %v1301, 1
      %v1671 = vrot.slane %v1302, 1
      %v1672 = vsel %vm1669, %v1670, %v1671
      %v1673 = vrot.slane %v1303, 1
      %v1674 = vsel %vm1669, %v1671, %v1673
      %v1675 = vrot.slane %v1304, 1
      %v1676 = vsel %vm1669, %v1673, %v1675
      %v1677 = vrot.slane %v1305, 1
      %v1678 = vsel %vm1669, %v1675, %v1677
      %v1679 = vrot.slane %v1306, 1
      %v1680 = vsel %vm1669, %v1677, %v1679
      %v1681 = vrot.slane %v1307, 1
      %v1682 = vsel %vm1669, %v1679, %v1681
      %v1683 = vrot.slane %v1308, 1
      %v1684 = vsel %vm1669, %v1681, %v1683
      %v1685 = vrot.slane %v1309, 1
      %v1686 = vsel %vm1669, %v1683, %v1685
      %v1687 = vrot.slane %v1310, 1
      %v1688 = vsel %vm1669, %v1685, %v1687
      %v1689 = vrot.slane %v1311, 1
      %v1690 = vsel %vm1669, %v1687, %v1689
      %v1691 = vrot.slane %v1312, 1
      %v1692 = vsel %vm1669, %v1689, %v1691
      %v1693 = vrot.slane %v1313, 1
      %v1694 = vsel %vm1669, %v1691, %v1693
      %v1695 = vrot.slane %v1314, 1
      %v1696 = vsel %vm1669, %v1693, %v1695
      %v1697 = vrot.slane %v1315, 1
      %v1698 = vsel %vm1669, %v1695, %v1697
      %v1699 = vrot.slane %v1316, 1
      %v1700 = vsel %vm1669, %v1697, %v1699
      %v1701 = vrot.slane %v1317, 1
      %v1702 = vsel %vm1669, %v1699, %v1701
      %v1703 = vrot.slane %v1318, 1
      %v1704 = vsel %vm1669, %v1701, %v1703
      %v1705 = vrot.slane %v1319, 1
      %v1706 = vsel %vm1669, %v1703, %v1705
      %v1707 = vrot.slane %v1320, 1
      %v1708 = vsel %vm1669, %v1705, %v1707
      %v1709 = vrot.slane %v1321, 1
      %v1710 = vsel %vm1669, %v1707, %v1709
      %v1711 = vrot.slane %v1322, 1
      %v1712 = vsel %vm1669, %v1709, %v1711
      %v1713 = vrot.slane %v1323, 1
      %v1714 = vsel %vm1669, %v1711, %v1713
      %v1715 = vrot.slane %v1324, 1
      %v1716 = vsel %vm1669, %v1713, %v1715
      %v1717 = vrot.slane %v1325, 1
      %v1718 = vsel %vm1669, %v1715, %v1717
      %v1719 = vrot.slane %v1326, 1
      %v1720 = vsel %vm1669, %v1717, %v1719
      %v1721 = vrot.slane %v1327, 1
      %v1722 = vsel %vm1669, %v1719, %v1721
      %v1723 = vrot.slane %v1328, 1
      %v1724 = vsel %vm1669, %v1721, %v1723
      %1753 = vst [vmem:[#allocation2 + $0x10] sm:$0xff] %v1672
      %1754 = vst [vmem:[#allocation2 + $0x28] sm:$0xff] %v1674
      %1755 = vst [vmem:[#allocation2 + $0x40] sm:$0xff] %v1676
      %1756 = vst [vmem:[#allocation2 + $0x58] sm:$0xff] %v1678
      %1757 = vst [vmem:[#allocation2 + $0x70] sm:$0xff] %v1680
      %1758 = vst [vmem:[#allocation2 + $0x88] sm:$0xff] %v1682
      %1759 = vst [vmem:[#allocation2 + $0xa0] sm:$0xff] %v1684
      %1760 = vst [vmem:[#allocation2 + $0xb8] sm:$0xff] %v1686
      %1761 = vst [vmem:[#allocation2 + $0xd0] sm:$0xff] %v1688
      %1762 = vst [vmem:[#allocation2 + $0xe8] sm:$0xff] %v1690
      %1763 = vst [vmem:[#allocation2 + $0x100] sm:$0xff] %v1692
      %1764 = vst [vmem:[#allocation2 + $0x118] sm:$0xff] %v1694
      %1765 = vst [vmem:[#allocation2 + $0x130] sm:$0xff] %v1696
      %1766 = vst [vmem:[#allocation2 + $0x148] sm:$0xff] %v1698
      %1767 = vst [vmem:[#allocation2 + $0x160] sm:$0xff] %v1700
      %1768 = vst [vmem:[#allocation2 + $0x178] sm:$0xff] %v1702
      %1769 = vst [vmem:[#allocation2 + $0x190] sm:$0xff] %v1704
      %1770 = vst [vmem:[#allocation2 + $0x1a8] sm:$0xff] %v1706
      %1771 = vst [vmem:[#allocation2 + $0x1c0] sm:$0xff] %v1708
      %1772 = vst [vmem:[#allocation2 + $0x1d8] sm:$0xff] %v1710
      %1773 = vst [vmem:[#allocation2 + $0x1f0] sm:$0xff] %v1712
      %1774 = vst [vmem:[#allocation2 + $0x208] sm:$0xff] %v1714
      %1775 = vst [vmem:[#allocation2 + $0x220] sm:$0xff] %v1716
      %1776 = vst [vmem:[#allocation2 + $0x238] sm:$0xff] %v1718
      %1777 = vst [vmem:[#allocation2 + $0x250] sm:$0xff] %v1720
      %1778 = vst [vmem:[#allocation2 + $0x268] sm:$0xff] %v1722
      %1779 = vst [vmem:[#allocation2 + $0x280] sm:$0xff] %v1724
      %1780 = vst [vmem:[#allocation2 + $0x298] sm:$0x7f] %v1723
      %v1781 = vld [vmem:[#allocation2] sm:$0xff]
      %v1782 = vld [vmem:[#allocation2 + $0x8] sm:$0xff]
      %v1783 = vld [vmem:[#allocation2 + $0x10] sm:$0xff]
      %v1784 = vld [vmem:[#allocation2 + $0x18] sm:$0xff]
      %v1785 = vld [vmem:[#allocation2 + $0x20] sm:$0xff]
      %v1786 = vld [vmem:[#allocation2 + $0x28] sm:$0xff]
      %v1787 = vld [vmem:[#allocation2 + $0x30] sm:$0xff]
      %v1788 = vld [vmem:[#allocation2 + $0x38] sm:$0xff]
      %v1789 = vld [vmem:[#allocation2 + $0x40] sm:$0xff]
      %v1790 = vld [vmem:[#allocation2 + $0x48] sm:$0xff]
      %v1791 = vld [vmem:[#allocation2 + $0x50] sm:$0xff]
      %v1792 = vld [vmem:[#allocation2 + $0x58] sm:$0xff]
      %v1793 = vld [vmem:[#allocation2 + $0x60] sm:$0xff]
      %v1794 = vld [vmem:[#allocation2 + $0x68] sm:$0xff]
      %v1795 = vld [vmem:[#allocation2 + $0x70] sm:$0xff]
      %v1796 = vld [vmem:[#allocation2 + $0x78] sm:$0xff]
      %v1797 = vld [vmem:[#allocation2 + $0x80] sm:$0xff]
      %v1798 = vld [vmem:[#allocation2 + $0x88] sm:$0xff]
      %v1799 = vld [vmem:[#allocation2 + $0x90] sm:$0xff]
      %v1800 = vld [vmem:[#allocation2 + $0x98] sm:$0xff]
      %v1801 = vld [vmem:[#allocation2 + $0xa0] sm:$0xff]
      %v1802 = vld [vmem:[#allocation2 + $0xa8] sm:$0xff]
      %v1803 = vld [vmem:[#allocation2 + $0xb0] sm:$0xff]
      %v1804 = vld [vmem:[#allocation2 + $0xb8] sm:$0xff]
      %v1805 = vld [vmem:[#allocation2 + $0xc0] sm:$0xff]
      %v1806 = vld [vmem:[#allocation2 + $0xc8] sm:$0xff]
      %v1807 = vld [vmem:[#allocation2 + $0xd0] sm:$0xff]
      %v1808 = vld [vmem:[#allocation2 + $0xd8] sm:$0xff]
      %v1809 = vld [vmem:[#allocation2 + $0xe0] sm:$0xff]
      %v1810 = vld [vmem:[#allocation2 + $0xe8] sm:$0xff]
      %v1811 = vld [vmem:[#allocation2 + $0xf0] sm:$0xff]
      %v1812 = vld [vmem:[#allocation2 + $0xf8] sm:$0xff]
      %v1813 = vld [vmem:[#allocation2 + $0x100] sm:$0xff]
      %v1814 = vld [vmem:[#allocation2 + $0x108] sm:$0xff]
      %v1815 = vld [vmem:[#allocation2 + $0x110] sm:$0xff]
      %v1816 = vld [vmem:[#allocation2 + $0x118] sm:$0xff]
      %v1817 = vld [vmem:[#allocation2 + $0x120] sm:$0xff]
      %v1818 = vld [vmem:[#allocation2 + $0x128] sm:$0xff]
      %v1819 = vld [vmem:[#allocation2 + $0x130] sm:$0xff]
      %v1820 = vld [vmem:[#allocation2 + $0x138] sm:$0xff]
      %v1821 = vld [vmem:[#allocation2 + $0x140] sm:$0xff]
      %v1822 = vld [vmem:[#allocation2 + $0x148] sm:$0xff]
      %v1823 = vld [vmem:[#allocation2 + $0x150] sm:$0xff]
      %v1824 = vld [vmem:[#allocation2 + $0x158] sm:$0xff]
      %v1825 = vld [vmem:[#allocation2 + $0x160] sm:$0xff]
      %v1826 = vld [vmem:[#allocation2 + $0x168] sm:$0xff]
      %v1827 = vld [vmem:[#allocation2 + $0x170] sm:$0xff]
      %v1828 = vld [vmem:[#allocation2 + $0x178] sm:$0xff]
      %v1829 = vld [vmem:[#allocation2 + $0x180] sm:$0xff]
      %v1830 = vld [vmem:[#allocation2 + $0x188] sm:$0xff]
      %v1831 = vld [vmem:[#allocation2 + $0x190] sm:$0xff]
      %v1832 = vld [vmem:[#allocation2 + $0x198] sm:$0xff]
      %v1833 = vld [vmem:[#allocation2 + $0x1a0] sm:$0xff]
      %v1834 = vld [vmem:[#allocation2 + $0x1a8] sm:$0xff]
      %v1835 = vld [vmem:[#allocation2 + $0x1b0] sm:$0xff]
      %v1836 = vld [vmem:[#allocation2 + $0x1b8] sm:$0xff]
      %v1837 = vld [vmem:[#allocation2 + $0x1c0] sm:$0xff]
      %v1838 = vld [vmem:[#allocation2 + $0x1c8] sm:$0xff]
      %v1839 = vld [vmem:[#allocation2 + $0x1d0] sm:$0xff]
      %v1840 = vld [vmem:[#allocation2 + $0x1d8] sm:$0xff]
      %v1841 = vld [vmem:[#allocation2 + $0x1e0] sm:$0xff]
      %v1842 = vld [vmem:[#allocation2 + $0x1e8] sm:$0xff]
      %v1843 = vld [vmem:[#allocation2 + $0x1f0] sm:$0xff]
      %v1844 = vld [vmem:[#allocation2 + $0x1f8] sm:$0xff]
      %v1845 = vld [vmem:[#allocation2 + $0x200] sm:$0xff]
      %v1846 = vld [vmem:[#allocation2 + $0x208] sm:$0xff]
      %v1847 = vld [vmem:[#allocation2 + $0x210] sm:$0xff]
      %v1848 = vld [vmem:[#allocation2 + $0x218] sm:$0xff]
      %v1849 = vld [vmem:[#allocation2 + $0x220] sm:$0xff]
      %v1850 = vld [vmem:[#allocation2 + $0x228] sm:$0xff]
      %v1851 = vld [vmem:[#allocation2 + $0x230] sm:$0xff]
      %v1852 = vld [vmem:[#allocation2 + $0x238] sm:$0xff]
      %v1853 = vld [vmem:[%s3] sm:$0xf]
      %v1854 = vld [vmem:[%s3 + $0x4] sm:$0xf]
      %v1855 = vld [vmem:[%s3 + $0x8] sm:$0xf]
      %v1856 = vld [vmem:[%s3 + $0xc] sm:$0xf]
      %v1857 = vld [vmem:[%s3 + $0x10] sm:$0xf]
      %v1858 = vld [vmem:[%s3 + $0x14] sm:$0xf]
      %v1859 = vld [vmem:[%s3 + $0x18] sm:$0xf]
      %v1860 = vld [vmem:[%s3 + $0x1c] sm:$0xf]
      %v1861 = vld [vmem:[%s3 + $0x20] sm:$0xf]
      %v1862 = vld [vmem:[%s3 + $0x24] sm:$0xf]
      %v1863 = vld [vmem:[%s3 + $0x28] sm:$0xf]
      %v1864 = vld [vmem:[%s3 + $0x2c] sm:$0xf]
      %v1865 = vld [vmem:[%s3 + $0x30] sm:$0xf]
      %v1866 = vld [vmem:[%s3 + $0x34] sm:$0xf]
      %v1867 = vld [vmem:[%s3 + $0x38] sm:$0xf]
      %v1868 = vld [vmem:[%s3 + $0x3c] sm:$0xf]
      %v1869 = vld [vmem:[%s3 + $0x40] sm:$0xf]
      %v1870 = vld [vmem:[%s3 + $0x44] sm:$0xf]
      %v1871 = vld [vmem:[%s3 + $0x48] sm:$0xf]
      %v1872 = vld [vmem:[%s3 + $0x4c] sm:$0xf]
      %v1873 = vld [vmem:[%s3 + $0x50] sm:$0xf]
      %v1874 = vld [vmem:[%s3 + $0x54] sm:$0xf]
      %v1875 = vld [vmem:[%s3 + $0x58] sm:$0xf]
      %v1876 = vld [vmem:[%s3 + $0x5c] sm:$0xf]
      %v1877 = vld [vmem:[%s3 + $0x60] sm:$0xf]
      %v1878 = vld [vmem:[%s3 + $0x64] sm:$0xf]
      %v1879 = vld [vmem:[%s3 + $0x68] sm:$0xf]
      %v1880 = vld [vmem:[%s3 + $0x6c] sm:$0xf]
      %v1881 = vld [vmem:[%s3 + $0x70] sm:$0xf]
      %v1882 = vld [vmem:[%s3 + $0x74] sm:$0xf]
      %v1883 = vld [vmem:[%s3 + $0x78] sm:$0xf]
      %v1884 = vld [vmem:[%s3 + $0x7c] sm:$0xf]
      %v1885 = vld [vmem:[%s3 + $0x80] sm:$0xf]
      %v1886 = vld [vmem:[%s3 + $0x84] sm:$0xf]
      %v1887 = vld [vmem:[%s3 + $0x88] sm:$0xf]
      %v1888 = vld [vmem:[%s3 + $0x8c] sm:$0xf]
      %v1889 = vld [vmem:[%s3 + $0x90] sm:$0xf]
      %v1890 = vld [vmem:[%s3 + $0x94] sm:$0xf]
      %v1891 = vld [vmem:[%s3 + $0x98] sm:$0xf]
      %v1892 = vld [vmem:[%s3 + $0x9c] sm:$0xf]
      %v1893 = vld [vmem:[%s3 + $0xa0] sm:$0xf]
      %v1894 = vld [vmem:[%s3 + $0xa4] sm:$0xf]
      %v1895 = vld [vmem:[%s3 + $0xa8] sm:$0xf]
      %v1896 = vld [vmem:[%s3 + $0xac] sm:$0xf]
      %v1897 = vld [vmem:[%s3 + $0xb0] sm:$0xf]
      %v1898 = vld [vmem:[%s3 + $0xb4] sm:$0xf]
      %v1899 = vld [vmem:[%s3 + $0xb8] sm:$0xf]
      %v1900 = vld [vmem:[%s3 + $0xbc] sm:$0xf]
      %v1901 = vld [vmem:[#allocation2 + $0x18] sm:$0xf0]
      %v1902 = vld [vmem:[#allocation2 + $0x20] sm:$0xf0]
      %v1903 = vld [vmem:[#allocation2 + $0x28] sm:$0xf0]
      %v1904 = vld [vmem:[#allocation2 + $0x240] sm:$0xff]
      %v1905 = vld [vmem:[#allocation2 + $0x248] sm:$0xff]
      %v1906 = vld [vmem:[#allocation2 + $0x250] sm:$0xff]
      %v1907 = vld [vmem:[#allocation2 + $0x258] sm:$0xf]
      %v1908 = vld [vmem:[#allocation2 + $0x260] sm:$0xf]
      %v1909 = vld [vmem:[#allocation2 + $0x268] sm:$0xf]
      %s1910 = scalar_lea.vmem %s3, 192
      %v1911 = vld [vmem:[%s1910] sm:$0xf]
      %v1912 = vld [vmem:[%s1910 + $0x4] sm:$0xf]
      %v1913 = vld [vmem:[%s1910 + $0x8] sm:$0xf]
      %v1914 = vld [vmem:[%s1910 + $0xc] sm:$0xf]
      %v1915 = vld [vmem:[%s1910 + $0x10] sm:$0xf]
      %v1916 = vld [vmem:[%s1910 + $0x14] sm:$0xf]
      %v1917 = vld [vmem:[%s1910 + $0x18] sm:$0xf]
      %v1918 = vld [vmem:[%s1910 + $0x1c] sm:$0xf]
      %v1919 = vld [vmem:[%s1910 + $0x20] sm:$0xf]
      %v1920 = vld [vmem:[%s1910 + $0x24] sm:$0xf]
      %v1921 = vld [vmem:[%s1910 + $0x28] sm:$0xf]
      %v1922 = vld [vmem:[%s1910 + $0x2c] sm:$0xf]
      %v1923 = vld [vmem:[%s1910 + $0x30] sm:$0xf]
      %v1924 = vld [vmem:[%s1910 + $0x34] sm:$0xf]
      %v1925 = vld [vmem:[%s1910 + $0x38] sm:$0xf]
      %v1926 = vld [vmem:[%s1910 + $0x3c] sm:$0xf]
      %v1927 = vld [vmem:[%s1910 + $0x40] sm:$0xf]
      %v1928 = vld [vmem:[%s1910 + $0x44] sm:$0xf]
      %v1929 = vld [vmem:[%s1910 + $0x48] sm:$0xf]
      %v1930 = vld [vmem:[%s1910 + $0x4c] sm:$0xf]
      %v1931 = vld [vmem:[%s1910 + $0x50] sm:$0xf]
      %v1932 = vld [vmem:[%s1910 + $0x54] sm:$0xf]
      %v1933 = vld [vmem:[%s1910 + $0x58] sm:$0xf]
      %v1934 = vld [vmem:[%s1910 + $0x5c] sm:$0xf]
      %v1935 = vld [vmem:[%s1910 + $0x60] sm:$0xf]
      %v1936 = vld [vmem:[%s1910 + $0x64] sm:$0xf]
      %v1937 = vld [vmem:[%s1910 + $0x68] sm:$0xf]
      %v1938 = vld [vmem:[%s1910 + $0x6c] sm:$0xf]
      %v1939 = vld [vmem:[%s1910 + $0x70] sm:$0xf]
      %v1940 = vld [vmem:[%s1910 + $0x74] sm:$0xf]
      %v1941 = vld [vmem:[%s1910 + $0x78] sm:$0xf]
      %v1942 = vld [vmem:[%s1910 + $0x7c] sm:$0xf]
      %v1943 = vld [vmem:[%s1910 + $0x80] sm:$0xf]
      %v1944 = vld [vmem:[%s1910 + $0x84] sm:$0xf]
      %v1945 = vld [vmem:[%s1910 + $0x88] sm:$0xf]
      %v1946 = vld [vmem:[%s1910 + $0x8c] sm:$0xf]
      %v1947 = vld [vmem:[%s1910 + $0x90] sm:$0xf]
      %v1948 = vld [vmem:[%s1910 + $0x94] sm:$0xf]
      %v1949 = vld [vmem:[%s1910 + $0x98] sm:$0xf]
      %v1950 = vld [vmem:[%s1910 + $0x9c] sm:$0xf]
      %v1951 = vld [vmem:[%s1910 + $0xa0] sm:$0xf]
      %v1952 = vld [vmem:[%s1910 + $0xa4] sm:$0xf]
      %v1953 = vld [vmem:[%s1910 + $0xa8] sm:$0xf]
      %v1954 = vld [vmem:[%s1910 + $0xac] sm:$0xf]
      %v1955 = vld [vmem:[%s1910 + $0xb0] sm:$0xf]
      %v1956 = vld [vmem:[%s1910 + $0xb4] sm:$0xf]
      %v1957 = vld [vmem:[%s1910 + $0xb8] sm:$0xf]
      %v1958 = vld [vmem:[%s1910 + $0xbc] sm:$0xf]
      %vm2034 = vcmask 1043456
      %v2035 = vrot.slane %v1901, 4
      %v2036 = vrot.slane %v1787, 4
      %v2037 = vsel %vm2034, %v2035, %v2036
      %v2038 = vrot.slane %v1902, 4
      %v2039 = vrot.slane %v1788, 4
      %v2040 = vsel %vm2034, %v2038, %v2039
      %v2041 = vrot.slane %v1903, 4
      %v2042 = vrot.slane %v1789, 4
      %v2043 = vsel %vm2034, %v2041, %v2042
      %v2044 = vrot.slane %v1790, 4
      %v2045 = vsel %vm2034, %v2036, %v2044
      %v2046 = vrot.slane %v1791, 4
      %v2047 = vsel %vm2034, %v2039, %v2046
      %v2048 = vrot.slane %v1792, 4
      %v2049 = vsel %vm2034, %v2042, %v2048
      %v2050 = vrot.slane %v1793, 4
      %v2051 = vsel %vm2034, %v2044, %v2050
      %v2052 = vrot.slane %v1794, 4
      %v2053 = vsel %vm2034, %v2046, %v2052
      %v2054 = vrot.slane %v1795, 4
      %v2055 = vsel %vm2034, %v2048, %v2054
      %v2056 = vrot.slane %v1796, 4
      %v2057 = vsel %vm2034, %v2050, %v2056
      %v2058 = vrot.slane %v1797, 4
      %v2059 = vsel %vm2034, %v2052, %v2058
      %v2060 = vrot.slane %v1798, 4
      %v2061 = vsel %vm2034, %v2054, %v2060
      %v2062 = vrot.slane %v1799, 4
      %v2063 = vsel %vm2034, %v2056, %v2062
      %v2064 = vrot.slane %v1800, 4
      %v2065 = vsel %vm2034, %v2058, %v2064
      %v2066 = vrot.slane %v1801, 4
      %v2067 = vsel %vm2034, %v2060, %v2066
      %v2068 = vrot.slane %v1802, 4
      %v2069 = vsel %vm2034, %v2062, %v2068
      %v2070 = vrot.slane %v1803, 4
      %v2071 = vsel %vm2034, %v2064, %v2070
      %v2072 = vrot.slane %v1804, 4
      %v2073 = vsel %vm2034, %v2066, %v2072
      %v2074 = vrot.slane %v1805, 4
      %v2075 = vsel %vm2034, %v2068, %v2074
      %v2076 = vrot.slane %v1806, 4
      %v2077 = vsel %vm2034, %v2070, %v2076
      %v2078 = vrot.slane %v1807, 4
      %v2079 = vsel %vm2034, %v2072, %v2078
      %v2080 = vrot.slane %v1808, 4
      %v2081 = vsel %vm2034, %v2074, %v2080
      %v2082 = vrot.slane %v1809, 4
      %v2083 = vsel %vm2034, %v2076, %v2082
      %v2084 = vrot.slane %v1810, 4
      %v2085 = vsel %vm2034, %v2078, %v2084
      %v2086 = vrot.slane %v1811, 4
      %v2087 = vsel %vm2034, %v2080, %v2086
      %v2088 = vrot.slane %v1812, 4
      %v2089 = vsel %vm2034, %v2082, %v2088
      %v2090 = vrot.slane %v1813, 4
      %v2091 = vsel %vm2034, %v2084, %v2090
      %v2092 = vrot.slane %v1814, 4
      %v2093 = vsel %vm2034, %v2086, %v2092
      %v2094 = vrot.slane %v1815, 4
      %v2095 = vsel %vm2034, %v2088, %v2094
      %v2096 = vrot.slane %v1816, 4
      %v2097 = vsel %vm2034, %v2090, %v2096
      %v2098 = vrot.slane %v1817, 4
      %v2099 = vsel %vm2034, %v2092, %v2098
      %v2100 = vrot.slane %v1818, 4
      %v2101 = vsel %vm2034, %v2094, %v2100
      %v2102 = vrot.slane %v1819, 4
      %v2103 = vsel %vm2034, %v2096, %v2102
      %v2104 = vrot.slane %v1820, 4
      %v2105 = vsel %vm2034, %v2098, %v2104
      %v2106 = vrot.slane %v1821, 4
      %v2107 = vsel %vm2034, %v2100, %v2106
      %v2108 = vrot.slane %v1822, 4
      %v2109 = vsel %vm2034, %v2102, %v2108
      %v2110 = vrot.slane %v1823, 4
      %v2111 = vsel %vm2034, %v2104, %v2110
      %v2112 = vrot.slane %v1824, 4
      %v2113 = vsel %vm2034, %v2106, %v2112
      %v2114 = vrot.slane %v1825, 4
      %v2115 = vsel %vm2034, %v2108, %v2114
      %v2116 = vrot.slane %v1826, 4
      %v2117 = vsel %vm2034, %v2110, %v2116
      %v2118 = vrot.slane %v1827, 4
      %v2119 = vsel %vm2034, %v2112, %v2118
      %v2120 = vrot.slane %v1828, 4
      %v2121 = vsel %vm2034, %v2114, %v2120
      %v2122 = vrot.slane %v1829, 4
      %v2123 = vsel %vm2034, %v2116, %v2122
      %v2124 = vrot.slane %v1830, 4
      %v2125 = vsel %vm2034, %v2118, %v2124
      %v2126 = vrot.slane %v1831, 4
      %v2127 = vsel %vm2034, %v2120, %v2126
      %v2128 = vrot.slane %v1832, 4
      %v2129 = vsel %vm2034, %v2122, %v2128
      %v2130 = vrot.slane %v1833, 4
      %v2131 = vsel %vm2034, %v2124, %v2130
      %v2132 = vrot.slane %v1834, 4
      %v2133 = vsel %vm2034, %v2126, %v2132
      %v2134 = vrot.slane %v1835, 4
      %v2135 = vsel %vm2034, %v2128, %v2134
      %v2136 = vrot.slane %v1836, 4
      %v2137 = vsel %vm2034, %v2130, %v2136
      %v2138 = vrot.slane %v1837, 4
      %v2139 = vsel %vm2034, %v2132, %v2138
      %v2140 = vrot.slane %v1838, 4
      %v2141 = vsel %vm2034, %v2134, %v2140
      %v2142 = vrot.slane %v1839, 4
      %v2143 = vsel %vm2034, %v2136, %v2142
      %v2144 = vrot.slane %v1840, 4
      %v2145 = vsel %vm2034, %v2138, %v2144
      %v2146 = vrot.slane %v1841, 4
      %v2147 = vsel %vm2034, %v2140, %v2146
      %v2148 = vrot.slane %v1842, 4
      %v2149 = vsel %vm2034, %v2142, %v2148
      %v2150 = vrot.slane %v1843, 4
      %v2151 = vsel %vm2034, %v2144, %v2150
      %v2152 = vrot.slane %v1844, 4
      %v2153 = vsel %vm2034, %v2146, %v2152
      %v2154 = vrot.slane %v1845, 4
      %v2155 = vsel %vm2034, %v2148, %v2154
      %v2156 = vrot.slane %v1846, 4
      %v2157 = vsel %vm2034, %v2150, %v2156
      %v2158 = vrot.slane %v1847, 4
      %v2159 = vsel %vm2034, %v2152, %v2158
      %v2160 = vrot.slane %v1848, 4
      %v2161 = vsel %vm2034, %v2154, %v2160
      %v2162 = vrot.slane %v1849, 4
      %v2163 = vsel %vm2034, %v2156, %v2162
      %v2164 = vrot.slane %v1850, 4
      %v2165 = vsel %vm2034, %v2158, %v2164
      %v2166 = vrot.slane %v1851, 4
      %v2167 = vsel %vm2034, %v2160, %v2166
      %v2168 = vrot.slane %v1852, 4
      %v2169 = vsel %vm2034, %v2162, %v2168
      %v2170 = vrot.slane %v1904, 4
      %v2171 = vsel %vm2034, %v2164, %v2170
      %v2172 = vrot.slane %v1905, 4
      %v2173 = vsel %vm2034, %v2166, %v2172
      %v2174 = vrot.slane %v1906, 4
      %v2175 = vsel %vm2034, %v2168, %v2174
      %v2176 = vrot.slane %v1907, 4
      %v2177 = vsel %vm2034, %v2170, %v2176
      %v2178 = vrot.slane %v1908, 4
      %v2179 = vsel %vm2034, %v2172, %v2178
      %v2180 = vrot.slane %v1909, 4
      %v2181 = vsel %vm2034, %v2174, %v2180
      %v2302 = vunpack.c.l.b16 %v1911
      %v2303 = vunpack.c.l.b16 %v1912
      %v2304 = vunpack.c.l.b16 %v1913
      %v2305 = vunpack.c.l.b16 %v1914
      %v2306 = vunpack.c.l.b16 %v1915
      %v2307 = vunpack.c.l.b16 %v1916
      %v2308 = vunpack.c.l.b16 %v1917
      %v2309 = vunpack.c.l.b16 %v1918
      %v2310 = vunpack.c.l.b16 %v1919
      %v2311 = vunpack.c.l.b16 %v1920
      %v2312 = vunpack.c.l.b16 %v1921
      %v2313 = vunpack.c.l.b16 %v1922
      %v2314 = vunpack.c.l.b16 %v1923
      %v2315 = vunpack.c.l.b16 %v1924
      %v2316 = vunpack.c.l.b16 %v1925
      %v2317 = vunpack.c.l.b16 %v1926
      %v2318 = vunpack.c.l.b16 %v1927
      %v2319 = vunpack.c.l.b16 %v1928
      %v2320 = vunpack.c.l.b16 %v1929
      %v2321 = vunpack.c.l.b16 %v1930
      %v2322 = vunpack.c.l.b16 %v1931
      %v2323 = vunpack.c.l.b16 %v1932
      %v2324 = vunpack.c.l.b16 %v1933
      %v2325 = vunpack.c.l.b16 %v1934
      %v2326 = vunpack.c.l.b16 %v1935
      %v2327 = vunpack.c.l.b16 %v1936
      %v2328 = vunpack.c.l.b16 %v1937
      %v2329 = vunpack.c.l.b16 %v1938
      %v2330 = vunpack.c.l.b16 %v1939
      %v2331 = vunpack.c.l.b16 %v1940
      %v2332 = vunpack.c.l.b16 %v1941
      %v2333 = vunpack.c.l.b16 %v1942
      %v2334 = vunpack.c.l.b16 %v1943
      %v2335 = vunpack.c.l.b16 %v1944
      %v2336 = vunpack.c.l.b16 %v1945
      %v2337 = vunpack.c.l.b16 %v1946
      %v2338 = vunpack.c.l.b16 %v1947
      %v2339 = vunpack.c.l.b16 %v1948
      %v2340 = vunpack.c.l.b16 %v1949
      %v2341 = vunpack.c.l.b16 %v1950
      %v2342 = vunpack.c.l.b16 %v1951
      %v2343 = vunpack.c.l.b16 %v1952
      %v2344 = vunpack.c.l.b16 %v1953
      %v2345 = vunpack.c.l.b16 %v1954
      %v2346 = vunpack.c.l.b16 %v1955
      %v2347 = vunpack.c.l.b16 %v1956
      %v2348 = vunpack.c.l.b16 %v1957
      %v2349 = vunpack.c.l.b16 %v1958
      %v2350 = vpack.c.b16 %v2303, %v2302
      %v2351 = vpack.c.b16 %v2305, %v2304
      %v2352 = vpack.c.b16 %v2307, %v2306
      %v2353 = vpack.c.b16 %v2309, %v2308
      %v2354 = vpack.c.b16 %v2311, %v2310
      %v2355 = vpack.c.b16 %v2313, %v2312
      %v2356 = vpack.c.b16 %v2315, %v2314
      %v2357 = vpack.c.b16 %v2317, %v2316
      %v2358 = vpack.c.b16 %v2319, %v2318
      %v2359 = vpack.c.b16 %v2321, %v2320
      %v2360 = vpack.c.b16 %v2323, %v2322
      %v2361 = vpack.c.b16 %v2325, %v2324
      %v2362 = vpack.c.b16 %v2327, %v2326
      %v2363 = vpack.c.b16 %v2329, %v2328
      %v2364 = vpack.c.b16 %v2331, %v2330
      %v2365 = vpack.c.b16 %v2333, %v2332
      %v2366 = vpack.c.b16 %v2335, %v2334
      %v2367 = vpack.c.b16 %v2337, %v2336
      %v2368 = vpack.c.b16 %v2339, %v2338
      %v2369 = vpack.c.b16 %v2341, %v2340
      %v2370 = vpack.c.b16 %v2343, %v2342
      %v2371 = vpack.c.b16 %v2345, %v2344
      %v2372 = vpack.c.b16 %v2347, %v2346
      %v2373 = vpack.c.b16 %v2349, %v2348
      %2398 = vmatprep.subr.bf16.mxu0 0
      %2399 = vmatpush1.bf16.msra.mxu0 %v2350
      %2400 = vmatprep.subr.bf16.mxu0 0
      %2401 = vmatpush1.bf16.msra.mxu0 %v2351
      %2402 = vmatprep.subr.bf16.mxu0 0
      %2403 = vmatpush1.bf16.msra.mxu0 %v2352
      %2404 = vmatprep.subr.bf16.mxu0 0
      %2405 = vmatpush1.bf16.msra.mxu0 %v2353
      %2406 = vmatprep.subr.bf16.mxu0 0
      %2407 = vmatpush1.bf16.msra.mxu0 %v2354
      %2408 = vmatprep.subr.bf16.mxu0 0
      %2409 = vmatpush1.bf16.msra.mxu0 %v2355
      %2410 = vmatprep.subr.bf16.mxu0 0
      %2411 = vmatpush1.bf16.msra.mxu0 %v2356
      %2412 = vmatprep.subr.bf16.mxu0 0
      %2413 = vmatpush1.bf16.msra.mxu0 %v2357
      %2414 = vmatprep.subr.bf16.mxu0 0
      %2415 = vmatpush1.bf16.msra.mxu0 %v2358
      %2416 = vmatprep.subr.bf16.mxu0 0
      %2417 = vmatpush1.bf16.msra.mxu0 %v2359
      %2418 = vmatprep.subr.bf16.mxu0 0
      %2419 = vmatpush1.bf16.msra.mxu0 %v2360
      %2420 = vmatprep.subr.bf16.mxu0 0
      %2421 = vmatpush1.bf16.msra.mxu0 %v2361
      %2422 = vmatprep.subr.bf16.mxu0 0
      %2423 = vmatpush1.bf16.msra.mxu0 %v2362
      %2424 = vmatprep.subr.bf16.mxu0 0
      %2425 = vmatpush1.bf16.msra.mxu0 %v2363
      %2426 = vmatprep.subr.bf16.mxu0 0
      %2427 = vmatpush1.bf16.msra.mxu0 %v2364
      %2428 = vmatprep.subr.bf16.mxu0 0
      %2429 = vmatpush1.bf16.msra.mxu0 %v2365
      %2430 = vmatprep.mubr.bf16.mxu0 %v2040
      %2431 = vmatmul.mubr.bf16.gmra.mrb[0].mxu0 %v2037
      %v2432 = vpop.f32.mrb[0].mxu0
      %v2433 = vadd.f32 0.0, %v2432
      %v2434 = vpop.f32.mrb[0].mxu0
      %v2435 = vpop.f32.mrb[0].mxu0
      %v2436 = vadd.f32 0.0, %v2435
      %v2437 = vpop.f32.mrb[0].mxu0
      %2438 = vmatprep.mubr.bf16.mxu0 %v2047
      %2439 = vmatmul.mubr.bf16.gmra.mrb[0].mxu0 %v2045
      %v2440 = vpop.f32.mrb[0].mxu0
      %v2441 = vadd.f32 0.0, %v2440
      %v2442 = vpop.f32.mrb[0].mxu0
      %v2443 = vpop.f32.mrb[0].mxu0
      %v2444 = vadd.f32 0.0, %v2443
      %v2445 = vpop.f32.mrb[0].mxu0
      %2446 = vmatprep.mubr.bf16.mxu0 %v2053
      %2447 = vmatmul.mubr.bf16.gmra.mrb[0].mxu0 %v2051
      %v2448 = vpop.f32.mrb[0].mxu0
      %v2449 = vadd.f32 0.0, %v2448
      %v2450 = vpop.f32.mrb[0].mxu0
      %v2451 = vpop.f32.mrb[0].mxu0
      %v2452 = vadd.f32 0.0, %v2451
      %v2453 = vpop.f32.mrb[0].mxu0
      %2454 = vmatprep.mubr.bf16.mxu0 %v2059
      %2455 = vmatmul.mubr.bf16.gmra.mrb[0].mxu0 %v2057
      %v2456 = vpop.f32.mrb[0].mxu0
      %v2457 = vadd.f32 0.0, %v2456
      %v2458 = vpop.f32.mrb[0].mxu0
      %v2459 = vpop.f32.mrb[0].mxu0
      %v2460 = vadd.f32 0.0, %v2459
      %v2461 = vpop.f32.mrb[0].mxu0
      %2462 = vmatprep.mubr.bf16.mxu0 %v2065
      %2463 = vmatmul.mubr.bf16.gmra.mrb[0].mxu0 %v2063
      %v2464 = vpop.f32.mrb[0].mxu0
      %v2465 = vadd.f32 0.0, %v2464
      %v2466 = vpop.f32.mrb[0].mxu0
      %v2467 = vpop.f32.mrb[0].mxu0
      %v2468 = vadd.f32 0.0, %v2467
      %v2469 = vpop.f32.mrb[0].mxu0
      %2470 = vmatprep.mubr.bf16.mxu0 %v2071
      %2471 = vmatmul.mubr.bf16.gmra.mrb[0].mxu0 %v2069
      %v2472 = vpop.f32.mrb[0].mxu0
      %v2473 = vadd.f32 0.0, %v2472
      %v2474 = vpop.f32.mrb[0].mxu0
      %v2475 = vpop.f32.mrb[0].mxu0
      %v2476 = vadd.f32 0.0, %v2475
      %v2477 = vpop.f32.mrb[0].mxu0
      %2478 = vmatprep.mubr.bf16.mxu0 %v2077
      %2479 = vmatmul.mubr.bf16.gmra.mrb[0].mxu0 %v2075
      %v2480 = vpop.f32.mrb[0].mxu0
      %v2481 = vadd.f32 0.0, %v2480
      %v2482 = vpop.f32.mrb[0].mxu0
      %v2483 = vpop.f32.mrb[0].mxu0
      %v2484 = vadd.f32 0.0, %v2483
      %v2485 = vpop.f32.mrb[0].mxu0
      %2486 = vmatprep.mubr.bf16.mxu0 %v2083
      %2487 = vmatmul.mubr.bf16.gmra.mrb[0].mxu0 %v2081
      %v2488 = vpop.f32.mrb[0].mxu0
      %v2489 = vadd.f32 0.0, %v2488
      %v2490 = vpop.f32.mrb[0].mxu0
      %v2491 = vpop.f32.mrb[0].mxu0
      %v2492 = vadd.f32 0.0, %v2491
      %v2493 = vpop.f32.mrb[0].mxu0
      %2494 = vmatprep.mubr.bf16.mxu0 %v2089
      %2495 = vmatmul.mubr.bf16.gmra.mrb[0].mxu0 %v2087
      %v2496 = vpop.f32.mrb[0].mxu0
      %v2497 = vadd.f32 0.0, %v2496
      %v2498 = vpop.f32.mrb[0].mxu0
      %v2499 = vpop.f32.mrb[0].mxu0
      %v2500 = vadd.f32 0.0, %v2499
      %v2501 = vpop.f32.mrb[0].mxu0
      %2502 = vmatprep.mubr.bf16.mxu0 %v2095
      %2503 = vmatmul.mubr.bf16.gmra.mrb[0].mxu0 %v2093
      %v2504 = vpop.f32.mrb[0].mxu0
      %v2505 = vadd.f32 0.0, %v2504
      %v2506 = vpop.f32.mrb[0].mxu0
      %v2507 = vpop.f32.mrb[0].mxu0
      %v2508 = vadd.f32 0.0, %v2507
      %v2509 = vpop.f32.mrb[0].mxu0
      %2510 = vmatprep.mubr.bf16.mxu0 %v2101
      %2511 = vmatmul.mubr.bf16.gmra.mrb[0].mxu0 %v2099
      %v2512 = vpop.f32.mrb[0].mxu0
      %v2513 = vadd.f32 0.0, %v2512
      %v2514 = vpop.f32.mrb[0].mxu0
      %v2515 = vpop.f32.mrb[0].mxu0
      %v2516 = vadd.f32 0.0, %v2515
      %v2517 = vpop.f32.mrb[0].mxu0
      %2518 = vmatprep.mubr.bf16.mxu0 %v2107
      %2519 = vmatmul.mubr.bf16.gmra.mrb[0].mxu0 %v2105
      %v2520 = vpop.f32.mrb[0].mxu0
      %v2521 = vadd.f32 0.0, %v2520
      %v2522 = vpop.f32.mrb[0].mxu0
      %v2523 = vpop.f32.mrb[0].mxu0
      %v2524 = vadd.f32 0.0, %v2523
      %v2525 = vpop.f32.mrb[0].mxu0
      %2526 = vmatprep.mubr.bf16.mxu0 %v2113
      %2527 = vmatmul.mubr.bf16.gmra.mrb[0].mxu0 %v2111
      %v2528 = vpop.f32.mrb[0].mxu0
      %v2529 = vadd.f32 0.0, %v2528
      %v2530 = vpop.f32.mrb[0].mxu0
      %v2531 = vpop.f32.mrb[0].mxu0
      %v2532 = vadd.f32 0.0, %v2531
      %v2533 = vpop.f32.mrb[0].mxu0
      %2534 = vmatprep.mubr.bf16.mxu0 %v2119
      %2535 = vmatmul.mubr.bf16.gmra.mrb[0].mxu0 %v2117
      %v2536 = vpop.f32.mrb[0].mxu0
      %v2537 = vadd.f32 0.0, %v2536
      %v2538 = vpop.f32.mrb[0].mxu0
      %v2539 = vpop.f32.mrb[0].mxu0
      %v2540 = vadd.f32 0.0, %v2539
      %v2541 = vpop.f32.mrb[0].mxu0
      %2542 = vmatprep.mubr.bf16.mxu0 %v2125
      %2543 = vmatmul.mubr.bf16.gmra.mrb[0].mxu0 %v2123
      %v2544 = vpop.f32.mrb[0].mxu0
      %v2545 = vadd.f32 0.0, %v2544
      %v2546 = vpop.f32.mrb[0].mxu0
      %v2547 = vpop.f32.mrb[0].mxu0
      %v2548 = vadd.f32 0.0, %v2547
      %v2549 = vpop.f32.mrb[0].mxu0
      %2550 = vmatprep.mubr.bf16.mxu0 %v2131
      %2551 = vmatmul.mubr.bf16.gmra.mrb[0].mxu0 %v2129
      %v2552 = vpop.f32.mrb[0].mxu0
      %v2553 = vadd.f32 0.0, %v2552
      %v2554 = vpop.f32.mrb[0].mxu0
      %v2555 = vpop.f32.mrb[0].mxu0
      %v2556 = vadd.f32 0.0, %v2555
      %v2557 = vpop.f32.mrb[0].mxu0
      %2558 = vmatprep.mubr.bf16.mxu0 %v2137
      %2559 = vmatmul.mubr.bf16.gmra.mrb[0].mxu0 %v2135
      %v2560 = vpop.f32.mrb[0].mxu0
      %v2561 = vadd.f32 0.0, %v2560
      %v2562 = vpop.f32.mrb[0].mxu0
      %v2563 = vpop.f32.mrb[0].mxu0
      %v2564 = vadd.f32 0.0, %v2563
      %v2565 = vpop.f32.mrb[0].mxu0
      %2566 = vmatprep.mubr.bf16.mxu0 %v2143
      %2567 = vmatmul.mubr.bf16.gmra.mrb[0].mxu0 %v2141
      %v2568 = vpop.f32.mrb[0].mxu0
      %v2569 = vadd.f32 0.0, %v2568
      %v2570 = vpop.f32.mrb[0].mxu0
      %v2571 = vpop.f32.mrb[0].mxu0
      %v2572 = vadd.f32 0.0, %v2571
      %v2573 = vpop.f32.mrb[0].mxu0
      %2574 = vmatprep.mubr.bf16.mxu0 %v2149
      %2575 = vmatmul.mubr.bf16.gmra.mrb[0].mxu0 %v2147
      %v2576 = vpop.f32.mrb[0].mxu0
      %v2577 = vadd.f32 0.0, %v2576
      %v2578 = vpop.f32.mrb[0].mxu0
      %v2579 = vpop.f32.mrb[0].mxu0
      %v2580 = vadd.f32 0.0, %v2579
      %v2581 = vpop.f32.mrb[0].mxu0
      %2582 = vmatprep.mubr.bf16.mxu0 %v2155
      %2583 = vmatmul.mubr.bf16.gmra.mrb[0].mxu0 %v2153
      %v2584 = vpop.f32.mrb[0].mxu0
      %v2585 = vadd.f32 0.0, %v2584
      %v2586 = vpop.f32.mrb[0].mxu0
      %v2587 = vpop.f32.mrb[0].mxu0
      %v2588 = vadd.f32 0.0, %v2587
      %v2589 = vpop.f32.mrb[0].mxu0
      %2590 = vmatprep.mubr.bf16.mxu0 %v2161
      %2591 = vmatmul.mubr.bf16.gmra.mrb[0].mxu0 %v2159
      %v2592 = vpop.f32.mrb[0].mxu0
      %v2593 = vadd.f32 0.0, %v2592
      %v2594 = vpop.f32.mrb[0].mxu0
      %v2595 = vpop.f32.mrb[0].mxu0
      %v2596 = vadd.f32 0.0, %v2595
      %v2597 = vpop.f32.mrb[0].mxu0
      %2598 = vmatprep.mubr.bf16.mxu0 %v2167
      %2599 = vmatmul.mubr.bf16.gmra.mrb[0].mxu0 %v2165
      %v2600 = vpop.f32.mrb[0].mxu0
      %v2601 = vadd.f32 0.0, %v2600
      %v2602 = vpop.f32.mrb[0].mxu0
      %v2603 = vpop.f32.mrb[0].mxu0
      %v2604 = vadd.f32 0.0, %v2603
      %v2605 = vpop.f32.mrb[0].mxu0
      %2606 = vmatprep.mubr.bf16.mxu0 %v2173
      %2607 = vmatmul.mubr.bf16.gmra.mrb[0].mxu0 %v2171
      %v2608 = vpop.f32.mrb[0].mxu0
      %v2609 = vadd.f32 0.0, %v2608
      %v2610 = vpop.f32.mrb[0].mxu0
      %v2611 = vpop.f32.mrb[0].mxu0
      %v2612 = vadd.f32 0.0, %v2611
      %v2613 = vpop.f32.mrb[0].mxu0
      %2614 = vmatprep.mubr.bf16.mxu0 %v2179
      %2615 = vmatmul.mubr.bf16.gmra.mrb[0].mxu0 %v2177
      %v2616 = vpop.f32.mrb[0].mxu0
      %v2617 = vadd.f32 0.0, %v2616
      %v2618 = vpop.f32.mrb[0].mxu0
      %v2619 = vpop.f32.mrb[0].mxu0
      %v2620 = vadd.f32 0.0, %v2619
      %v2621 = vpop.f32.mrb[0].mxu0
      %2622 = vdwg.mxu0
      %2623 = vmatprep.subr.bf16.mxu0 0
      %2624 = vmatpush1.bf16.msra.mxu0 %v2366
      %2625 = vmatprep.subr.bf16.mxu0 0
      %2626 = vmatpush1.bf16.msra.mxu0 %v2367
      %2627 = vmatprep.subr.bf16.mxu0 0
      %2628 = vmatpush1.bf16.msra.mxu0 %v2368
      %2629 = vmatprep.subr.bf16.mxu0 0
      %2630 = vmatpush1.bf16.msra.mxu0 %v2369
      %2631 = vmatprep.subr.bf16.mxu0 0
      %2632 = vmatpush1.bf16.msra.mxu0 %v2370
      %2633 = vmatprep.subr.bf16.mxu0 0
      %2634 = vmatpush1.bf16.msra.mxu0 %v2371
      %2635 = vmatprep.subr.bf16.mxu0 0
      %2636 = vmatpush1.bf16.msra.mxu0 %v2372
      %2637 = vmatprep.subr.bf16.mxu0 0
      %2638 = vmatpush1.bf16.msra.mxu0 %v2373
      %2639 = vmatprep.subr.bf16.mxu0 0
      %2640 = vmatpush1.bf16.msra.mxu0 0
      %2641 = vmatprep.subr.bf16.mxu0 0
      %2642 = vmatpush1.bf16.msra.mxu0 0
      %2643 = vmatprep.subr.bf16.mxu0 0
      %2644 = vmatpush1.bf16.msra.mxu0 0
      %2645 = vmatprep.subr.bf16.mxu0 0
      %2646 = vmatpush1.bf16.msra.mxu0 0
      %2647 = vmatprep.subr.bf16.mxu0 0
      %2648 = vmatpush1.bf16.msra.mxu0 0
      %2649 = vmatprep.subr.bf16.mxu0 0
      %2650 = vmatpush1.bf16.msra.mxu0 0
      %2651 = vmatprep.subr.bf16.mxu0 0
      %2652 = vmatpush1.bf16.msra.mxu0 0
      %2653 = vmatprep.subr.bf16.mxu0 0
      %2654 = vmatpush1.bf16.msra.mxu0 0
      %2655 = vmatprep.mubr.bf16.mxu0 0
      %2656 = vmatmul.mubr.bf16.gmra.mrb[0].mxu0 %v2043
      %v2657 = vpop.f32.mrb[0].mxu0
      %v2658 = vadd.f32 %v2433, %v2657
      %v2659 = vpop.f32.mrb[0].mxu0
      %v2660 = vpop.f32.mrb[0].mxu0
      %v2661 = vadd.f32 %v2436, %v2660
      %v2662 = vpop.f32.mrb[0].mxu0
      %2663 = vmatprep.mubr.bf16.mxu0 0
      %2664 = vmatmul.mubr.bf16.gmra.mrb[0].mxu0 %v2049
      %v2665 = vpop.f32.mrb[0].mxu0
      %v2666 = vadd.f32 %v2441, %v2665
      %v2667 = vpop.f32.mrb[0].mxu0
      %v2668 = vpop.f32.mrb[0].mxu0
      %v2669 = vadd.f32 %v2444, %v2668
      %v2670 = vpop.f32.mrb[0].mxu0
      %2671 = vmatprep.mubr.bf16.mxu0 0
      %2672 = vmatmul.mubr.bf16.gmra.mrb[0].mxu0 %v2055
      %v2673 = vpop.f32.mrb[0].mxu0
      %v2674 = vadd.f32 %v2449, %v2673
      %v2675 = vpop.f32.mrb[0].mxu0
      %v2676 = vpop.f32.mrb[0].mxu0
      %v2677 = vadd.f32 %v2452, %v2676
      %v2678 = vpop.f32.mrb[0].mxu0
      %2679 = vmatprep.mubr.bf16.mxu0 0
      %2680 = vmatmul.mubr.bf16.gmra.mrb[0].mxu0 %v2061
      %v2681 = vpop.f32.mrb[0].mxu0
      %v2682 = vadd.f32 %v2457, %v2681
      %v2683 = vpop.f32.mrb[0].mxu0
      %v2684 = vpop.f32.mrb[0].mxu0
      %v2685 = vadd.f32 %v2460, %v2684
      %v2686 = vpop.f32.mrb[0].mxu0
      %2687 = vmatprep.mubr.bf16.mxu0 0
      %2688 = vmatmul.mubr.bf16.gmra.mrb[0].mxu0 %v2067
      %v2689 = vpop.f32.mrb[0].mxu0
      %v2690 = vadd.f32 %v2465, %v2689
      %v2691 = vpop.f32.mrb[0].mxu0
      %v2692 = vpop.f32.mrb[0].mxu0
      %v2693 = vadd.f32 %v2468, %v2692
      %v2694 = vpop.f32.mrb[0].mxu0
      %2695 = vmatprep.mubr.bf16.mxu0 0
      %2696 = vmatmul.mubr.bf16.gmra.mrb[0].mxu0 %v2073
      %v2697 = vpop.f32.mrb[0].mxu0
      %v2698 = vadd.f32 %v2473, %v2697
      %v2699 = vpop.f32.mrb[0].mxu0
      %v2700 = vpop.f32.mrb[0].mxu0
      %v2701 = vadd.f32 %v2476, %v2700
      %v2702 = vpop.f32.mrb[0].mxu0
      %2703 = vmatprep.mubr.bf16.mxu0 0
      %2704 = vmatmul.mubr.bf16.gmra.mrb[0].mxu0 %v2079
      %v2705 = vpop.f32.mrb[0].mxu0
      %v2706 = vadd.f32 %v2481, %v2705
      %v2707 = vpop.f32.mrb[0].mxu0
      %v2708 = vpop.f32.mrb[0].mxu0
      %v2709 = vadd.f32 %v2484, %v2708
      %v2710 = vpop.f32.mrb[0].mxu0
      %2711 = vmatprep.mubr.bf16.mxu0 0
      %2712 = vmatmul.mubr.bf16.gmra.mrb[0].mxu0 %v2085
      %v2713 = vpop.f32.mrb[0].mxu0
      %v2714 = vadd.f32 %v2489, %v2713
      %v2715 = vpop.f32.mrb[0].mxu0
      %v2716 = vpop.f32.mrb[0].mxu0
      %v2717 = vadd.f32 %v2492, %v2716
      %v2718 = vpop.f32.mrb[0].mxu0
      %2719 = vmatprep.mubr.bf16.mxu0 0
      %2720 = vmatmul.mubr.bf16.gmra.mrb[0].mxu0 %v2091
      %v2721 = vpop.f32.mrb[0].mxu0
      %v2722 = vadd.f32 %v2497, %v2721
      %v2723 = vpop.f32.mrb[0].mxu0
      %v2724 = vpop.f32.mrb[0].mxu0
      %v2725 = vadd.f32 %v2500, %v2724
      %v2726 = vpop.f32.mrb[0].mxu0
      %2727 = vmatprep.mubr.bf16.mxu0 0
      %2728 = vmatmul.mubr.bf16.gmra.mrb[0].mxu0 %v2097
      %v2729 = vpop.f32.mrb[0].mxu0
      %v2730 = vadd.f32 %v2505, %v2729
      %v2731 = vpop.f32.mrb[0].mxu0
      %v2732 = vpop.f32.mrb[0].mxu0
      %v2733 = vadd.f32 %v2508, %v2732
      %v2734 = vpop.f32.mrb[0].mxu0
      %2735 = vmatprep.mubr.bf16.mxu0 0
      %2736 = vmatmul.mubr.bf16.gmra.mrb[0].mxu0 %v2103
      %v2737 = vpop.f32.mrb[0].mxu0
      %v2738 = vadd.f32 %v2513, %v2737
      %v2739 = vpop.f32.mrb[0].mxu0
      %v2740 = vpop.f32.mrb[0].mxu0
      %v2741 = vadd.f32 %v2516, %v2740
      %v2742 = vpop.f32.mrb[0].mxu0
      %2743 = vmatprep.mubr.bf16.mxu0 0
      %2744 = vmatmul.mubr.bf16.gmra.mrb[0].mxu0 %v2109
      %v2745 = vpop.f32.mrb[0].mxu0
      %v2746 = vadd.f32 %v2521, %v2745
      %v2747 = vpop.f32.mrb[0].mxu0
      %v2748 = vpop.f32.mrb[0].mxu0
      %v2749 = vadd.f32 %v2524, %v2748
      %v2750 = vpop.f32.mrb[0].mxu0
      %2751 = vmatprep.mubr.bf16.mxu0 0
      %2752 = vmatmul.mubr.bf16.gmra.mrb[0].mxu0 %v2115
      %v2753 = vpop.f32.mrb[0].mxu0
      %v2754 = vadd.f32 %v2529, %v2753
      %v2755 = vpop.f32.mrb[0].mxu0
      %v2756 = vpop.f32.mrb[0].mxu0
      %v2757 = vadd.f32 %v2532, %v2756
      %v2758 = vpop.f32.mrb[0].mxu0
      %2759 = vmatprep.mubr.bf16.mxu0 0
      %2760 = vmatmul.mubr.bf16.gmra.mrb[0].mxu0 %v2121
      %v2761 = vpop.f32.mrb[0].mxu0
      %v2762 = vadd.f32 %v2537, %v2761
      %v2763 = vpop.f32.mrb[0].mxu0
      %v2764 = vpop.f32.mrb[0].mxu0
      %v2765 = vadd.f32 %v2540, %v2764
      %v2766 = vpop.f32.mrb[0].mxu0
      %2767 = vmatprep.mubr.bf16.mxu0 0
      %2768 = vmatmul.mubr.bf16.gmra.mrb[0].mxu0 %v2127
      %v2769 = vpop.f32.mrb[0].mxu0
      %v2770 = vadd.f32 %v2545, %v2769
      %v2771 = vpop.f32.mrb[0].mxu0
      %v2772 = vpop.f32.mrb[0].mxu0
      %v2773 = vadd.f32 %v2548, %v2772
      %v2774 = vpop.f32.mrb[0].mxu0
      %2775 = vmatprep.mubr.bf16.mxu0 0
      %2776 = vmatmul.mubr.bf16.gmra.mrb[0].mxu0 %v2133
      %v2777 = vpop.f32.mrb[0].mxu0
      %v2778 = vadd.f32 %v2553, %v2777
      %v2779 = vpop.f32.mrb[0].mxu0
      %v2780 = vpop.f32.mrb[0].mxu0
      %v2781 = vadd.f32 %v2556, %v2780
      %v2782 = vpop.f32.mrb[0].mxu0
      %2783 = vmatprep.mubr.bf16.mxu0 0
      %2784 = vmatmul.mubr.bf16.gmra.mrb[0].mxu0 %v2139
      %v2785 = vpop.f32.mrb[0].mxu0
      %v2786 = vadd.f32 %v2561, %v2785
      %v2787 = vpop.f32.mrb[0].mxu0
      %v2788 = vpop.f32.mrb[0].mxu0
      %v2789 = vadd.f32 %v2564, %v2788
      %v2790 = vpop.f32.mrb[0].mxu0
      %2791 = vmatprep.mubr.bf16.mxu0 0
      %2792 = vmatmul.mubr.bf16.gmra.mrb[0].mxu0 %v2145
      %v2793 = vpop.f32.mrb[0].mxu0
      %v2794 = vadd.f32 %v2569, %v2793
      %v2795 = vpop.f32.mrb[0].mxu0
      %v2796 = vpop.f32.mrb[0].mxu0
      %v2797 = vadd.f32 %v2572, %v2796
      %v2798 = vpop.f32.mrb[0].mxu0
      %2799 = vmatprep.mubr.bf16.mxu0 0
      %2800 = vmatmul.mubr.bf16.gmra.mrb[0].mxu0 %v2151
      %v2801 = vpop.f32.mrb[0].mxu0
      %v2802 = vadd.f32 %v2577, %v2801
      %v2803 = vpop.f32.mrb[0].mxu0
      %v2804 = vpop.f32.mrb[0].mxu0
      %v2805 = vadd.f32 %v2580, %v2804
      %v2806 = vpop.f32.mrb[0].mxu0
      %2807 = vmatprep.mubr.bf16.mxu0 0
      %2808 = vmatmul.mubr.bf16.gmra.mrb[0].mxu0 %v2157
      %v2809 = vpop.f32.mrb[0].mxu0
      %v2810 = vadd.f32 %v2585, %v2809
      %v2811 = vpop.f32.mrb[0].mxu0
      %v2812 = vpop.f32.mrb[0].mxu0
      %v2813 = vadd.f32 %v2588, %v2812
      %v2814 = vpop.f32.mrb[0].mxu0
      %2815 = vmatprep.mubr.bf16.mxu0 0
      %2816 = vmatmul.mubr.bf16.gmra.mrb[0].mxu0 %v2163
      %v2817 = vpop.f32.mrb[0].mxu0
      %v2818 = vadd.f32 %v2593, %v2817
      %v2819 = vpop.f32.mrb[0].mxu0
      %v2820 = vpop.f32.mrb[0].mxu0
      %v2821 = vadd.f32 %v2596, %v2820
      %v2822 = vpop.f32.mrb[0].mxu0
      %2823 = vmatprep.mubr.bf16.mxu0 0
      %2824 = vmatmul.mubr.bf16.gmra.mrb[0].mxu0 %v2169
      %v2825 = vpop.f32.mrb[0].mxu0
      %v2826 = vadd.f32 %v2601, %v2825
      %v2827 = vpop.f32.mrb[0].mxu0
      %v2828 = vpop.f32.mrb[0].mxu0
      %v2829 = vadd.f32 %v2604, %v2828
      %v2830 = vpop.f32.mrb[0].mxu0
      %2831 = vmatprep.mubr.bf16.mxu0 0
      %2832 = vmatmul.mubr.bf16.gmra.mrb[0].mxu0 %v2175
      %v2833 = vpop.f32.mrb[0].mxu0
      %v2834 = vadd.f32 %v2609, %v2833
      %v2835 = vpop.f32.mrb[0].mxu0
      %v2836 = vpop.f32.mrb[0].mxu0
      %v2837 = vadd.f32 %v2612, %v2836
      %v2838 = vpop.f32.mrb[0].mxu0
      %2839 = vmatprep.mubr.bf16.mxu0 0
      %2840 = vmatmul.mubr.bf16.gmra.mrb[0].mxu0 %v2181
      %v2841 = vpop.f32.mrb[0].mxu0
      %v2842 = vadd.f32 %v2617, %v2841
      %v2843 = vpop.f32.mrb[0].mxu0
      %v2844 = vpop.f32.mrb[0].mxu0
      %v2845 = vadd.f32 %v2620, %v2844
      %v2846 = vpop.f32.mrb[0].mxu0
      %2847 = vdwg.mxu0
      %v2896 = vunpack.c.l.b16 %v1853
      %v2897 = vunpack.c.l.b16 %v1854
      %v2898 = vunpack.c.l.b16 %v1855
      %v2899 = vunpack.c.l.b16 %v1856
      %v2900 = vunpack.c.l.b16 %v1857
      %v2901 = vunpack.c.l.b16 %v1858
      %v2902 = vunpack.c.l.b16 %v1859
      %v2903 = vunpack.c.l.b16 %v1860
      %v2904 = vunpack.c.l.b16 %v1861
      %v2905 = vunpack.c.l.b16 %v1862
      %v2906 = vunpack.c.l.b16 %v1863
      %v2907 = vunpack.c.l.b16 %v1864
      %v2908 = vunpack.c.l.b16 %v1865
      %v2909 = vunpack.c.l.b16 %v1866
      %v2910 = vunpack.c.l.b16 %v1867
      %v2911 = vunpack.c.l.b16 %v1868
      %v2912 = vunpack.c.l.b16 %v1869
      %v2913 = vunpack.c.l.b16 %v1870
      %v2914 = vunpack.c.l.b16 %v1871
      %v2915 = vunpack.c.l.b16 %v1872
      %v2916 = vunpack.c.l.b16 %v1873
      %v2917 = vunpack.c.l.b16 %v1874
      %v2918 = vunpack.c.l.b16 %v1875
      %v2919 = vunpack.c.l.b16 %v1876
      %v2920 = vunpack.c.l.b16 %v1877
      %v2921 = vunpack.c.l.b16 %v1878
      %v2922 = vunpack.c.l.b16 %v1879
      %v2923 = vunpack.c.l.b16 %v1880
      %v2924 = vunpack.c.l.b16 %v1881
      %v2925 = vunpack.c.l.b16 %v1882
      %v2926 = vunpack.c.l.b16 %v1883
      %v2927 = vunpack.c.l.b16 %v1884
      %v2928 = vunpack.c.l.b16 %v1885
      %v2929 = vunpack.c.l.b16 %v1886
      %v2930 = vunpack.c.l.b16 %v1887
      %v2931 = vunpack.c.l.b16 %v1888
      %v2932 = vunpack.c.l.b16 %v1889
      %v2933 = vunpack.c.l.b16 %v1890
      %v2934 = vunpack.c.l.b16 %v1891
      %v2935 = vunpack.c.l.b16 %v1892
      %v2936 = vunpack.c.l.b16 %v1893
      %v2937 = vunpack.c.l.b16 %v1894
      %v2938 = vunpack.c.l.b16 %v1895
      %v2939 = vunpack.c.l.b16 %v1896
      %v2940 = vunpack.c.l.b16 %v1897
      %v2941 = vunpack.c.l.b16 %v1898
      %v2942 = vunpack.c.l.b16 %v1899
      %v2943 = vunpack.c.l.b16 %v1900
      %v2944 = vpack.c.b16 %v2897, %v2896
      %v2945 = vpack.c.b16 %v2899, %v2898
      %v2946 = vpack.c.b16 %v2901, %v2900
      %v2947 = vpack.c.b16 %v2903, %v2902
      %v2948 = vpack.c.b16 %v2905, %v2904
      %v2949 = vpack.c.b16 %v2907, %v2906
      %v2950 = vpack.c.b16 %v2909, %v2908
      %v2951 = vpack.c.b16 %v2911, %v2910
      %v2952 = vpack.c.b16 %v2913, %v2912
      %v2953 = vpack.c.b16 %v2915, %v2914
      %v2954 = vpack.c.b16 %v2917, %v2916
      %v2955 = vpack.c.b16 %v2919, %v2918
      %v2956 = vpack.c.b16 %v2921, %v2920
      %v2957 = vpack.c.b16 %v2923, %v2922
      %v2958 = vpack.c.b16 %v2925, %v2924
      %v2959 = vpack.c.b16 %v2927, %v2926
      %v2960 = vpack.c.b16 %v2929, %v2928
      %v2961 = vpack.c.b16 %v2931, %v2930
      %v2962 = vpack.c.b16 %v2933, %v2932
      %v2963 = vpack.c.b16 %v2935, %v2934
      %v2964 = vpack.c.b16 %v2937, %v2936
      %v2965 = vpack.c.b16 %v2939, %v2938
      %v2966 = vpack.c.b16 %v2941, %v2940
      %v2967 = vpack.c.b16 %v2943, %v2942
      %2992 = vmatprep.subr.bf16.mxu0 0
      %2993 = vmatpush1.bf16.msra.mxu0 %v2944
      %2994 = vmatprep.subr.bf16.mxu0 0
      %2995 = vmatpush1.bf16.msra.mxu0 %v2945
      %2996 = vmatprep.subr.bf16.mxu0 0
      %2997 = vmatpush1.bf16.msra.mxu0 %v2946
      %2998 = vmatprep.subr.bf16.mxu0 0
      %2999 = vmatpush1.bf16.msra.mxu0 %v2947
      %3000 = vmatprep.subr.bf16.mxu0 0
      %3001 = vmatpush1.bf16.msra.mxu0 %v2948
      %3002 = vmatprep.subr.bf16.mxu0 0
      %3003 = vmatpush1.bf16.msra.mxu0 %v2949
      %3004 = vmatprep.subr.bf16.mxu0 0
      %3005 = vmatpush1.bf16.msra.mxu0 %v2950
      %3006 = vmatprep.subr.bf16.mxu0 0
      %3007 = vmatpush1.bf16.msra.mxu0 %v2951
      %3008 = vmatprep.subr.bf16.mxu0 0
      %3009 = vmatpush1.bf16.msra.mxu0 %v2952
      %3010 = vmatprep.subr.bf16.mxu0 0
      %3011 = vmatpush1.bf16.msra.mxu0 %v2953
      %3012 = vmatprep.subr.bf16.mxu0 0
      %3013 = vmatpush1.bf16.msra.mxu0 %v2954
      %3014 = vmatprep.subr.bf16.mxu0 0
      %3015 = vmatpush1.bf16.msra.mxu0 %v2955
      %3016 = vmatprep.subr.bf16.mxu0 0
      %3017 = vmatpush1.bf16.msra.mxu0 %v2956
      %3018 = vmatprep.subr.bf16.mxu0 0
      %3019 = vmatpush1.bf16.msra.mxu0 %v2957
      %3020 = vmatprep.subr.bf16.mxu0 0
      %3021 = vmatpush1.bf16.msra.mxu0 %v2958
      %3022 = vmatprep.subr.bf16.mxu0 0
      %3023 = vmatpush1.bf16.msra.mxu0 %v2959
      %3024 = vmatprep.mubr.bf16.mxu0 %v1782
      %3025 = vmatmul.mubr.bf16.gmra.mrb[0].mxu0 %v1781
      %v3026 = vpop.f32.mrb[0].mxu0
      %v3027 = vadd.f32 %v2658, %v3026
      %v3028 = vpop.f32.mrb[0].mxu0
      %v3029 = vpop.f32.mrb[0].mxu0
      %v3030 = vadd.f32 %v2661, %v3029
      %v3031 = vpop.f32.mrb[0].mxu0
      %3032 = vmatprep.mubr.bf16.mxu0 %v1785
      %3033 = vmatmul.mubr.bf16.gmra.mrb[0].mxu0 %v1784
      %v3034 = vpop.f32.mrb[0].mxu0
      %v3035 = vadd.f32 %v2666, %v3034
      %v3036 = vpop.f32.mrb[0].mxu0
      %v3037 = vpop.f32.mrb[0].mxu0
      %v3038 = vadd.f32 %v2669, %v3037
      %v3039 = vpop.f32.mrb[0].mxu0
      %3040 = vmatprep.mubr.bf16.mxu0 %v1788
      %3041 = vmatmul.mubr.bf16.gmra.mrb[0].mxu0 %v1787
      %v3042 = vpop.f32.mrb[0].mxu0
      %v3043 = vadd.f32 %v2674, %v3042
      %v3044 = vpop.f32.mrb[0].mxu0
      %v3045 = vpop.f32.mrb[0].mxu0
      %v3046 = vadd.f32 %v2677, %v3045
      %v3047 = vpop.f32.mrb[0].mxu0
      %3048 = vmatprep.mubr.bf16.mxu0 %v1791
      %3049 = vmatmul.mubr.bf16.gmra.mrb[0].mxu0 %v1790
      %v3050 = vpop.f32.mrb[0].mxu0
      %v3051 = vadd.f32 %v2682, %v3050
      %v3052 = vpop.f32.mrb[0].mxu0
      %v3053 = vpop.f32.mrb[0].mxu0
      %v3054 = vadd.f32 %v2685, %v3053
      %v3055 = vpop.f32.mrb[0].mxu0
      %3056 = vmatprep.mubr.bf16.mxu0 %v1794
      %3057 = vmatmul.mubr.bf16.gmra.mrb[0].mxu0 %v1793
      %v3058 = vpop.f32.mrb[0].mxu0
      %v3059 = vadd.f32 %v2690, %v3058
      %v3060 = vpop.f32.mrb[0].mxu0
      %v3061 = vpop.f32.mrb[0].mxu0
      %v3062 = vadd.f32 %v2693, %v3061
      %v3063 = vpop.f32.mrb[0].mxu0
      %3064 = vmatprep.mubr.bf16.mxu0 %v1797
      %3065 = vmatmul.mubr.bf16.gmra.mrb[0].mxu0 %v1796
      %v3066 = vpop.f32.mrb[0].mxu0
      %v3067 = vadd.f32 %v2698, %v3066
      %v3068 = vpop.f32.mrb[0].mxu0
      %v3069 = vpop.f32.mrb[0].mxu0
      %v3070 = vadd.f32 %v2701, %v3069
      %v3071 = vpop.f32.mrb[0].mxu0
      %3072 = vmatprep.mubr.bf16.mxu0 %v1800
      %3073 = vmatmul.mubr.bf16.gmra.mrb[0].mxu0 %v1799
      %v3074 = vpop.f32.mrb[0].mxu0
      %v3075 = vadd.f32 %v2706, %v3074
      %v3076 = vpop.f32.mrb[0].mxu0
      %v3077 = vpop.f32.mrb[0].mxu0
      %v3078 = vadd.f32 %v2709, %v3077
      %v3079 = vpop.f32.mrb[0].mxu0
      %3080 = vmatprep.mubr.bf16.mxu0 %v1803
      %3081 = vmatmul.mubr.bf16.gmra.mrb[0].mxu0 %v1802
      %v3082 = vpop.f32.mrb[0].mxu0
      %v3083 = vadd.f32 %v2714, %v3082
      %v3084 = vpop.f32.mrb[0].mxu0
      %v3085 = vpop.f32.mrb[0].mxu0
      %v3086 = vadd.f32 %v2717, %v3085
      %v3087 = vpop.f32.mrb[0].mxu0
      %3088 = vmatprep.mubr.bf16.mxu0 %v1806
      %3089 = vmatmul.mubr.bf16.gmra.mrb[0].mxu0 %v1805
      %v3090 = vpop.f32.mrb[0].mxu0
      %v3091 = vadd.f32 %v2722, %v3090
      %v3092 = vpop.f32.mrb[0].mxu0
      %v3093 = vpop.f32.mrb[0].mxu0
      %v3094 = vadd.f32 %v2725, %v3093
      %v3095 = vpop.f32.mrb[0].mxu0
      %3096 = vmatprep.mubr.bf16.mxu0 %v1809
      %3097 = vmatmul.mubr.bf16.gmra.mrb[0].mxu0 %v1808
      %v3098 = vpop.f32.mrb[0].mxu0
      %v3099 = vadd.f32 %v2730, %v3098
      %v3100 = vpop.f32.mrb[0].mxu0
      %v3101 = vpop.f32.mrb[0].mxu0
      %v3102 = vadd.f32 %v2733, %v3101
      %v3103 = vpop.f32.mrb[0].mxu0
      %3104 = vmatprep.mubr.bf16.mxu0 %v1812
      %3105 = vmatmul.mubr.bf16.gmra.mrb[0].mxu0 %v1811
      %v3106 = vpop.f32.mrb[0].mxu0
      %v3107 = vadd.f32 %v2738, %v3106
      %v3108 = vpop.f32.mrb[0].mxu0
      %v3109 = vpop.f32.mrb[0].mxu0
      %v3110 = vadd.f32 %v2741, %v3109
      %v3111 = vpop.f32.mrb[0].mxu0
      %3112 = vmatprep.mubr.bf16.mxu0 %v1815
      %3113 = vmatmul.mubr.bf16.gmra.mrb[0].mxu0 %v1814
      %v3114 = vpop.f32.mrb[0].mxu0
      %v3115 = vadd.f32 %v2746, %v3114
      %v3116 = vpop.f32.mrb[0].mxu0
      %v3117 = vpop.f32.mrb[0].mxu0
      %v3118 = vadd.f32 %v2749, %v3117
      %v3119 = vpop.f32.mrb[0].mxu0
      %3120 = vmatprep.mubr.bf16.mxu0 %v1818
      %3121 = vmatmul.mubr.bf16.gmra.mrb[0].mxu0 %v1817
      %v3122 = vpop.f32.mrb[0].mxu0
      %v3123 = vadd.f32 %v2754, %v3122
      %v3124 = vpop.f32.mrb[0].mxu0
      %v3125 = vpop.f32.mrb[0].mxu0
      %v3126 = vadd.f32 %v2757, %v3125
      %v3127 = vpop.f32.mrb[0].mxu0
      %3128 = vmatprep.mubr.bf16.mxu0 %v1821
      %3129 = vmatmul.mubr.bf16.gmra.mrb[0].mxu0 %v1820
      %v3130 = vpop.f32.mrb[0].mxu0
      %v3131 = vadd.f32 %v2762, %v3130
      %v3132 = vpop.f32.mrb[0].mxu0
      %v3133 = vpop.f32.mrb[0].mxu0
      %v3134 = vadd.f32 %v2765, %v3133
      %v3135 = vpop.f32.mrb[0].mxu0
      %3136 = vmatprep.mubr.bf16.mxu0 %v1824
      %3137 = vmatmul.mubr.bf16.gmra.mrb[0].mxu0 %v1823
      %v3138 = vpop.f32.mrb[0].mxu0
      %v3139 = vadd.f32 %v2770, %v3138
      %v3140 = vpop.f32.mrb[0].mxu0
      %v3141 = vpop.f32.mrb[0].mxu0
      %v3142 = vadd.f32 %v2773, %v3141
      %v3143 = vpop.f32.mrb[0].mxu0
      %3144 = vmatprep.mubr.bf16.mxu0 %v1827
      %3145 = vmatmul.mubr.bf16.gmra.mrb[0].mxu0 %v1826
      %v3146 = vpop.f32.mrb[0].mxu0
      %v3147 = vadd.f32 %v2778, %v3146
      %v3148 = vpop.f32.mrb[0].mxu0
      %v3149 = vpop.f32.mrb[0].mxu0
      %v3150 = vadd.f32 %v2781, %v3149
      %v3151 = vpop.f32.mrb[0].mxu0
      %3152 = vmatprep.mubr.bf16.mxu0 %v1830
      %3153 = vmatmul.mubr.bf16.gmra.mrb[0].mxu0 %v1829
      %v3154 = vpop.f32.mrb[0].mxu0
      %v3155 = vadd.f32 %v2786, %v3154
      %v3156 = vpop.f32.mrb[0].mxu0
      %v3157 = vpop.f32.mrb[0].mxu0
      %v3158 = vadd.f32 %v2789, %v3157
      %v3159 = vpop.f32.mrb[0].mxu0
      %3160 = vmatprep.mubr.bf16.mxu0 %v1833
      %3161 = vmatmul.mubr.bf16.gmra.mrb[0].mxu0 %v1832
      %v3162 = vpop.f32.mrb[0].mxu0
      %v3163 = vadd.f32 %v2794, %v3162
      %v3164 = vpop.f32.mrb[0].mxu0
      %v3165 = vpop.f32.mrb[0].mxu0
      %v3166 = vadd.f32 %v2797, %v3165
      %v3167 = vpop.f32.mrb[0].mxu0
      %3168 = vmatprep.mubr.bf16.mxu0 %v1836
      %3169 = vmatmul.mubr.bf16.gmra.mrb[0].mxu0 %v1835
      %v3170 = vpop.f32.mrb[0].mxu0
      %v3171 = vadd.f32 %v2802, %v3170
      %v3172 = vpop.f32.mrb[0].mxu0
      %v3173 = vpop.f32.mrb[0].mxu0
      %v3174 = vadd.f32 %v2805, %v3173
      %v3175 = vpop.f32.mrb[0].mxu0
      %3176 = vmatprep.mubr.bf16.mxu0 %v1839
      %3177 = vmatmul.mubr.bf16.gmra.mrb[0].mxu0 %v1838
      %v3178 = vpop.f32.mrb[0].mxu0
      %v3179 = vadd.f32 %v2810, %v3178
      %v3180 = vpop.f32.mrb[0].mxu0
      %v3181 = vpop.f32.mrb[0].mxu0
      %v3182 = vadd.f32 %v2813, %v3181
      %v3183 = vpop.f32.mrb[0].mxu0
      %3184 = vmatprep.mubr.bf16.mxu0 %v1842
      %3185 = vmatmul.mubr.bf16.gmra.mrb[0].mxu0 %v1841
      %v3186 = vpop.f32.mrb[0].mxu0
      %v3187 = vadd.f32 %v2818, %v3186
      %v3188 = vpop.f32.mrb[0].mxu0
      %v3189 = vpop.f32.mrb[0].mxu0
      %v3190 = vadd.f32 %v2821, %v3189
      %v3191 = vpop.f32.mrb[0].mxu0
      %3192 = vmatprep.mubr.bf16.mxu0 %v1845
      %3193 = vmatmul.mubr.bf16.gmra.mrb[0].mxu0 %v1844
      %v3194 = vpop.f32.mrb[0].mxu0
      %v3195 = vadd.f32 %v2826, %v3194
      %v3196 = vpop.f32.mrb[0].mxu0
      %v3197 = vpop.f32.mrb[0].mxu0
      %v3198 = vadd.f32 %v2829, %v3197
      %v3199 = vpop.f32.mrb[0].mxu0
      %3200 = vmatprep.mubr.bf16.mxu0 %v1848
      %3201 = vmatmul.mubr.bf16.gmra.mrb[0].mxu0 %v1847
      %v3202 = vpop.f32.mrb[0].mxu0
      %v3203 = vadd.f32 %v2834, %v3202
      %v3204 = vpop.f32.mrb[0].mxu0
      %v3205 = vpop.f32.mrb[0].mxu0
      %v3206 = vadd.f32 %v2837, %v3205
      %v3207 = vpop.f32.mrb[0].mxu0
      %3208 = vmatprep.mubr.bf16.mxu0 %v1851
      %3209 = vmatmul.mubr.bf16.gmra.mrb[0].mxu0 %v1850
      %v3210 = vpop.f32.mrb[0].mxu0
      %v3211 = vadd.f32 %v2842, %v3210
      %v3212 = vpop.f32.mrb[0].mxu0
      %v3213 = vpop.f32.mrb[0].mxu0
      %v3214 = vadd.f32 %v2845, %v3213
      %v3215 = vpop.f32.mrb[0].mxu0
      %3216 = vdwg.mxu0
      %3217 = vmatprep.subr.bf16.mxu0 0
      %3218 = vmatpush1.bf16.msra.mxu0 %v2960
      %3219 = vmatprep.subr.bf16.mxu0 0
      %3220 = vmatpush1.bf16.msra.mxu0 %v2961
      %3221 = vmatprep.subr.bf16.mxu0 0
      %3222 = vmatpush1.bf16.msra.mxu0 %v2962
      %3223 = vmatprep.subr.bf16.mxu0 0
      %3224 = vmatpush1.bf16.msra.mxu0 %v2963
      %3225 = vmatprep.subr.bf16.mxu0 0
      %3226 = vmatpush1.bf16.msra.mxu0 %v2964
      %3227 = vmatprep.subr.bf16.mxu0 0
      %3228 = vmatpush1.bf16.msra.mxu0 %v2965
      %3229 = vmatprep.subr.bf16.mxu0 0
      %3230 = vmatpush1.bf16.msra.mxu0 %v2966
      %3231 = vmatprep.subr.bf16.mxu0 0
      %3232 = vmatpush1.bf16.msra.mxu0 %v2967
      %3233 = vmatprep.subr.bf16.mxu0 0
      %3234 = vmatpush1.bf16.msra.mxu0 0
      %3235 = vmatprep.subr.bf16.mxu0 0
      %3236 = vmatpush1.bf16.msra.mxu0 0
      %3237 = vmatprep.subr.bf16.mxu0 0
      %3238 = vmatpush1.bf16.msra.mxu0 0
      %3239 = vmatprep.subr.bf16.mxu0 0
      %3240 = vmatpush1.bf16.msra.mxu0 0
      %3241 = vmatprep.subr.bf16.mxu0 0
      %3242 = vmatpush1.bf16.msra.mxu0 0
      %3243 = vmatprep.subr.bf16.mxu0 0
      %3244 = vmatpush1.bf16.msra.mxu0 0
      %3245 = vmatprep.subr.bf16.mxu0 0
      %3246 = vmatpush1.bf16.msra.mxu0 0
      %3247 = vmatprep.subr.bf16.mxu0 0
      %3248 = vmatpush1.bf16.msra.mxu0 0
      %3249 = vmatprep.mubr.bf16.mxu0 0
      %3250 = vmatmul.mubr.bf16.gmra.mrb[0].mxu0 %v1783
      %v3251 = vpop.f32.mrb[0].mxu0
      %v3252 = vadd.f32 %v3027, %v3251
      %v3253 = vpop.f32.mrb[0].mxu0
      %v3254 = vpop.f32.mrb[0].mxu0
      %v3255 = vadd.f32 %v3030, %v3254
      %v3256 = vpop.f32.mrb[0].mxu0
      %3257 = vmatprep.mubr.bf16.mxu0 0
      %3258 = vmatmul.mubr.bf16.gmra.mrb[0].mxu0 %v1786
      %v3259 = vpop.f32.mrb[0].mxu0
      %v3260 = vadd.f32 %v3035, %v3259
      %v3261 = vpop.f32.mrb[0].mxu0
      %v3262 = vpop.f32.mrb[0].mxu0
      %v3263 = vadd.f32 %v3038, %v3262
      %v3264 = vpop.f32.mrb[0].mxu0
      %3265 = vmatprep.mubr.bf16.mxu0 0
      %3266 = vmatmul.mubr.bf16.gmra.mrb[0].mxu0 %v1789
      %v3267 = vpop.f32.mrb[0].mxu0
      %v3268 = vadd.f32 %v3043, %v3267
      %v3269 = vpop.f32.mrb[0].mxu0
      %v3270 = vpop.f32.mrb[0].mxu0
      %v3271 = vadd.f32 %v3046, %v3270
      %v3272 = vpop.f32.mrb[0].mxu0
      %3273 = vmatprep.mubr.bf16.mxu0 0
      %3274 = vmatmul.mubr.bf16.gmra.mrb[0].mxu0 %v1792
      %v3275 = vpop.f32.mrb[0].mxu0
      %v3276 = vadd.f32 %v3051, %v3275
      %v3277 = vpop.f32.mrb[0].mxu0
      %v3278 = vpop.f32.mrb[0].mxu0
      %v3279 = vadd.f32 %v3054, %v3278
      %v3280 = vpop.f32.mrb[0].mxu0
      %3281 = vmatprep.mubr.bf16.mxu0 0
      %3282 = vmatmul.mubr.bf16.gmra.mrb[0].mxu0 %v1795
      %v3283 = vpop.f32.mrb[0].mxu0
      %v3284 = vadd.f32 %v3059, %v3283
      %v3285 = vpop.f32.mrb[0].mxu0
      %v3286 = vpop.f32.mrb[0].mxu0
      %v3287 = vadd.f32 %v3062, %v3286
      %v3288 = vpop.f32.mrb[0].mxu0
      %3289 = vmatprep.mubr.bf16.mxu0 0
      %3290 = vmatmul.mubr.bf16.gmra.mrb[0].mxu0 %v1798
      %v3291 = vpop.f32.mrb[0].mxu0
      %v3292 = vadd.f32 %v3067, %v3291
      %v3293 = vpop.f32.mrb[0].mxu0
      %v3294 = vpop.f32.mrb[0].mxu0
      %v3295 = vadd.f32 %v3070, %v3294
      %v3296 = vpop.f32.mrb[0].mxu0
      %3297 = vmatprep.mubr.bf16.mxu0 0
      %3298 = vmatmul.mubr.bf16.gmra.mrb[0].mxu0 %v1801
      %v3299 = vpop.f32.mrb[0].mxu0
      %v3300 = vadd.f32 %v3075, %v3299
      %v3301 = vpop.f32.mrb[0].mxu0
      %v3302 = vpop.f32.mrb[0].mxu0
      %v3303 = vadd.f32 %v3078, %v3302
      %v3304 = vpop.f32.mrb[0].mxu0
      %3305 = vmatprep.mubr.bf16.mxu0 0
      %3306 = vmatmul.mubr.bf16.gmra.mrb[0].mxu0 %v1804
      %v3307 = vpop.f32.mrb[0].mxu0
      %v3308 = vadd.f32 %v3083, %v3307
      %v3309 = vpop.f32.mrb[0].mxu0
      %v3310 = vpop.f32.mrb[0].mxu0
      %v3311 = vadd.f32 %v3086, %v3310
      %v3312 = vpop.f32.mrb[0].mxu0
      %3313 = vmatprep.mubr.bf16.mxu0 0
      %3314 = vmatmul.mubr.bf16.gmra.mrb[0].mxu0 %v1807
      %v3315 = vpop.f32.mrb[0].mxu0
      %v3316 = vadd.f32 %v3091, %v3315
      %v3317 = vpop.f32.mrb[0].mxu0
      %v3318 = vpop.f32.mrb[0].mxu0
      %v3319 = vadd.f32 %v3094, %v3318
      %v3320 = vpop.f32.mrb[0].mxu0
      %3321 = vmatprep.mubr.bf16.mxu0 0
      %3322 = vmatmul.mubr.bf16.gmra.mrb[0].mxu0 %v1810
      %v3323 = vpop.f32.mrb[0].mxu0
      %v3324 = vadd.f32 %v3099, %v3323
      %v3325 = vpop.f32.mrb[0].mxu0
      %v3326 = vpop.f32.mrb[0].mxu0
      %v3327 = vadd.f32 %v3102, %v3326
      %v3328 = vpop.f32.mrb[0].mxu0
      %3329 = vmatprep.mubr.bf16.mxu0 0
      %3330 = vmatmul.mubr.bf16.gmra.mrb[0].mxu0 %v1813
      %v3331 = vpop.f32.mrb[0].mxu0
      %v3332 = vadd.f32 %v3107, %v3331
      %v3333 = vpop.f32.mrb[0].mxu0
      %v3334 = vpop.f32.mrb[0].mxu0
      %v3335 = vadd.f32 %v3110, %v3334
      %v3336 = vpop.f32.mrb[0].mxu0
      %3337 = vmatprep.mubr.bf16.mxu0 0
      %3338 = vmatmul.mubr.bf16.gmra.mrb[0].mxu0 %v1816
      %v3339 = vpop.f32.mrb[0].mxu0
      %v3340 = vadd.f32 %v3115, %v3339
      %v3341 = vpop.f32.mrb[0].mxu0
      %v3342 = vpop.f32.mrb[0].mxu0
      %v3343 = vadd.f32 %v3118, %v3342
      %v3344 = vpop.f32.mrb[0].mxu0
      %3345 = vmatprep.mubr.bf16.mxu0 0
      %3346 = vmatmul.mubr.bf16.gmra.mrb[0].mxu0 %v1819
      %v3347 = vpop.f32.mrb[0].mxu0
      %v3348 = vadd.f32 %v3123, %v3347
      %v3349 = vpop.f32.mrb[0].mxu0
      %v3350 = vpop.f32.mrb[0].mxu0
      %v3351 = vadd.f32 %v3126, %v3350
      %v3352 = vpop.f32.mrb[0].mxu0
      %3353 = vmatprep.mubr.bf16.mxu0 0
      %3354 = vmatmul.mubr.bf16.gmra.mrb[0].mxu0 %v1822
      %v3355 = vpop.f32.mrb[0].mxu0
      %v3356 = vadd.f32 %v3131, %v3355
      %v3357 = vpop.f32.mrb[0].mxu0
      %v3358 = vpop.f32.mrb[0].mxu0
      %v3359 = vadd.f32 %v3134, %v3358
      %v3360 = vpop.f32.mrb[0].mxu0
      %3361 = vmatprep.mubr.bf16.mxu0 0
      %3362 = vmatmul.mubr.bf16.gmra.mrb[0].mxu0 %v1825
      %v3363 = vpop.f32.mrb[0].mxu0
      %v3364 = vadd.f32 %v3139, %v3363
      %v3365 = vpop.f32.mrb[0].mxu0
      %v3366 = vpop.f32.mrb[0].mxu0
      %v3367 = vadd.f32 %v3142, %v3366
      %v3368 = vpop.f32.mrb[0].mxu0
      %3369 = vmatprep.mubr.bf16.mxu0 0
      %3370 = vmatmul.mubr.bf16.gmra.mrb[0].mxu0 %v1828
      %v3371 = vpop.f32.mrb[0].mxu0
      %v3372 = vadd.f32 %v3147, %v3371
      %v3373 = vpop.f32.mrb[0].mxu0
      %v3374 = vpop.f32.mrb[0].mxu0
      %v3375 = vadd.f32 %v3150, %v3374
      %v3376 = vpop.f32.mrb[0].mxu0
      %3377 = vmatprep.mubr.bf16.mxu0 0
      %3378 = vmatmul.mubr.bf16.gmra.mrb[0].mxu0 %v1831
      %v3379 = vpop.f32.mrb[0].mxu0
      %v3380 = vadd.f32 %v3155, %v3379
      %v3381 = vpop.f32.mrb[0].mxu0
      %v3382 = vpop.f32.mrb[0].mxu0
      %v3383 = vadd.f32 %v3158, %v3382
      %v3384 = vpop.f32.mrb[0].mxu0
      %3385 = vmatprep.mubr.bf16.mxu0 0
      %3386 = vmatmul.mubr.bf16.gmra.mrb[0].mxu0 %v1834
      %v3387 = vpop.f32.mrb[0].mxu0
      %v3388 = vadd.f32 %v3163, %v3387
      %v3389 = vpop.f32.mrb[0].mxu0
      %v3390 = vpop.f32.mrb[0].mxu0
      %v3391 = vadd.f32 %v3166, %v3390
      %v3392 = vpop.f32.mrb[0].mxu0
      %3393 = vmatprep.mubr.bf16.mxu0 0
      %3394 = vmatmul.mubr.bf16.gmra.mrb[0].mxu0 %v1837
      %v3395 = vpop.f32.mrb[0].mxu0
      %v3396 = vadd.f32 %v3171, %v3395
      %v3397 = vpop.f32.mrb[0].mxu0
      %v3398 = vpop.f32.mrb[0].mxu0
      %v3399 = vadd.f32 %v3174, %v3398
      %v3400 = vpop.f32.mrb[0].mxu0
      %3401 = vmatprep.mubr.bf16.mxu0 0
      %3402 = vmatmul.mubr.bf16.gmra.mrb[0].mxu0 %v1840
      %v3403 = vpop.f32.mrb[0].mxu0
      %v3404 = vadd.f32 %v3179, %v3403
      %v3405 = vpop.f32.mrb[0].mxu0
      %v3406 = vpop.f32.mrb[0].mxu0
      %v3407 = vadd.f32 %v3182, %v3406
      %v3408 = vpop.f32.mrb[0].mxu0
      %3409 = vmatprep.mubr.bf16.mxu0 0
      %3410 = vmatmul.mubr.bf16.gmra.mrb[0].mxu0 %v1843
      %v3411 = vpop.f32.mrb[0].mxu0
      %v3412 = vadd.f32 %v3187, %v3411
      %v3413 = vpop.f32.mrb[0].mxu0
      %v3414 = vpop.f32.mrb[0].mxu0
      %v3415 = vadd.f32 %v3190, %v3414
      %v3416 = vpop.f32.mrb[0].mxu0
      %3417 = vmatprep.mubr.bf16.mxu0 0
      %3418 = vmatmul.mubr.bf16.gmra.mrb[0].mxu0 %v1846
      %v3419 = vpop.f32.mrb[0].mxu0
      %v3420 = vadd.f32 %v3195, %v3419
      %v3421 = vpop.f32.mrb[0].mxu0
      %v3422 = vpop.f32.mrb[0].mxu0
      %v3423 = vadd.f32 %v3198, %v3422
      %v3424 = vpop.f32.mrb[0].mxu0
      %3425 = vmatprep.mubr.bf16.mxu0 0
      %3426 = vmatmul.mubr.bf16.gmra.mrb[0].mxu0 %v1849
      %v3427 = vpop.f32.mrb[0].mxu0
      %v3428 = vadd.f32 %v3203, %v3427
      %v3429 = vpop.f32.mrb[0].mxu0
      %v3430 = vpop.f32.mrb[0].mxu0
      %v3431 = vadd.f32 %v3206, %v3430
      %v3432 = vpop.f32.mrb[0].mxu0
      %3433 = vmatprep.mubr.bf16.mxu0 0
      %3434 = vmatmul.mubr.bf16.gmra.mrb[0].mxu0 %v1852
      %v3435 = vpop.f32.mrb[0].mxu0
      %v3436 = vadd.f32 %v3211, %v3435
      %v3437 = vpop.f32.mrb[0].mxu0
      %v3438 = vpop.f32.mrb[0].mxu0
      %v3439 = vadd.f32 %v3214, %v3438
      %v3440 = vpop.f32.mrb[0].mxu0
      %3441 = vdwg.mxu0
      %v3442 = vld [vmem:[#allocation2 + $0x48] sm:$0xff]
      %v3443 = vld [vmem:[#allocation2 + $0x50] sm:$0xff]
      %v3444 = vld [vmem:[#allocation2 + $0x58] sm:$0xff]
      %v3445 = vld [vmem:[#allocation2 + $0x60] sm:$0xff]
      %v3446 = vld [vmem:[#allocation2 + $0x68] sm:$0xff]
      %v3447 = vld [vmem:[#allocation2 + $0x70] sm:$0xff]
      %v3448 = vld [vmem:[#allocation2 + $0x78] sm:$0xff]
      %v3449 = vld [vmem:[#allocation2 + $0x80] sm:$0xff]
      %v3450 = vld [vmem:[#allocation2 + $0x88] sm:$0xff]
      %v3451 = vld [vmem:[#allocation2 + $0x90] sm:$0xff]
      %v3452 = vld [vmem:[#allocation2 + $0x98] sm:$0xff]
      %v3453 = vld [vmem:[#allocation2 + $0xa0] sm:$0xff]
      %v3454 = vld [vmem:[#allocation2 + $0xa8] sm:$0xff]
      %v3455 = vld [vmem:[#allocation2 + $0xb0] sm:$0xff]
      %v3456 = vld [vmem:[#allocation2 + $0xb8] sm:$0xff]
      %v3457 = vld [vmem:[#allocation2 + $0xc0] sm:$0xff]
      %v3458 = vld [vmem:[#allocation2 + $0xc8] sm:$0xff]
      %v3459 = vld [vmem:[#allocation2 + $0xd0] sm:$0xff]
      %v3460 = vld [vmem:[#allocation2 + $0xd8] sm:$0xff]
      %v3461 = vld [vmem:[#allocation2 + $0xe0] sm:$0xff]
      %v3462 = vld [vmem:[#allocation2 + $0xe8] sm:$0xff]
      %v3463 = vld [vmem:[#allocation2 + $0xf0] sm:$0xff]
      %v3464 = vld [vmem:[#allocation2 + $0xf8] sm:$0xff]
      %v3465 = vld [vmem:[#allocation2 + $0x100] sm:$0xff]
      %v3466 = vld [vmem:[#allocation2 + $0x108] sm:$0xff]
      %v3467 = vld [vmem:[#allocation2 + $0x110] sm:$0xff]
      %v3468 = vld [vmem:[#allocation2 + $0x118] sm:$0xff]
      %v3469 = vld [vmem:[#allocation2 + $0x120] sm:$0xff]
      %v3470 = vld [vmem:[#allocation2 + $0x128] sm:$0xff]
      %v3471 = vld [vmem:[#allocation2 + $0x130] sm:$0xff]
      %v3472 = vld [vmem:[#allocation2 + $0x138] sm:$0xff]
      %v3473 = vld [vmem:[#allocation2 + $0x140] sm:$0xff]
      %v3474 = vld [vmem:[#allocation2 + $0x148] sm:$0xff]
      %v3475 = vld [vmem:[#allocation2 + $0x150] sm:$0xff]
      %v3476 = vld [vmem:[#allocation2 + $0x158] sm:$0xff]
      %v3477 = vld [vmem:[#allocation2 + $0x160] sm:$0xff]
      %v3478 = vld [vmem:[#allocation2 + $0x168] sm:$0xff]
      %v3479 = vld [vmem:[#allocation2 + $0x170] sm:$0xff]
      %v3480 = vld [vmem:[#allocation2 + $0x178] sm:$0xff]
      %v3481 = vld [vmem:[#allocation2 + $0x180] sm:$0xff]
      %v3482 = vld [vmem:[#allocation2 + $0x188] sm:$0xff]
      %v3483 = vld [vmem:[#allocation2 + $0x190] sm:$0xff]
      %v3484 = vld [vmem:[#allocation2 + $0x198] sm:$0xff]
      %v3485 = vld [vmem:[#allocation2 + $0x1a0] sm:$0xff]
      %v3486 = vld [vmem:[#allocation2 + $0x1a8] sm:$0xff]
      %v3487 = vld [vmem:[#allocation2 + $0x1b0] sm:$0xff]
      %v3488 = vld [vmem:[#allocation2 + $0x1b8] sm:$0xff]
      %v3489 = vld [vmem:[#allocation2 + $0x1c0] sm:$0xff]
      %v3490 = vld [vmem:[#allocation2 + $0x1c8] sm:$0xff]
      %v3491 = vld [vmem:[#allocation2 + $0x1d0] sm:$0xff]
      %v3492 = vld [vmem:[#allocation2 + $0x1d8] sm:$0xff]
      %v3493 = vld [vmem:[#allocation2 + $0x1e0] sm:$0xff]
      %v3494 = vld [vmem:[#allocation2 + $0x1e8] sm:$0xff]
      %v3495 = vld [vmem:[#allocation2 + $0x1f0] sm:$0xff]
      %v3496 = vld [vmem:[#allocation2 + $0x1f8] sm:$0xff]
      %v3497 = vld [vmem:[#allocation2 + $0x200] sm:$0xff]
      %v3498 = vld [vmem:[#allocation2 + $0x208] sm:$0xff]
      %v3499 = vld [vmem:[#allocation2 + $0x210] sm:$0xff]
      %v3500 = vld [vmem:[#allocation2 + $0x218] sm:$0xff]
      %v3501 = vld [vmem:[#allocation2 + $0x220] sm:$0xff]
      %v3502 = vld [vmem:[#allocation2 + $0x228] sm:$0xff]
      %v3503 = vld [vmem:[#allocation2 + $0x230] sm:$0xff]
      %v3504 = vld [vmem:[#allocation2 + $0x238] sm:$0xff]
      %v3505 = vld [vmem:[#allocation2 + $0x240] sm:$0xff]
      %v3506 = vld [vmem:[#allocation2 + $0x248] sm:$0xff]
      %v3507 = vld [vmem:[#allocation2 + $0x250] sm:$0xff]
      %v3508 = vld [vmem:[#allocation2 + $0x258] sm:$0xff]
      %v3509 = vld [vmem:[#allocation2 + $0x260] sm:$0xff]
      %v3510 = vld [vmem:[#allocation2 + $0x268] sm:$0xff]
      %v3511 = vld [vmem:[#allocation2 + $0x270] sm:$0xff]
      %v3512 = vld [vmem:[#allocation2 + $0x278] sm:$0xff]
      %v3513 = vld [vmem:[#allocation2 + $0x280] sm:$0xff]
      %s3514 = scalar_lea.vmem %s3, 384
      %v3515 = vld [vmem:[%s3514] sm:$0xf]
      %v3516 = vld [vmem:[%s3514 + $0x4] sm:$0xf]
      %v3517 = vld [vmem:[%s3514 + $0x8] sm:$0xf]
      %v3518 = vld [vmem:[%s3514 + $0xc] sm:$0xf]
      %v3519 = vld [vmem:[%s3514 + $0x10] sm:$0xf]
      %v3520 = vld [vmem:[%s3514 + $0x14] sm:$0xf]
      %v3521 = vld [vmem:[%s3514 + $0x18] sm:$0xf]
      %v3522 = vld [vmem:[%s3514 + $0x1c] sm:$0xf]
      %v3523 = vld [vmem:[%s3514 + $0x20] sm:$0xf]
      %v3524 = vld [vmem:[%s3514 + $0x24] sm:$0xf]
      %v3525 = vld [vmem:[%s3514 + $0x28] sm:$0xf]
      %v3526 = vld [vmem:[%s3514 + $0x2c] sm:$0xf]
      %v3527 = vld [vmem:[%s3514 + $0x30] sm:$0xf]
      %v3528 = vld [vmem:[%s3514 + $0x34] sm:$0xf]
      %v3529 = vld [vmem:[%s3514 + $0x38] sm:$0xf]
      %v3530 = vld [vmem:[%s3514 + $0x3c] sm:$0xf]
      %v3531 = vld [vmem:[%s3514 + $0x40] sm:$0xf]
      %v3532 = vld [vmem:[%s3514 + $0x44] sm:$0xf]
      %v3533 = vld [vmem:[%s3514 + $0x48] sm:$0xf]
      %v3534 = vld [vmem:[%s3514 + $0x4c] sm:$0xf]
      %v3535 = vld [vmem:[%s3514 + $0x50] sm:$0xf]
      %v3536 = vld [vmem:[%s3514 + $0x54] sm:$0xf]
      %v3537 = vld [vmem:[%s3514 + $0x58] sm:$0xf]
      %v3538 = vld [vmem:[%s3514 + $0x5c] sm:$0xf]
      %v3539 = vld [vmem:[%s3514 + $0x60] sm:$0xf]
      %v3540 = vld [vmem:[%s3514 + $0x64] sm:$0xf]
      %v3541 = vld [vmem:[%s3514 + $0x68] sm:$0xf]
      %v3542 = vld [vmem:[%s3514 + $0x6c] sm:$0xf]
      %v3543 = vld [vmem:[%s3514 + $0x70] sm:$0xf]
      %v3544 = vld [vmem:[%s3514 + $0x74] sm:$0xf]
      %v3545 = vld [vmem:[%s3514 + $0x78] sm:$0xf]
      %v3546 = vld [vmem:[%s3514 + $0x7c] sm:$0xf]
      %v3547 = vld [vmem:[%s3514 + $0x80] sm:$0xf]
      %v3548 = vld [vmem:[%s3514 + $0x84] sm:$0xf]
      %v3549 = vld [vmem:[%s3514 + $0x88] sm:$0xf]
      %v3550 = vld [vmem:[%s3514 + $0x8c] sm:$0xf]
      %v3551 = vld [vmem:[%s3514 + $0x90] sm:$0xf]
      %v3552 = vld [vmem:[%s3514 + $0x94] sm:$0xf]
      %v3553 = vld [vmem:[%s3514 + $0x98] sm:$0xf]
      %v3554 = vld [vmem:[%s3514 + $0x9c] sm:$0xf]
      %v3555 = vld [vmem:[%s3514 + $0xa0] sm:$0xf]
      %v3556 = vld [vmem:[%s3514 + $0xa4] sm:$0xf]
      %v3557 = vld [vmem:[%s3514 + $0xa8] sm:$0xf]
      %v3558 = vld [vmem:[%s3514 + $0xac] sm:$0xf]
      %v3559 = vld [vmem:[%s3514 + $0xb0] sm:$0xf]
      %v3560 = vld [vmem:[%s3514 + $0xb4] sm:$0xf]
      %v3561 = vld [vmem:[%s3514 + $0xb8] sm:$0xf]
      %v3562 = vld [vmem:[%s3514 + $0xbc] sm:$0xf]
      %v3611 = vunpack.c.l.b16 %v3515
      %v3612 = vunpack.c.l.b16 %v3516
      %v3613 = vunpack.c.l.b16 %v3517
      %v3614 = vunpack.c.l.b16 %v3518
      %v3615 = vunpack.c.l.b16 %v3519
      %v3616 = vunpack.c.l.b16 %v3520
      %v3617 = vunpack.c.l.b16 %v3521
      %v3618 = vunpack.c.l.b16 %v3522
      %v3619 = vunpack.c.l.b16 %v3523
      %v3620 = vunpack.c.l.b16 %v3524
      %v3621 = vunpack.c.l.b16 %v3525
      %v3622 = vunpack.c.l.b16 %v3526
      %v3623 = vunpack.c.l.b16 %v3527
      %v3624 = vunpack.c.l.b16 %v3528
      %v3625 = vunpack.c.l.b16 %v3529
      %v3626 = vunpack.c.l.b16 %v3530
      %v3627 = vunpack.c.l.b16 %v3531
      %v3628 = vunpack.c.l.b16 %v3532
      %v3629 = vunpack.c.l.b16 %v3533
      %v3630 = vunpack.c.l.b16 %v3534
      %v3631 = vunpack.c.l.b16 %v3535
      %v3632 = vunpack.c.l.b16 %v3536
      %v3633 = vunpack.c.l.b16 %v3537
      %v3634 = vunpack.c.l.b16 %v3538
      %v3635 = vunpack.c.l.b16 %v3539
      %v3636 = vunpack.c.l.b16 %v3540
      %v3637 = vunpack.c.l.b16 %v3541
      %v3638 = vunpack.c.l.b16 %v3542
      %v3639 = vunpack.c.l.b16 %v3543
      %v3640 = vunpack.c.l.b16 %v3544
      %v3641 = vunpack.c.l.b16 %v3545
      %v3642 = vunpack.c.l.b16 %v3546
      %v3643 = vunpack.c.l.b16 %v3547
      %v3644 = vunpack.c.l.b16 %v3548
      %v3645 = vunpack.c.l.b16 %v3549
      %v3646 = vunpack.c.l.b16 %v3550
      %v3647 = vunpack.c.l.b16 %v3551
      %v3648 = vunpack.c.l.b16 %v3552
      %v3649 = vunpack.c.l.b16 %v3553
      %v3650 = vunpack.c.l.b16 %v3554
      %v3651 = vunpack.c.l.b16 %v3555
      %v3652 = vunpack.c.l.b16 %v3556
      %v3653 = vunpack.c.l.b16 %v3557
      %v3654 = vunpack.c.l.b16 %v3558
      %v3655 = vunpack.c.l.b16 %v3559
      %v3656 = vunpack.c.l.b16 %v3560
      %v3657 = vunpack.c.l.b16 %v3561
      %v3658 = vunpack.c.l.b16 %v3562
      %v3659 = vpack.c.b16 %v3612, %v3611
      %v3660 = vpack.c.b16 %v3614, %v3613
      %v3661 = vpack.c.b16 %v3616, %v3615
      %v3662 = vpack.c.b16 %v3618, %v3617
      %v3663 = vpack.c.b16 %v3620, %v3619
      %v3664 = vpack.c.b16 %v3622, %v3621
      %v3665 = vpack.c.b16 %v3624, %v3623
      %v3666 = vpack.c.b16 %v3626, %v3625
      %v3667 = vpack.c.b16 %v3628, %v3627
      %v3668 = vpack.c.b16 %v3630, %v3629
      %v3669 = vpack.c.b16 %v3632, %v3631
      %v3670 = vpack.c.b16 %v3634, %v3633
      %v3671 = vpack.c.b16 %v3636, %v3635
      %v3672 = vpack.c.b16 %v3638, %v3637
      %v3673 = vpack.c.b16 %v3640, %v3639
      %v3674 = vpack.c.b16 %v3642, %v3641
      %v3675 = vpack.c.b16 %v3644, %v3643
      %v3676 = vpack.c.b16 %v3646, %v3645
      %v3677 = vpack.c.b16 %v3648, %v3647
      %v3678 = vpack.c.b16 %v3650, %v3649
      %v3679 = vpack.c.b16 %v3652, %v3651
      %v3680 = vpack.c.b16 %v3654, %v3653
      %v3681 = vpack.c.b16 %v3656, %v3655
      %v3682 = vpack.c.b16 %v3658, %v3657
      %3707 = vmatprep.subr.bf16.mxu0 0
      %3708 = vmatpush1.bf16.msra.mxu0 %v3659
      %3709 = vmatprep.subr.bf16.mxu0 0
      %3710 = vmatpush1.bf16.msra.mxu0 %v3660
      %3711 = vmatprep.subr.bf16.mxu0 0
      %3712 = vmatpush1.bf16.msra.mxu0 %v3661
      %3713 = vmatprep.subr.bf16.mxu0 0
      %3714 = vmatpush1.bf16.msra.mxu0 %v3662
      %3715 = vmatprep.subr.bf16.mxu0 0
      %3716 = vmatpush1.bf16.msra.mxu0 %v3663
      %3717 = vmatprep.subr.bf16.mxu0 0
      %3718 = vmatpush1.bf16.msra.mxu0 %v3664
      %3719 = vmatprep.subr.bf16.mxu0 0
      %3720 = vmatpush1.bf16.msra.mxu0 %v3665
      %3721 = vmatprep.subr.bf16.mxu0 0
      %3722 = vmatpush1.bf16.msra.mxu0 %v3666
      %3723 = vmatprep.subr.bf16.mxu0 0
      %3724 = vmatpush1.bf16.msra.mxu0 %v3667
      %3725 = vmatprep.subr.bf16.mxu0 0
      %3726 = vmatpush1.bf16.msra.mxu0 %v3668
      %3727 = vmatprep.subr.bf16.mxu0 0
      %3728 = vmatpush1.bf16.msra.mxu0 %v3669
      %3729 = vmatprep.subr.bf16.mxu0 0
      %3730 = vmatpush1.bf16.msra.mxu0 %v3670
      %3731 = vmatprep.subr.bf16.mxu0 0
      %3732 = vmatpush1.bf16.msra.mxu0 %v3671
      %3733 = vmatprep.subr.bf16.mxu0 0
      %3734 = vmatpush1.bf16.msra.mxu0 %v3672
      %3735 = vmatprep.subr.bf16.mxu0 0
      %3736 = vmatpush1.bf16.msra.mxu0 %v3673
      %3737 = vmatprep.subr.bf16.mxu0 0
      %3738 = vmatpush1.bf16.msra.mxu0 %v3674
      %3739 = vmatprep.mubr.bf16.mxu0 %v3443
      %3740 = vmatmul.mubr.bf16.gmra.mrb[0].mxu0 %v3442
      %v3741 = vpop.f32.mrb[0].mxu0
      %v3742 = vadd.f32 0.0, %v3741
      %v3743 = vpop.f32.mrb[0].mxu0
      %v3744 = vpop.f32.mrb[0].mxu0
      %v3745 = vadd.f32 0.0, %v3744
      %v3746 = vpop.f32.mrb[0].mxu0
      %3747 = vmatprep.mubr.bf16.mxu0 %v3446
      %3748 = vmatmul.mubr.bf16.gmra.mrb[0].mxu0 %v3445
      %v3749 = vpop.f32.mrb[0].mxu0
      %v3750 = vadd.f32 0.0, %v3749
      %v3751 = vpop.f32.mrb[0].mxu0
      %v3752 = vpop.f32.mrb[0].mxu0
      %v3753 = vadd.f32 0.0, %v3752
      %v3754 = vpop.f32.mrb[0].mxu0
      %3755 = vmatprep.mubr.bf16.mxu0 %v3449
      %3756 = vmatmul.mubr.bf16.gmra.mrb[0].mxu0 %v3448
      %v3757 = vpop.f32.mrb[0].mxu0
      %v3758 = vadd.f32 0.0, %v3757
      %v3759 = vpop.f32.mrb[0].mxu0
      %v3760 = vpop.f32.mrb[0].mxu0
      %v3761 = vadd.f32 0.0, %v3760
      %v3762 = vpop.f32.mrb[0].mxu0
      %3763 = vmatprep.mubr.bf16.mxu0 %v3452
      %3764 = vmatmul.mubr.bf16.gmra.mrb[0].mxu0 %v3451
      %v3765 = vpop.f32.mrb[0].mxu0
      %v3766 = vadd.f32 0.0, %v3765
      %v3767 = vpop.f32.mrb[0].mxu0
      %v3768 = vpop.f32.mrb[0].mxu0
      %v3769 = vadd.f32 0.0, %v3768
      %v3770 = vpop.f32.mrb[0].mxu0
      %3771 = vmatprep.mubr.bf16.mxu0 %v3455
      %3772 = vmatmul.mubr.bf16.gmra.mrb[0].mxu0 %v3454
      %v3773 = vpop.f32.mrb[0].mxu0
      %v3774 = vadd.f32 0.0, %v3773
      %v3775 = vpop.f32.mrb[0].mxu0
      %v3776 = vpop.f32.mrb[0].mxu0
      %v3777 = vadd.f32 0.0, %v3776
      %v3778 = vpop.f32.mrb[0].mxu0
      %3779 = vmatprep.mubr.bf16.mxu0 %v3458
      %3780 = vmatmul.mubr.bf16.gmra.mrb[0].mxu0 %v3457
      %v3781 = vpop.f32.mrb[0].mxu0
      %v3782 = vadd.f32 0.0, %v3781
      %v3783 = vpop.f32.mrb[0].mxu0
      %v3784 = vpop.f32.mrb[0].mxu0
      %v3785 = vadd.f32 0.0, %v3784
      %v3786 = vpop.f32.mrb[0].mxu0
      %3787 = vmatprep.mubr.bf16.mxu0 %v3461
      %3788 = vmatmul.mubr.bf16.gmra.mrb[0].mxu0 %v3460
      %v3789 = vpop.f32.mrb[0].mxu0
      %v3790 = vadd.f32 0.0, %v3789
      %v3791 = vpop.f32.mrb[0].mxu0
      %v3792 = vpop.f32.mrb[0].mxu0
      %v3793 = vadd.f32 0.0, %v3792
      %v3794 = vpop.f32.mrb[0].mxu0
      %3795 = vmatprep.mubr.bf16.mxu0 %v3464
      %3796 = vmatmul.mubr.bf16.gmra.mrb[0].mxu0 %v3463
      %v3797 = vpop.f32.mrb[0].mxu0
      %v3798 = vadd.f32 0.0, %v3797
      %v3799 = vpop.f32.mrb[0].mxu0
      %v3800 = vpop.f32.mrb[0].mxu0
      %v3801 = vadd.f32 0.0, %v3800
      %v3802 = vpop.f32.mrb[0].mxu0
      %3803 = vmatprep.mubr.bf16.mxu0 %v3467
      %3804 = vmatmul.mubr.bf16.gmra.mrb[0].mxu0 %v3466
      %v3805 = vpop.f32.mrb[0].mxu0
      %v3806 = vadd.f32 0.0, %v3805
      %v3807 = vpop.f32.mrb[0].mxu0
      %v3808 = vpop.f32.mrb[0].mxu0
      %v3809 = vadd.f32 0.0, %v3808
      %v3810 = vpop.f32.mrb[0].mxu0
      %3811 = vmatprep.mubr.bf16.mxu0 %v3470
      %3812 = vmatmul.mubr.bf16.gmra.mrb[0].mxu0 %v3469
      %v3813 = vpop.f32.mrb[0].mxu0
      %v3814 = vadd.f32 0.0, %v3813
      %v3815 = vpop.f32.mrb[0].mxu0
      %v3816 = vpop.f32.mrb[0].mxu0
      %v3817 = vadd.f32 0.0, %v3816
      %v3818 = vpop.f32.mrb[0].mxu0
      %3819 = vmatprep.mubr.bf16.mxu0 %v3473
      %3820 = vmatmul.mubr.bf16.gmra.mrb[0].mxu0 %v3472
      %v3821 = vpop.f32.mrb[0].mxu0
      %v3822 = vadd.f32 0.0, %v3821
      %v3823 = vpop.f32.mrb[0].mxu0
      %v3824 = vpop.f32.mrb[0].mxu0
      %v3825 = vadd.f32 0.0, %v3824
      %v3826 = vpop.f32.mrb[0].mxu0
      %3827 = vmatprep.mubr.bf16.mxu0 %v3476
      %3828 = vmatmul.mubr.bf16.gmra.mrb[0].mxu0 %v3475
      %v3829 = vpop.f32.mrb[0].mxu0
      %v3830 = vadd.f32 0.0, %v3829
      %v3831 = vpop.f32.mrb[0].mxu0
      %v3832 = vpop.f32.mrb[0].mxu0
      %v3833 = vadd.f32 0.0, %v3832
      %v3834 = vpop.f32.mrb[0].mxu0
      %3835 = vmatprep.mubr.bf16.mxu0 %v3479
      %3836 = vmatmul.mubr.bf16.gmra.mrb[0].mxu0 %v3478
      %v3837 = vpop.f32.mrb[0].mxu0
      %v3838 = vadd.f32 0.0, %v3837
      %v3839 = vpop.f32.mrb[0].mxu0
      %v3840 = vpop.f32.mrb[0].mxu0
      %v3841 = vadd.f32 0.0, %v3840
      %v3842 = vpop.f32.mrb[0].mxu0
      %3843 = vmatprep.mubr.bf16.mxu0 %v3482
      %3844 = vmatmul.mubr.bf16.gmra.mrb[0].mxu0 %v3481
      %v3845 = vpop.f32.mrb[0].mxu0
      %v3846 = vadd.f32 0.0, %v3845
      %v3847 = vpop.f32.mrb[0].mxu0
      %v3848 = vpop.f32.mrb[0].mxu0
      %v3849 = vadd.f32 0.0, %v3848
      %v3850 = vpop.f32.mrb[0].mxu0
      %3851 = vmatprep.mubr.bf16.mxu0 %v3485
      %3852 = vmatmul.mubr.bf16.gmra.mrb[0].mxu0 %v3484
      %v3853 = vpop.f32.mrb[0].mxu0
      %v3854 = vadd.f32 0.0, %v3853
      %v3855 = vpop.f32.mrb[0].mxu0
      %v3856 = vpop.f32.mrb[0].mxu0
      %v3857 = vadd.f32 0.0, %v3856
      %v3858 = vpop.f32.mrb[0].mxu0
      %3859 = vmatprep.mubr.bf16.mxu0 %v3488
      %3860 = vmatmul.mubr.bf16.gmra.mrb[0].mxu0 %v3487
      %v3861 = vpop.f32.mrb[0].mxu0
      %v3862 = vadd.f32 0.0, %v3861
      %v3863 = vpop.f32.mrb[0].mxu0
      %v3864 = vpop.f32.mrb[0].mxu0
      %v3865 = vadd.f32 0.0, %v3864
      %v3866 = vpop.f32.mrb[0].mxu0
      %3867 = vmatprep.mubr.bf16.mxu0 %v3491
      %3868 = vmatmul.mubr.bf16.gmra.mrb[0].mxu0 %v3490
      %v3869 = vpop.f32.mrb[0].mxu0
      %v3870 = vadd.f32 0.0, %v3869
      %v3871 = vpop.f32.mrb[0].mxu0
      %v3872 = vpop.f32.mrb[0].mxu0
      %v3873 = vadd.f32 0.0, %v3872
      %v3874 = vpop.f32.mrb[0].mxu0
      %3875 = vmatprep.mubr.bf16.mxu0 %v3494
      %3876 = vmatmul.mubr.bf16.gmra.mrb[0].mxu0 %v3493
      %v3877 = vpop.f32.mrb[0].mxu0
      %v3878 = vadd.f32 0.0, %v3877
      %v3879 = vpop.f32.mrb[0].mxu0
      %v3880 = vpop.f32.mrb[0].mxu0
      %v3881 = vadd.f32 0.0, %v3880
      %v3882 = vpop.f32.mrb[0].mxu0
      %3883 = vmatprep.mubr.bf16.mxu0 %v3497
      %3884 = vmatmul.mubr.bf16.gmra.mrb[0].mxu0 %v3496
      %v3885 = vpop.f32.mrb[0].mxu0
      %v3886 = vadd.f32 0.0, %v3885
      %v3887 = vpop.f32.mrb[0].mxu0
      %v3888 = vpop.f32.mrb[0].mxu0
      %v3889 = vadd.f32 0.0, %v3888
      %v3890 = vpop.f32.mrb[0].mxu0
      %3891 = vmatprep.mubr.bf16.mxu0 %v3500
      %3892 = vmatmul.mubr.bf16.gmra.mrb[0].mxu0 %v3499
      %v3893 = vpop.f32.mrb[0].mxu0
      %v3894 = vadd.f32 0.0, %v3893
      %v3895 = vpop.f32.mrb[0].mxu0
      %v3896 = vpop.f32.mrb[0].mxu0
      %v3897 = vadd.f32 0.0, %v3896
      %v3898 = vpop.f32.mrb[0].mxu0
      %3899 = vmatprep.mubr.bf16.mxu0 %v3503
      %3900 = vmatmul.mubr.bf16.gmra.mrb[0].mxu0 %v3502
      %v3901 = vpop.f32.mrb[0].mxu0
      %v3902 = vadd.f32 0.0, %v3901
      %v3903 = vpop.f32.mrb[0].mxu0
      %v3904 = vpop.f32.mrb[0].mxu0
      %v3905 = vadd.f32 0.0, %v3904
      %v3906 = vpop.f32.mrb[0].mxu0
      %3907 = vmatprep.mubr.bf16.mxu0 %v3506
      %3908 = vmatmul.mubr.bf16.gmra.mrb[0].mxu0 %v3505
      %v3909 = vpop.f32.mrb[0].mxu0
      %v3910 = vadd.f32 0.0, %v3909
      %v3911 = vpop.f32.mrb[0].mxu0
      %v3912 = vpop.f32.mrb[0].mxu0
      %v3913 = vadd.f32 0.0, %v3912
      %v3914 = vpop.f32.mrb[0].mxu0
      %3915 = vmatprep.mubr.bf16.mxu0 %v3509
      %3916 = vmatmul.mubr.bf16.gmra.mrb[0].mxu0 %v3508
      %v3917 = vpop.f32.mrb[0].mxu0
      %v3918 = vadd.f32 0.0, %v3917
      %v3919 = vpop.f32.mrb[0].mxu0
      %v3920 = vpop.f32.mrb[0].mxu0
      %v3921 = vadd.f32 0.0, %v3920
      %v3922 = vpop.f32.mrb[0].mxu0
      %3923 = vmatprep.mubr.bf16.mxu0 %v3512
      %3924 = vmatmul.mubr.bf16.gmra.mrb[0].mxu0 %v3511
      %v3925 = vpop.f32.mrb[0].mxu0
      %v3926 = vadd.f32 0.0, %v3925
      %v3927 = vpop.f32.mrb[0].mxu0
      %v3928 = vpop.f32.mrb[0].mxu0
      %v3929 = vadd.f32 0.0, %v3928
      %v3930 = vpop.f32.mrb[0].mxu0
      %3931 = vdwg.mxu0
      %3932 = vmatprep.subr.bf16.mxu0 0
      %3933 = vmatpush1.bf16.msra.mxu0 %v3675
      %3934 = vmatprep.subr.bf16.mxu0 0
      %3935 = vmatpush1.bf16.msra.mxu0 %v3676
      %3936 = vmatprep.subr.bf16.mxu0 0
      %3937 = vmatpush1.bf16.msra.mxu0 %v3677
      %3938 = vmatprep.subr.bf16.mxu0 0
      %3939 = vmatpush1.bf16.msra.mxu0 %v3678
      %3940 = vmatprep.subr.bf16.mxu0 0
      %3941 = vmatpush1.bf16.msra.mxu0 %v3679
      %3942 = vmatprep.subr.bf16.mxu0 0
      %3943 = vmatpush1.bf16.msra.mxu0 %v3680
      %3944 = vmatprep.subr.bf16.mxu0 0
      %3945 = vmatpush1.bf16.msra.mxu0 %v3681
      %3946 = vmatprep.subr.bf16.mxu0 0
      %3947 = vmatpush1.bf16.msra.mxu0 %v3682
      %3948 = vmatprep.subr.bf16.mxu0 0
      %3949 = vmatpush1.bf16.msra.mxu0 0
      %3950 = vmatprep.subr.bf16.mxu0 0
      %3951 = vmatpush1.bf16.msra.mxu0 0
      %3952 = vmatprep.subr.bf16.mxu0 0
      %3953 = vmatpush1.bf16.msra.mxu0 0
      %3954 = vmatprep.subr.bf16.mxu0 0
      %3955 = vmatpush1.bf16.msra.mxu0 0
      %3956 = vmatprep.subr.bf16.mxu0 0
      %3957 = vmatpush1.bf16.msra.mxu0 0
      %3958 = vmatprep.subr.bf16.mxu0 0
      %3959 = vmatpush1.bf16.msra.mxu0 0
      %3960 = vmatprep.subr.bf16.mxu0 0
      %3961 = vmatpush1.bf16.msra.mxu0 0
      %3962 = vmatprep.subr.bf16.mxu0 0
      %3963 = vmatpush1.bf16.msra.mxu0 0
      %3964 = vmatprep.mubr.bf16.mxu0 0
      %3965 = vmatmul.mubr.bf16.gmra.mrb[0].mxu0 %v3444
      %v3966 = vpop.f32.mrb[0].mxu0
      %v3967 = vadd.f32 %v3742, %v3966
      %v3968 = vpop.f32.mrb[0].mxu0
      %v3969 = vpop.f32.mrb[0].mxu0
      %v3970 = vadd.f32 %v3745, %v3969
      %v3971 = vpop.f32.mrb[0].mxu0
      %3972 = vmatprep.mubr.bf16.mxu0 0
      %3973 = vmatmul.mubr.bf16.gmra.mrb[0].mxu0 %v3447
      %v3974 = vpop.f32.mrb[0].mxu0
      %v3975 = vadd.f32 %v3750, %v3974
      %v3976 = vpop.f32.mrb[0].mxu0
      %v3977 = vpop.f32.mrb[0].mxu0
      %v3978 = vadd.f32 %v3753, %v3977
      %v3979 = vpop.f32.mrb[0].mxu0
      %3980 = vmatprep.mubr.bf16.mxu0 0
      %3981 = vmatmul.mubr.bf16.gmra.mrb[0].mxu0 %v3450
      %v3982 = vpop.f32.mrb[0].mxu0
      %v3983 = vadd.f32 %v3758, %v3982
      %v3984 = vpop.f32.mrb[0].mxu0
      %v3985 = vpop.f32.mrb[0].mxu0
      %v3986 = vadd.f32 %v3761, %v3985
      %v3987 = vpop.f32.mrb[0].mxu0
      %3988 = vmatprep.mubr.bf16.mxu0 0
      %3989 = vmatmul.mubr.bf16.gmra.mrb[0].mxu0 %v3453
      %v3990 = vpop.f32.mrb[0].mxu0
      %v3991 = vadd.f32 %v3766, %v3990
      %v3992 = vpop.f32.mrb[0].mxu0
      %v3993 = vpop.f32.mrb[0].mxu0
      %v3994 = vadd.f32 %v3769, %v3993
      %v3995 = vpop.f32.mrb[0].mxu0
      %3996 = vmatprep.mubr.bf16.mxu0 0
      %3997 = vmatmul.mubr.bf16.gmra.mrb[0].mxu0 %v3456
      %v3998 = vpop.f32.mrb[0].mxu0
      %v3999 = vadd.f32 %v3774, %v3998
      %v4000 = vpop.f32.mrb[0].mxu0
      %v4001 = vpop.f32.mrb[0].mxu0
      %v4002 = vadd.f32 %v3777, %v4001
      %v4003 = vpop.f32.mrb[0].mxu0
      %4004 = vmatprep.mubr.bf16.mxu0 0
      %4005 = vmatmul.mubr.bf16.gmra.mrb[0].mxu0 %v3459
      %v4006 = vpop.f32.mrb[0].mxu0
      %v4007 = vadd.f32 %v3782, %v4006
      %v4008 = vpop.f32.mrb[0].mxu0
      %v4009 = vpop.f32.mrb[0].mxu0
      %v4010 = vadd.f32 %v3785, %v4009
      %v4011 = vpop.f32.mrb[0].mxu0
      %4012 = vmatprep.mubr.bf16.mxu0 0
      %4013 = vmatmul.mubr.bf16.gmra.mrb[0].mxu0 %v3462
      %v4014 = vpop.f32.mrb[0].mxu0
      %v4015 = vadd.f32 %v3790, %v4014
      %v4016 = vpop.f32.mrb[0].mxu0
      %v4017 = vpop.f32.mrb[0].mxu0
      %v4018 = vadd.f32 %v3793, %v4017
      %v4019 = vpop.f32.mrb[0].mxu0
      %4020 = vmatprep.mubr.bf16.mxu0 0
      %4021 = vmatmul.mubr.bf16.gmra.mrb[0].mxu0 %v3465
      %v4022 = vpop.f32.mrb[0].mxu0
      %v4023 = vadd.f32 %v3798, %v4022
      %v4024 = vpop.f32.mrb[0].mxu0
      %v4025 = vpop.f32.mrb[0].mxu0
      %v4026 = vadd.f32 %v3801, %v4025
      %v4027 = vpop.f32.mrb[0].mxu0
      %4028 = vmatprep.mubr.bf16.mxu0 0
      %4029 = vmatmul.mubr.bf16.gmra.mrb[0].mxu0 %v3468
      %v4030 = vpop.f32.mrb[0].mxu0
      %v4031 = vadd.f32 %v3806, %v4030
      %v4032 = vpop.f32.mrb[0].mxu0
      %v4033 = vpop.f32.mrb[0].mxu0
      %v4034 = vadd.f32 %v3809, %v4033
      %v4035 = vpop.f32.mrb[0].mxu0
      %4036 = vmatprep.mubr.bf16.mxu0 0
      %4037 = vmatmul.mubr.bf16.gmra.mrb[0].mxu0 %v3471
      %v4038 = vpop.f32.mrb[0].mxu0
      %v4039 = vadd.f32 %v3814, %v4038
      %v4040 = vpop.f32.mrb[0].mxu0
      %v4041 = vpop.f32.mrb[0].mxu0
      %v4042 = vadd.f32 %v3817, %v4041
      %v4043 = vpop.f32.mrb[0].mxu0
      %4044 = vmatprep.mubr.bf16.mxu0 0
      %4045 = vmatmul.mubr.bf16.gmra.mrb[0].mxu0 %v3474
      %v4046 = vpop.f32.mrb[0].mxu0
      %v4047 = vadd.f32 %v3822, %v4046
      %v4048 = vpop.f32.mrb[0].mxu0
      %v4049 = vpop.f32.mrb[0].mxu0
      %v4050 = vadd.f32 %v3825, %v4049
      %v4051 = vpop.f32.mrb[0].mxu0
      %4052 = vmatprep.mubr.bf16.mxu0 0
      %4053 = vmatmul.mubr.bf16.gmra.mrb[0].mxu0 %v3477
      %v4054 = vpop.f32.mrb[0].mxu0
      %v4055 = vadd.f32 %v3830, %v4054
      %v4056 = vpop.f32.mrb[0].mxu0
      %v4057 = vpop.f32.mrb[0].mxu0
      %v4058 = vadd.f32 %v3833, %v4057
      %v4059 = vpop.f32.mrb[0].mxu0
      %4060 = vmatprep.mubr.bf16.mxu0 0
      %4061 = vmatmul.mubr.bf16.gmra.mrb[0].mxu0 %v3480
      %v4062 = vpop.f32.mrb[0].mxu0
      %v4063 = vadd.f32 %v3838, %v4062
      %v4064 = vpop.f32.mrb[0].mxu0
      %v4065 = vpop.f32.mrb[0].mxu0
      %v4066 = vadd.f32 %v3841, %v4065
      %v4067 = vpop.f32.mrb[0].mxu0
      %4068 = vmatprep.mubr.bf16.mxu0 0
      %4069 = vmatmul.mubr.bf16.gmra.mrb[0].mxu0 %v3483
      %v4070 = vpop.f32.mrb[0].mxu0
      %v4071 = vadd.f32 %v3846, %v4070
      %v4072 = vpop.f32.mrb[0].mxu0
      %v4073 = vpop.f32.mrb[0].mxu0
      %v4074 = vadd.f32 %v3849, %v4073
      %v4075 = vpop.f32.mrb[0].mxu0
      %4076 = vmatprep.mubr.bf16.mxu0 0
      %4077 = vmatmul.mubr.bf16.gmra.mrb[0].mxu0 %v3486
      %v4078 = vpop.f32.mrb[0].mxu0
      %v4079 = vadd.f32 %v3854, %v4078
      %v4080 = vpop.f32.mrb[0].mxu0
      %v4081 = vpop.f32.mrb[0].mxu0
      %v4082 = vadd.f32 %v3857, %v4081
      %v4083 = vpop.f32.mrb[0].mxu0
      %4084 = vmatprep.mubr.bf16.mxu0 0
      %4085 = vmatmul.mubr.bf16.gmra.mrb[0].mxu0 %v3489
      %v4086 = vpop.f32.mrb[0].mxu0
      %v4087 = vadd.f32 %v3862, %v4086
      %v4088 = vpop.f32.mrb[0].mxu0
      %v4089 = vpop.f32.mrb[0].mxu0
      %v4090 = vadd.f32 %v3865, %v4089
      %v4091 = vpop.f32.mrb[0].mxu0
      %4092 = vmatprep.mubr.bf16.mxu0 0
      %4093 = vmatmul.mubr.bf16.gmra.mrb[0].mxu0 %v3492
      %v4094 = vpop.f32.mrb[0].mxu0
      %v4095 = vadd.f32 %v3870, %v4094
      %v4096 = vpop.f32.mrb[0].mxu0
      %v4097 = vpop.f32.mrb[0].mxu0
      %v4098 = vadd.f32 %v3873, %v4097
      %v4099 = vpop.f32.mrb[0].mxu0
      %4100 = vmatprep.mubr.bf16.mxu0 0
      %4101 = vmatmul.mubr.bf16.gmra.mrb[0].mxu0 %v3495
      %v4102 = vpop.f32.mrb[0].mxu0
      %v4103 = vadd.f32 %v3878, %v4102
      %v4104 = vpop.f32.mrb[0].mxu0
      %v4105 = vpop.f32.mrb[0].mxu0
      %v4106 = vadd.f32 %v3881, %v4105
      %v4107 = vpop.f32.mrb[0].mxu0
      %4108 = vmatprep.mubr.bf16.mxu0 0
      %4109 = vmatmul.mubr.bf16.gmra.mrb[0].mxu0 %v3498
      %v4110 = vpop.f32.mrb[0].mxu0
      %v4111 = vadd.f32 %v3886, %v4110
      %v4112 = vpop.f32.mrb[0].mxu0
      %v4113 = vpop.f32.mrb[0].mxu0
      %v4114 = vadd.f32 %v3889, %v4113
      %v4115 = vpop.f32.mrb[0].mxu0
      %4116 = vmatprep.mubr.bf16.mxu0 0
      %4117 = vmatmul.mubr.bf16.gmra.mrb[0].mxu0 %v3501
      %v4118 = vpop.f32.mrb[0].mxu0
      %v4119 = vadd.f32 %v3894, %v4118
      %v4120 = vpop.f32.mrb[0].mxu0
      %v4121 = vpop.f32.mrb[0].mxu0
      %v4122 = vadd.f32 %v3897, %v4121
      %v4123 = vpop.f32.mrb[0].mxu0
      %4124 = vmatprep.mubr.bf16.mxu0 0
      %4125 = vmatmul.mubr.bf16.gmra.mrb[0].mxu0 %v3504
      %v4126 = vpop.f32.mrb[0].mxu0
      %v4127 = vadd.f32 %v3902, %v4126
      %v4128 = vpop.f32.mrb[0].mxu0
      %v4129 = vpop.f32.mrb[0].mxu0
      %v4130 = vadd.f32 %v3905, %v4129
      %v4131 = vpop.f32.mrb[0].mxu0
      %4132 = vmatprep.mubr.bf16.mxu0 0
      %4133 = vmatmul.mubr.bf16.gmra.mrb[0].mxu0 %v3507
      %v4134 = vpop.f32.mrb[0].mxu0
      %v4135 = vadd.f32 %v3910, %v4134
      %v4136 = vpop.f32.mrb[0].mxu0
      %v4137 = vpop.f32.mrb[0].mxu0
      %v4138 = vadd.f32 %v3913, %v4137
      %v4139 = vpop.f32.mrb[0].mxu0
      %4140 = vmatprep.mubr.bf16.mxu0 0
      %4141 = vmatmul.mubr.bf16.gmra.mrb[0].mxu0 %v3510
      %v4142 = vpop.f32.mrb[0].mxu0
      %v4143 = vadd.f32 %v3918, %v4142
      %v4144 = vpop.f32.mrb[0].mxu0
      %v4145 = vpop.f32.mrb[0].mxu0
      %v4146 = vadd.f32 %v3921, %v4145
      %v4147 = vpop.f32.mrb[0].mxu0
      %4148 = vmatprep.mubr.bf16.mxu0 0
      %4149 = vmatmul.mubr.bf16.gmra.mrb[0].mxu0 %v3513
      %v4150 = vpop.f32.mrb[0].mxu0
      %v4151 = vadd.f32 %v3926, %v4150
      %v4152 = vpop.f32.mrb[0].mxu0
      %v4153 = vpop.f32.mrb[0].mxu0
      %v4154 = vadd.f32 %v3929, %v4153
      %v4155 = vpop.f32.mrb[0].mxu0
      %4156 = vdwg.mxu0
      %v4157 = vadd.f32 %v3252, %v3967
      %v4158 = vadd.f32 %v3255, %v3970
      %v4159 = vadd.f32 %v3260, %v3975
      %v4160 = vadd.f32 %v3263, %v3978
      %v4161 = vadd.f32 %v3268, %v3983
      %v4162 = vadd.f32 %v3271, %v3986
      %v4163 = vadd.f32 %v3276, %v3991
      %v4164 = vadd.f32 %v3279, %v3994
      %v4165 = vadd.f32 %v3284, %v3999
      %v4166 = vadd.f32 %v3287, %v4002
      %v4167 = vadd.f32 %v3292, %v4007
      %v4168 = vadd.f32 %v3295, %v4010
      %v4169 = vadd.f32 %v3300, %v4015
      %v4170 = vadd.f32 %v3303, %v4018
      %v4171 = vadd.f32 %v3308, %v4023
      %v4172 = vadd.f32 %v3311, %v4026
      %v4173 = vadd.f32 %v3316, %v4031
      %v4174 = vadd.f32 %v3319, %v4034
      %v4175 = vadd.f32 %v3324, %v4039
      %v4176 = vadd.f32 %v3327, %v4042
      %v4177 = vadd.f32 %v3332, %v4047
      %v4178 = vadd.f32 %v3335, %v4050
      %v4179 = vadd.f32 %v3340, %v4055
      %v4180 = vadd.f32 %v3343, %v4058
      %v4181 = vadd.f32 %v3348, %v4063
      %v4182 = vadd.f32 %v3351, %v4066
      %v4183 = vadd.f32 %v3356, %v4071
      %v4184 = vadd.f32 %v3359, %v4074
      %v4185 = vadd.f32 %v3364, %v4079
      %v4186 = vadd.f32 %v3367, %v4082
      %v4187 = vadd.f32 %v3372, %v4087
      %v4188 = vadd.f32 %v3375, %v4090
      %v4189 = vadd.f32 %v3380, %v4095
      %v4190 = vadd.f32 %v3383, %v4098
      %v4191 = vadd.f32 %v3388, %v4103
      %v4192 = vadd.f32 %v3391, %v4106
      %v4193 = vadd.f32 %v3396, %v4111
      %v4194 = vadd.f32 %v3399, %v4114
      %v4195 = vadd.f32 %v3404, %v4119
      %v4196 = vadd.f32 %v3407, %v4122
      %v4197 = vadd.f32 %v3412, %v4127
      %v4198 = vadd.f32 %v3415, %v4130
      %v4199 = vadd.f32 %v3420, %v4135
      %v4200 = vadd.f32 %v3423, %v4138
      %v4201 = vadd.f32 %v3428, %v4143
      %v4202 = vadd.f32 %v3431, %v4146
      %v4203 = vadd.f32 %v3436, %v4151
      %v4204 = vadd.f32 %v3439, %v4154
      %v4206 = vlaneseq
      %v4207 = vshrl.u32 %v4206, 7
      %v4208 = vsub.s32 0, %v4207
      %v4209 = vrot.slane %v301, %v4208
      %v4211 = vadd.f32 %v4157, %v4209
      %v4212 = vadd.f32 %v4158, %v4209
      %v4213 = vadd.f32 %v4159, %v4209
      %v4214 = vadd.f32 %v4160, %v4209
      %v4215 = vadd.f32 %v4161, %v4209
      %v4216 = vadd.f32 %v4162, %v4209
      %v4217 = vadd.f32 %v4163, %v4209
      %v4218 = vadd.f32 %v4164, %v4209
      %v4219 = vadd.f32 %v4165, %v4209
      %v4220 = vadd.f32 %v4166, %v4209
      %v4221 = vadd.f32 %v4167, %v4209
      %v4222 = vadd.f32 %v4168, %v4209
      %v4223 = vadd.f32 %v4169, %v4209
      %v4224 = vadd.f32 %v4170, %v4209
      %v4225 = vadd.f32 %v4171, %v4209
      %v4226 = vadd.f32 %v4172, %v4209
      %v4227 = vadd.f32 %v4173, %v4209
      %v4228 = vadd.f32 %v4174, %v4209
      %v4229 = vadd.f32 %v4175, %v4209
      %v4230 = vadd.f32 %v4176, %v4209
      %v4231 = vadd.f32 %v4177, %v4209
      %v4232 = vadd.f32 %v4178, %v4209
      %v4233 = vadd.f32 %v4179, %v4209
      %v4234 = vadd.f32 %v4180, %v4209
      %v4235 = vadd.f32 %v4181, %v4209
      %v4236 = vadd.f32 %v4182, %v4209
      %v4237 = vadd.f32 %v4183, %v4209
      %v4238 = vadd.f32 %v4184, %v4209
      %v4239 = vadd.f32 %v4185, %v4209
      %v4240 = vadd.f32 %v4186, %v4209
      %v4241 = vadd.f32 %v4187, %v4209
      %v4242 = vadd.f32 %v4188, %v4209
      %v4243 = vadd.f32 %v4189, %v4209
      %v4244 = vadd.f32 %v4190, %v4209
      %v4245 = vadd.f32 %v4191, %v4209
      %v4246 = vadd.f32 %v4192, %v4209
      %v4247 = vadd.f32 %v4193, %v4209
      %v4248 = vadd.f32 %v4194, %v4209
      %v4249 = vadd.f32 %v4195, %v4209
      %v4250 = vadd.f32 %v4196, %v4209
      %v4251 = vadd.f32 %v4197, %v4209
      %v4252 = vadd.f32 %v4198, %v4209
      %v4253 = vadd.f32 %v4199, %v4209
      %v4254 = vadd.f32 %v4200, %v4209
      %v4255 = vadd.f32 %v4201, %v4209
      %v4256 = vadd.f32 %v4202, %v4209
      %v4257 = vadd.f32 %v4203, %v4209
      %v4258 = vadd.f32 %v4204, %v4209
      %v4259 = vld [vmem:[%s293] sm:$0xff]
      %v4260 = vld [vmem:[%s293 + $0x8] sm:$0xff]
      %v4261 = vld [vmem:[%s293 + $0x10] sm:$0xff]
      %v4262 = vld [vmem:[%s293 + $0x18] sm:$0xff]
      %v4263 = vld [vmem:[%s293 + $0x20] sm:$0xff]
      %v4264 = vld [vmem:[%s293 + $0x28] sm:$0xff]
      %v4265 = vld [vmem:[%s293 + $0x30] sm:$0xff]
      %v4266 = vld [vmem:[%s293 + $0x38] sm:$0xff]
      %v4267 = vld [vmem:[%s293 + $0x40] sm:$0xff]
      %v4268 = vld [vmem:[%s293 + $0x48] sm:$0xff]
      %v4269 = vld [vmem:[%s293 + $0x50] sm:$0xff]
      %v4270 = vld [vmem:[%s293 + $0x58] sm:$0xff]
      %v4271 = vld [vmem:[%s293 + $0x60] sm:$0xff]
      %v4272 = vld [vmem:[%s293 + $0x68] sm:$0xff]
      %v4273 = vld [vmem:[%s293 + $0x70] sm:$0xff]
      %v4274 = vld [vmem:[%s293 + $0x78] sm:$0xff]
      %v4275 = vld [vmem:[%s293 + $0x80] sm:$0xff]
      %v4276 = vld [vmem:[%s293 + $0x88] sm:$0xff]
      %v4277 = vld [vmem:[%s293 + $0x90] sm:$0xff]
      %v4278 = vld [vmem:[%s293 + $0x98] sm:$0xff]
      %v4279 = vld [vmem:[%s293 + $0xa0] sm:$0xff]
      %v4280 = vld [vmem:[%s293 + $0xa8] sm:$0xff]
      %v4281 = vld [vmem:[%s293 + $0xb0] sm:$0xff]
      %v4282 = vld [vmem:[%s293 + $0xb8] sm:$0xff]
      %v4283 = vld [vmem:[%s293 + $0xc0] sm:$0xff]
      %v4284 = vld [vmem:[%s293 + $0xc8] sm:$0xff]
      %v4285 = vld [vmem:[%s293 + $0xd0] sm:$0xff]
      %v4286 = vld [vmem:[%s293 + $0xd8] sm:$0xff]
      %v4287 = vld [vmem:[%s293 + $0xe0] sm:$0xff]
      %v4288 = vld [vmem:[%s293 + $0xe8] sm:$0xff]
      %v4289 = vld [vmem:[%s293 + $0xf0] sm:$0xff]
      %v4290 = vld [vmem:[%s293 + $0xf8] sm:$0xff]
      %v4291 = vld [vmem:[%s293 + $0x100] sm:$0xff]
      %v4292 = vld [vmem:[%s293 + $0x108] sm:$0xff]
      %v4293 = vld [vmem:[%s293 + $0x110] sm:$0xff]
      %v4294 = vld [vmem:[%s293 + $0x118] sm:$0xff]
      %v4295 = vld [vmem:[%s293 + $0x120] sm:$0xff]
      %v4296 = vld [vmem:[%s293 + $0x128] sm:$0xff]
      %v4297 = vld [vmem:[%s293 + $0x130] sm:$0xff]
      %v4298 = vld [vmem:[%s293 + $0x138] sm:$0xff]
      %v4299 = vld [vmem:[%s293 + $0x140] sm:$0xff]
      %v4300 = vld [vmem:[%s293 + $0x148] sm:$0xff]
      %v4301 = vld [vmem:[%s293 + $0x150] sm:$0xff]
      %v4302 = vld [vmem:[%s293 + $0x158] sm:$0xff]
      %v4303 = vld [vmem:[%s293 + $0x160] sm:$0xff]
      %v4304 = vld [vmem:[%s293 + $0x168] sm:$0xff]
      %v4305 = vld [vmem:[%s293 + $0x170] sm:$0xff]
      %v4306 = vld [vmem:[%s293 + $0x178] sm:$0xff]
      %v4307 = vadd.f32 %v4211, %v4259
      %v4308 = vadd.f32 %v4212, %v4260
      %v4309 = vadd.f32 %v4213, %v4261
      %v4310 = vadd.f32 %v4214, %v4262
      %v4311 = vadd.f32 %v4215, %v4263
      %v4312 = vadd.f32 %v4216, %v4264
      %v4313 = vadd.f32 %v4217, %v4265
      %v4314 = vadd.f32 %v4218, %v4266
      %v4315 = vadd.f32 %v4219, %v4267
      %v4316 = vadd.f32 %v4220, %v4268
      %v4317 = vadd.f32 %v4221, %v4269
      %v4318 = vadd.f32 %v4222, %v4270
      %v4319 = vadd.f32 %v4223, %v4271
      %v4320 = vadd.f32 %v4224, %v4272
      %v4321 = vadd.f32 %v4225, %v4273
      %v4322 = vadd.f32 %v4226, %v4274
      %v4323 = vadd.f32 %v4227, %v4275
      %v4324 = vadd.f32 %v4228, %v4276
      %v4325 = vadd.f32 %v4229, %v4277
      %v4326 = vadd.f32 %v4230, %v4278
      %v4327 = vadd.f32 %v4231, %v4279
      %v4328 = vadd.f32 %v4232, %v4280
      %v4329 = vadd.f32 %v4233, %v4281
      %v4330 = vadd.f32 %v4234, %v4282
      %v4331 = vadd.f32 %v4235, %v4283
      %v4332 = vadd.f32 %v4236, %v4284
      %v4333 = vadd.f32 %v4237, %v4285
      %v4334 = vadd.f32 %v4238, %v4286
      %v4335 = vadd.f32 %v4239, %v4287
      %v4336 = vadd.f32 %v4240, %v4288
      %v4337 = vadd.f32 %v4241, %v4289
      %v4338 = vadd.f32 %v4242, %v4290
      %v4339 = vadd.f32 %v4243, %v4291
      %v4340 = vadd.f32 %v4244, %v4292
      %v4341 = vadd.f32 %v4245, %v4293
      %v4342 = vadd.f32 %v4246, %v4294
      %v4343 = vadd.f32 %v4247, %v4295
      %v4344 = vadd.f32 %v4248, %v4296
      %v4345 = vadd.f32 %v4249, %v4297
      %v4346 = vadd.f32 %v4250, %v4298
      %v4347 = vadd.f32 %v4251, %v4299
      %v4348 = vadd.f32 %v4252, %v4300
      %v4349 = vadd.f32 %v4253, %v4301
      %v4350 = vadd.f32 %v4254, %v4302
      %v4351 = vadd.f32 %v4255, %v4303
      %v4352 = vadd.f32 %v4256, %v4304
      %v4353 = vadd.f32 %v4257, %v4305
      %v4354 = vadd.f32 %v4258, %v4306
      %v4355 = vmax.f32 %v4307, 0.0
      %v4356 = vmax.f32 %v4308, 0.0
      %v4357 = vmax.f32 %v4309, 0.0
      %v4358 = vmax.f32 %v4310, 0.0
      %v4359 = vmax.f32 %v4311, 0.0
      %v4360 = vmax.f32 %v4312, 0.0
      %v4361 = vmax.f32 %v4313, 0.0
      %v4362 = vmax.f32 %v4314, 0.0
      %v4363 = vmax.f32 %v4315, 0.0
      %v4364 = vmax.f32 %v4316, 0.0
      %v4365 = vmax.f32 %v4317, 0.0
      %v4366 = vmax.f32 %v4318, 0.0
      %v4367 = vmax.f32 %v4319, 0.0
      %v4368 = vmax.f32 %v4320, 0.0
      %v4369 = vmax.f32 %v4321, 0.0
      %v4370 = vmax.f32 %v4322, 0.0
      %v4371 = vmax.f32 %v4323, 0.0
      %v4372 = vmax.f32 %v4324, 0.0
      %v4373 = vmax.f32 %v4325, 0.0
      %v4374 = vmax.f32 %v4326, 0.0
      %v4375 = vmax.f32 %v4327, 0.0
      %v4376 = vmax.f32 %v4328, 0.0
      %v4377 = vmax.f32 %v4329, 0.0
      %v4378 = vmax.f32 %v4330, 0.0
      %v4379 = vmax.f32 %v4331, 0.0
      %v4380 = vmax.f32 %v4332, 0.0
      %v4381 = vmax.f32 %v4333, 0.0
      %v4382 = vmax.f32 %v4334, 0.0
      %v4383 = vmax.f32 %v4335, 0.0
      %v4384 = vmax.f32 %v4336, 0.0
      %v4385 = vmax.f32 %v4337, 0.0
      %v4386 = vmax.f32 %v4338, 0.0
      %v4387 = vmax.f32 %v4339, 0.0
      %v4388 = vmax.f32 %v4340, 0.0
      %v4389 = vmax.f32 %v4341, 0.0
      %v4390 = vmax.f32 %v4342, 0.0
      %v4391 = vmax.f32 %v4343, 0.0
      %v4392 = vmax.f32 %v4344, 0.0
      %v4393 = vmax.f32 %v4345, 0.0
      %v4394 = vmax.f32 %v4346, 0.0
      %v4395 = vmax.f32 %v4347, 0.0
      %v4396 = vmax.f32 %v4348, 0.0
      %v4397 = vmax.f32 %v4349, 0.0
      %v4398 = vmax.f32 %v4350, 0.0
      %v4399 = vmax.f32 %v4351, 0.0
      %v4400 = vmax.f32 %v4352, 0.0
      %v4401 = vmax.f32 %v4353, 0.0
      %v4402 = vmax.f32 %v4354, 0.0
      %v4403 = vpack.c.bf16 %v4356, %v4355
      %v4404 = vpack.c.bf16 %v4358, %v4357
      %v4405 = vpack.c.bf16 %v4360, %v4359
      %v4406 = vpack.c.bf16 %v4362, %v4361
      %v4407 = vpack.c.bf16 %v4364, %v4363
      %v4408 = vpack.c.bf16 %v4366, %v4365
      %v4409 = vpack.c.bf16 %v4368, %v4367
      %v4410 = vpack.c.bf16 %v4370, %v4369
      %v4411 = vpack.c.bf16 %v4372, %v4371
      %v4412 = vpack.c.bf16 %v4374, %v4373
      %v4413 = vpack.c.bf16 %v4376, %v4375
      %v4414 = vpack.c.bf16 %v4378, %v4377
      %v4415 = vpack.c.bf16 %v4380, %v4379
      %v4416 = vpack.c.bf16 %v4382, %v4381
      %v4417 = vpack.c.bf16 %v4384, %v4383
      %v4418 = vpack.c.bf16 %v4386, %v4385
      %v4419 = vpack.c.bf16 %v4388, %v4387
      %v4420 = vpack.c.bf16 %v4390, %v4389
      %v4421 = vpack.c.bf16 %v4392, %v4391
      %v4422 = vpack.c.bf16 %v4394, %v4393
      %v4423 = vpack.c.bf16 %v4396, %v4395
      %v4424 = vpack.c.bf16 %v4398, %v4397
      %v4425 = vpack.c.bf16 %v4400, %v4399
      %v4426 = vpack.c.bf16 %v4402, %v4401
      %v4451 = vunpack.c.l.b16 %v4403
      %v4452 = vunpack.c.h.b16 %v4403
      %v4453 = vunpack.c.l.b16 %v4404
      %v4454 = vunpack.c.h.b16 %v4404
      %v4455 = vunpack.c.l.b16 %v4405
      %v4456 = vunpack.c.h.b16 %v4405
      %v4457 = vunpack.c.l.b16 %v4406
      %v4458 = vunpack.c.h.b16 %v4406
      %v4459 = vunpack.c.l.b16 %v4407
      %v4460 = vunpack.c.h.b16 %v4407
      %v4461 = vunpack.c.l.b16 %v4408
      %v4462 = vunpack.c.h.b16 %v4408
      %v4463 = vunpack.c.l.b16 %v4409
      %v4464 = vunpack.c.h.b16 %v4409
      %v4465 = vunpack.c.l.b16 %v4410
      %v4466 = vunpack.c.h.b16 %v4410
      %v4467 = vunpack.c.l.b16 %v4411
      %v4468 = vunpack.c.h.b16 %v4411
      %v4469 = vunpack.c.l.b16 %v4412
      %v4470 = vunpack.c.h.b16 %v4412
      %v4471 = vunpack.c.l.b16 %v4413
      %v4472 = vunpack.c.h.b16 %v4413
      %v4473 = vunpack.c.l.b16 %v4414
      %v4474 = vunpack.c.h.b16 %v4414
      %v4475 = vunpack.c.l.b16 %v4415
      %v4476 = vunpack.c.h.b16 %v4415
      %v4477 = vunpack.c.l.b16 %v4416
      %v4478 = vunpack.c.h.b16 %v4416
      %v4479 = vunpack.c.l.b16 %v4417
      %v4480 = vunpack.c.h.b16 %v4417
      %v4481 = vunpack.c.l.b16 %v4418
      %v4482 = vunpack.c.h.b16 %v4418
      %v4483 = vunpack.c.l.b16 %v4419
      %v4484 = vunpack.c.h.b16 %v4419
      %v4485 = vunpack.c.l.b16 %v4420
      %v4486 = vunpack.c.h.b16 %v4420
      %v4487 = vunpack.c.l.b16 %v4421
      %v4488 = vunpack.c.h.b16 %v4421
      %v4489 = vunpack.c.l.b16 %v4422
      %v4490 = vunpack.c.h.b16 %v4422
      %v4491 = vunpack.c.l.b16 %v4423
      %v4492 = vunpack.c.h.b16 %v4423
      %v4493 = vunpack.c.l.b16 %v4424
      %v4494 = vunpack.c.h.b16 %v4424
      %v4495 = vunpack.c.l.b16 %v4425
      %v4496 = vunpack.c.h.b16 %v4425
      %v4497 = vunpack.c.l.b16 %v4426
      %v4498 = vunpack.c.h.b16 %v4426
      %v4499 = vpack.c.b16 %v4451, %v4451
      %v4500 = vpack.c.b16 %v4452, %v4452
      %v4501 = vpack.c.b16 %v4453, %v4453
      %v4502 = vpack.c.b16 %v4454, %v4454
      %v4503 = vpack.c.b16 %v4455, %v4455
      %v4504 = vpack.c.b16 %v4456, %v4456
      %v4505 = vpack.c.b16 %v4457, %v4457
      %v4506 = vpack.c.b16 %v4458, %v4458
      %v4507 = vpack.c.b16 %v4459, %v4459
      %v4508 = vpack.c.b16 %v4460, %v4460
      %v4509 = vpack.c.b16 %v4461, %v4461
      %v4510 = vpack.c.b16 %v4462, %v4462
      %v4511 = vpack.c.b16 %v4463, %v4463
      %v4512 = vpack.c.b16 %v4464, %v4464
      %v4513 = vpack.c.b16 %v4465, %v4465
      %v4514 = vpack.c.b16 %v4466, %v4466
      %v4515 = vpack.c.b16 %v4467, %v4467
      %v4516 = vpack.c.b16 %v4468, %v4468
      %v4517 = vpack.c.b16 %v4469, %v4469
      %v4518 = vpack.c.b16 %v4470, %v4470
      %v4519 = vpack.c.b16 %v4471, %v4471
      %v4520 = vpack.c.b16 %v4472, %v4472
      %v4521 = vpack.c.b16 %v4473, %v4473
      %v4522 = vpack.c.b16 %v4474, %v4474
      %v4523 = vpack.c.b16 %v4475, %v4475
      %v4524 = vpack.c.b16 %v4476, %v4476
      %v4525 = vpack.c.b16 %v4477, %v4477
      %v4526 = vpack.c.b16 %v4478, %v4478
      %v4527 = vpack.c.b16 %v4479, %v4479
      %v4528 = vpack.c.b16 %v4480, %v4480
      %v4529 = vpack.c.b16 %v4481, %v4481
      %v4530 = vpack.c.b16 %v4482, %v4482
      %v4531 = vpack.c.b16 %v4483, %v4483
      %v4532 = vpack.c.b16 %v4484, %v4484
      %v4533 = vpack.c.b16 %v4485, %v4485
      %v4534 = vpack.c.b16 %v4486, %v4486
      %v4535 = vpack.c.b16 %v4487, %v4487
      %v4536 = vpack.c.b16 %v4488, %v4488
      %v4537 = vpack.c.b16 %v4489, %v4489
      %v4538 = vpack.c.b16 %v4490, %v4490
      %v4539 = vpack.c.b16 %v4491, %v4491
      %v4540 = vpack.c.b16 %v4492, %v4492
      %v4541 = vpack.c.b16 %v4493, %v4493
      %v4542 = vpack.c.b16 %v4494, %v4494
      %v4543 = vpack.c.b16 %v4495, %v4495
      %v4544 = vpack.c.b16 %v4496, %v4496
      %v4545 = vpack.c.b16 %v4497, %v4497
      %v4546 = vpack.c.b16 %v4498, %v4498
      %4595 = vst [vmem:[%s298] sm:$0xf] %v4499
      %4596 = vst [vmem:[%s298 + $0x4] sm:$0xf] %v4500
      %4597 = vst [vmem:[%s298 + $0x8] sm:$0xf] %v4501
      %4598 = vst [vmem:[%s298 + $0xc] sm:$0xf] %v4502
      %4599 = vst [vmem:[%s298 + $0x10] sm:$0xf] %v4503
      %4600 = vst [vmem:[%s298 + $0x14] sm:$0xf] %v4504
      %4601 = vst [vmem:[%s298 + $0x18] sm:$0xf] %v4505
      %4602 = vst [vmem:[%s298 + $0x1c] sm:$0xf] %v4506
      %4603 = vst [vmem:[%s298 + $0x20] sm:$0xf] %v4507
      %4604 = vst [vmem:[%s298 + $0x24] sm:$0xf] %v4508
      %4605 = vst [vmem:[%s298 + $0x28] sm:$0xf] %v4509
      %4606 = vst [vmem:[%s298 + $0x2c] sm:$0xf] %v4510
      %4607 = vst [vmem:[%s298 + $0x30] sm:$0xf] %v4511
      %4608 = vst [vmem:[%s298 + $0x34] sm:$0xf] %v4512
      %4609 = vst [vmem:[%s298 + $0x38] sm:$0xf] %v4513
      %4610 = vst [vmem:[%s298 + $0x3c] sm:$0xf] %v4514
      %4611 = vst [vmem:[%s298 + $0x40] sm:$0xf] %v4515
      %4612 = vst [vmem:[%s298 + $0x44] sm:$0xf] %v4516
      %4613 = vst [vmem:[%s298 + $0x48] sm:$0xf] %v4517
      %4614 = vst [vmem:[%s298 + $0x4c] sm:$0xf] %v4518
      %4615 = vst [vmem:[%s298 + $0x50] sm:$0xf] %v4519
      %4616 = vst [vmem:[%s298 + $0x54] sm:$0xf] %v4520
      %4617 = vst [vmem:[%s298 + $0x58] sm:$0xf] %v4521
      %4618 = vst [vmem:[%s298 + $0x5c] sm:$0xf] %v4522
      %4619 = vst [vmem:[%s298 + $0x60] sm:$0xf] %v4523
      %4620 = vst [vmem:[%s298 + $0x64] sm:$0xf] %v4524
      %4621 = vst [vmem:[%s298 + $0x68] sm:$0xf] %v4525
      %4622 = vst [vmem:[%s298 + $0x6c] sm:$0xf] %v4526
      %4623 = vst [vmem:[%s298 + $0x70] sm:$0xf] %v4527
      %4624 = vst [vmem:[%s298 + $0x74] sm:$0xf] %v4528
      %4625 = vst [vmem:[%s298 + $0x78] sm:$0xf] %v4529
      %4626 = vst [vmem:[%s298 + $0x7c] sm:$0xf] %v4530
      %4627 = vst [vmem:[%s298 + $0x80] sm:$0xf] %v4531
      %4628 = vst [vmem:[%s298 + $0x84] sm:$0xf] %v4532
      %4629 = vst [vmem:[%s298 + $0x88] sm:$0xf] %v4533
      %4630 = vst [vmem:[%s298 + $0x8c] sm:$0xf] %v4534
      %4631 = vst [vmem:[%s298 + $0x90] sm:$0xf] %v4535
      %4632 = vst [vmem:[%s298 + $0x94] sm:$0xf] %v4536
      %4633 = vst [vmem:[%s298 + $0x98] sm:$0xf] %v4537
      %4634 = vst [vmem:[%s298 + $0x9c] sm:$0xf] %v4538
      %4635 = vst [vmem:[%s298 + $0xa0] sm:$0xf] %v4539
      %4636 = vst [vmem:[%s298 + $0xa4] sm:$0xf] %v4540
      %4637 = vst [vmem:[%s298 + $0xa8] sm:$0xf] %v4541
      %4638 = vst [vmem:[%s298 + $0xac] sm:$0xf] %v4542
      %4639 = vst [vmem:[%s298 + $0xb0] sm:$0xf] %v4543
      %4640 = vst [vmem:[%s298 + $0xb4] sm:$0xf] %v4544
      %4641 = vst [vmem:[%s298 + $0xb8] sm:$0xf] %v4545
      %4642 = vst [vmem:[%s298 + $0xbc] sm:$0xf] %v4546
      %p4643 = scmp.lt.s32.totalorder %s18, 1
      %s4644 = scalar_select %p4643, %s18, 1
      %s4645 = smul.addr %s4644, 48
      %s4646 = smul.addr %s4645, 4
      %s4647 = scalar_lea.vmem %s7, %s4646
      // Predicated region
      $region49: #{basic_block_forward.1} parent=47 // pred_check
        %p4648 = pneg %p193
      $region50: #{basic_block_forward.1} parent=47 // pred_check_branch
        %4650 = sbr.rel (%p4648) target = $region52
      $region51: #{basic_block_forward.1} parent=47 // pred_region
        _
      $region52: #{basic_block_forward.1} parent=47 // pred_fallthru
        _
    $region48: #{basic_block_forward.1} parent=5 // pred_fallthru
      _
    %p4651 = scmp.le.s32.totalorder 2, %s13
    // Predicated region
    $region53: #{basic_block_forward.1} parent=5 // pred_check
      %p4652 = pneg %p4651
    $region54: #{basic_block_forward.1} parent=5 // pred_check_branch
      %4654 = sbr.rel (%p4652) target = $region56
    $region55: #{basic_block_forward.1} parent=5 // pred_region
      %s4655 = ssub.s32 %s13, 2
      // Predicated region
      $region57: #{basic_block_forward.1} parent=55 // pred_check
        %p4656 = pneg %p199
      $region58: #{basic_block_forward.1} parent=55 // pred_check_branch
        %4658 = sbr.rel (%p4656) target = $region60
      $region59: #{basic_block_forward.1} parent=55 // pred_region
        %p4659 = scmp.lt.s32.totalorder %s19, 1
        %s4660 = scalar_select %p4659, %s19, 1
        %s4661 = smul.addr %s4660, 48
        %s4662 = smul.addr %s4661, 4
        %s4663 = scalar_lea.vmem %s7, %s4662
      $region60: #{basic_block_forward.1} parent=55 // pred_fallthru
        _
    $region56: #{basic_block_forward.1} parent=5 // pred_fallthru
      _
  $region6: #{basic_block_forward.1} parent=0 // loop_footer
    %s17 = sadd.s32 1, %s13
  $region7: #{basic_block_forward.1} parent=0 // loop_footer_branch
    %12 = sbr.rel target = $region3
  $region8: #{basic_block_forward.1} parent=0 // loop_exit
    _

</llo_original>
